<compile_context>
chip_gen: v6e
topology: v6e:2x2x1
jax: 0.10.0
libtpu: 0.0.40
codegen_flags: <defaults>
</compile_context>

<pallas_src>
import jax
import jax.numpy as jnp
from jax.experimental import pallas as pl
from jax.experimental.pallas import tpu as pltpu


# ---------------------------------------------------------------------------
# Small helpers
# ---------------------------------------------------------------------------
def _round_up(n, m):
    return ((n + m - 1) // m) * m


def _cdiv(a, b):
    return -(-a // b)


def _choose_batch_tiling(B, tm_max=512):
    """Pick (tm, b_pad, n_tiles): >=2 tiles when B>=64 (v7x megacore), tile
    rows a multiple of 16 (bf16 sublane packing), no pathological padding."""
    n_tiles = max(1, _cdiv(B, tm_max))
    if B >= 64:
        n_tiles = max(n_tiles, 2)
    tm = _round_up(_cdiv(B, n_tiles), 16)
    return tm, n_tiles * tm, n_tiles


# ---------------------------------------------------------------------------
# Kernel
# ---------------------------------------------------------------------------
def make_encoder_kernel(overlap_w3):
    def _dense(h_bf16, w_q, scale, bias):
        # int8 -> f32 -> bf16 dequant (exact for |q|<=127), bf16 MXU matmul,
        # f32 accumulate, then per-output-channel scale + bias on the VPU.
        w = w_q.astype(jnp.float32).astype(jnp.bfloat16)
        acc = jnp.dot(h_bf16, w, preferred_element_type=jnp.float32)
        return acc * scale + bias

    def kernel(x_ref,
               w1, s1, b1,
               w2, s2, b2,
               w3, s3, b3,
               wh, sh, bh,
               out_ref, *scratch):
        if overlap_w3:
            # Start streaming the big fc3 weight while fc1/fc2 run.
            w3_vmem, sem = scratch
            cp = pltpu.make_async_copy(w3, w3_vmem, sem)
            cp.start()

        h = jnp.maximum(_dense(x_ref[...], w1[...], s1[...], b1[...]), 0.0)
        h = h.astype(jnp.bfloat16)
        h = jnp.maximum(_dense(h, w2[...], s2[...], b2[...]), 0.0)
        h = h.astype(jnp.bfloat16)

        if overlap_w3:
            cp.wait()
            w3_vals = w3_vmem[...]
        else:
            w3_vals = w3[...]

        h = jnp.maximum(_dense(h, w3_vals, s3[...], b3[...]), 0.0)
        h = h.astype(jnp.bfloat16)

        # Fused mu | log_var head: one matmul, one lane store.
        out_ref[...] = _dense(h, wh[...], sh[...], bh[...])

    return kernel


# ---------------------------------------------------------------------------
# Parameter packing (int8 weights + per-channel scales, lane-padded, fused head)
# ---------------------------------------------------------------------------
def prepare_params(params):
    """Pack raw f32 [in,out] weights / [out] biases into kernel-ready form."""
    d_in = params["w1"].shape[0]
    h1 = _round_up(params["w1"].shape[1], 128)   # 500  -> 512
    h2 = _round_up(params["w2"].shape[1], 128)   # 500  -> 512
    h3 = _round_up(params["w3"].shape[1], 128)   # 2000 -> 2048
    latent = params["wmu"].shape[1]

    w_head = jnp.concatenate([params["wmu"], params["wlv"]], axis=1)   # [2000, 2L]
    b_head = jnp.concatenate([params["bmu"], params["blv"]], axis=0)   # [2L]

    def quant(w, rows, cols):
        w = jnp.pad(w, ((0, rows - w.shape[0]), (0, cols - w.shape[1])))
        absmax = jnp.max(jnp.abs(w), axis=0)
        scale = jnp.maximum(absmax / 127.0, 1e-10)
        w_q = jnp.clip(jnp.round(w / scale), -127.0, 127.0).astype(jnp.int8)
        return w_q, scale.reshape(1, -1).astype(jnp.float32)

    def pad_bias(b, n):
        return jnp.pad(b, (0, n - b.shape[0])).reshape(1, n).astype(jnp.float32)

    w1, s1 = quant(params["w1"], d_in, h1)
    w2, s2 = quant(params["w2"], h1, h2)
    w3, s3 = quant(params["w3"], h2, h3)
    wh, sh = quant(w_head, h3, 2 * latent)

    return dict(
        w1=w1, s1=s1, b1=pad_bias(params["b1"], h1),
        w2=w2, s2=s2, b2=pad_bias(params["b2"], h2),
        w3=w3, s3=s3, b3=pad_bias(params["b3"], h3),
        wh=wh, sh=sh, bh=pad_bias(b_head, 2 * latent),
        latent=latent,
    )


# ---------------------------------------------------------------------------
# Wrapper
# ---------------------------------------------------------------------------
def encoder_forward(x, packed, tm_max=512):
    """x: [B, input_dim] f32.  packed: output of prepare_params."""
    B, d_in = x.shape
    latent = packed["latent"]
    two_l = 2 * latent

    tm, b_pad, n_tiles = _choose_batch_tiling(B, tm_max)

    # bf16 input (halves x HBM read; kernel consumes bf16 directly).
    x16 = x.astype(jnp.bfloat16)
    if b_pad != B:
        x16 = jnp.pad(x16, ((0, b_pad - B), (0, 0)))

    # Single-tile (small batch): overlap the 1 MiB w3 DMA with fc1/fc2.
    # Multi-tile: keep every weight VMEM-resident (one HBM read per call).
    overlap_w3 = (n_tiles == 1)

    vmem_spec = pl.BlockSpec(memory_space=pltpu.MemorySpace.VMEM)
    weight_args = (packed["w1"], packed["s1"], packed["b1"],
                   packed["w2"], packed["s2"], packed["b2"],
                   packed["w3"], packed["s3"], packed["b3"],
                   packed["wh"], packed["sh"], packed["bh"])
    w_specs = [vmem_spec] * len(weight_args)
    scratch_shapes = []
    if overlap_w3:
        w_specs[6] = pl.BlockSpec(memory_space=pl.ANY)          # w3 stays in HBM
        scratch_shapes = [pltpu.VMEM(packed["w3"].shape, jnp.int8),
                          pltpu.SemaphoreType.DMA(())]

    out = pl.pallas_call(
        make_encoder_kernel(overlap_w3),
        out_shape=jax.ShapeDtypeStruct((b_pad, two_l), jnp.float32),
        grid=(n_tiles,),
        in_specs=[pl.BlockSpec((tm, d_in), lambda i: (i, 0))] + w_specs,
        out_specs=pl.BlockSpec((tm, two_l), lambda i: (i, 0)),
        scratch_shapes=scratch_shapes,
        compiler_params=pltpu.CompilerParams(
            dimension_semantics=("parallel",),
            vmem_limit_bytes=32 << 20,
        ),
    )(x16, *weight_args)

    out = out[:B]
    return out[:, :latent], out[:, latent:]


# ---------------------------------------------------------------------------
# Init + reference (same int8-weight / bf16-activation / f32-accumulate numerics)
# ---------------------------------------------------------------------------
def init_params(key, input_dim, latent_dim):
    """Mirrors nn.Linear's U(-1/sqrt(fan_in), 1/sqrt(fan_in)); weights [in, out]."""
    dims = [("w1", "b1", input_dim, 500),
            ("w2", "b2", 500, 500),
            ("w3", "b3", 500, 2000),
            ("wmu", "bmu", 2000, latent_dim),
            ("wlv", "blv", 2000, latent_dim)]
    params = {}
    for wname, bname, fan_in, fan_out in dims:
        key, kw, kb = jax.random.split(key, 3)
        bound = 1.0 / jnp.sqrt(float(fan_in))
        params[wname] = jax.random.uniform(
            kw, (fan_in, fan_out), jnp.float32, -bound, bound)
        params[bname] = jax.random.uniform(
            kb, (fan_out,), jnp.float32, -bound, bound)
    return params


def encoder_reference(x, packed):
    """Pure-JAX reference with numerics matched to the kernel (quantized
    weights, bf16 activations, f32 accumulation, per-channel scales)."""
    def dense(h, w_q, scale, b):
        h16 = h.astype(jnp.bfloat16).astype(jnp.float32)
        return jnp.dot(h16, w_q.astype(jnp.float32)) * scale + b

    h = jnp.maximum(dense(x, packed["w1"], packed["s1"], packed["b1"]), 0.0)
    h = jnp.maximum(dense(h, packed["w2"], packed["s2"], packed["b2"]), 0.0)
    h = jnp.maximum(dense(h, packed["w3"], packed["s3"], packed["b3"]), 0.0)
    out = dense(h, packed["wh"], packed["sh"], packed["bh"])
    latent = packed["latent"]
    return out[:, :latent], out[:, latent:]


if __name__ == "__main__":
    INPUT_DIM = 32
    LATENT_DIM = 16

    key = jax.random.PRNGKey(0)
    key, kx = jax.random.split(key)
    params = init_params(key, INPUT_DIM, LATENT_DIM)
    packed = prepare_params(params)

    # Exercise both code paths:
    #   B=8  -> single tile, w3 DMA overlapped with fc1/fc2
    #   B=72 -> 2 batch tiles (megacore-shardable), VMEM-resident weights
    for batch in (8, 72):
        kx, sub = jax.random.split(kx)
        x = jax.random.normal(sub, (batch, INPUT_DIM), jnp.float32)

        mu, log_var = encoder_forward(x, packed)
        mu = jax.block_until_ready(mu)
        log_var = jax.block_until_ready(log_var)

        mu_ref, lv_ref = encoder_reference(x, packed)
        assert mu.shape == (batch, LATENT_DIM)
        assert log_var.shape == (batch, LATENT_DIM)
        assert jnp.allclose(mu, mu_ref, atol=2e-2, rtol=2e-2), \
            float(jnp.max(jnp.abs(mu - mu_ref)))
        assert jnp.allclose(log_var, lv_ref, atol=2e-2, rtol=2e-2), \
            float(jnp.max(jnp.abs(log_var - lv_ref)))

    print("KERNEL_OK")
</pallas_src>

<mosaic_0001>
module attributes {stable_mosaic.version = 11 : i64} {
  func.func @kernel(%arg0: i32, %arg1: memref<16x32xbf16, #tpu.memory_space<vmem>>, %arg2: memref<32x512xi8, #tpu.memory_space<vmem>>, %arg3: memref<1x512xf32, #tpu.memory_space<vmem>>, %arg4: memref<1x512xf32, #tpu.memory_space<vmem>>, %arg5: memref<512x512xi8, #tpu.memory_space<vmem>>, %arg6: memref<1x512xf32, #tpu.memory_space<vmem>>, %arg7: memref<1x512xf32, #tpu.memory_space<vmem>>, %arg8: memref<512x2048xi8, #tpu.memory_space<any>>, %arg9: memref<1x2048xf32, #tpu.memory_space<vmem>>, %arg10: memref<1x2048xf32, #tpu.memory_space<vmem>>, %arg11: memref<2048x32xi8, #tpu.memory_space<vmem>>, %arg12: memref<1x32xf32, #tpu.memory_space<vmem>>, %arg13: memref<1x32xf32, #tpu.memory_space<vmem>>, %arg14: memref<16x32xf32, #tpu.memory_space<vmem>>, %arg15: memref<512x2048xi8, #tpu.memory_space<vmem>>, %arg16: memref<!tpu.dma_semaphore, #tpu.memory_space<semaphore_mem>>) attributes {dimension_semantics = [#tpu.dimension_semantics<parallel>], iteration_bounds = array<i64: 1>, scalar_prefetch = 0 : i64, scratch_operands = 2 : i64, tpu.core_type = #tpu.core_type<tc>, window_params = [{transform_indices = @transform_0, window_bounds = array<i64: 16, 32>}, {pipeline_mode = #tpu.pipeline_mode<synchronous>, transform_indices = @transform_1, window_bounds = array<i64: 32, 512>}, {pipeline_mode = #tpu.pipeline_mode<synchronous>, transform_indices = @transform_2, window_bounds = array<i64: 1, 512>}, {pipeline_mode = #tpu.pipeline_mode<synchronous>, transform_indices = @transform_3, window_bounds = array<i64: 1, 512>}, {pipeline_mode = #tpu.pipeline_mode<synchronous>, transform_indices = @transform_4, window_bounds = array<i64: 512, 512>}, {pipeline_mode = #tpu.pipeline_mode<synchronous>, transform_indices = @transform_5, window_bounds = array<i64: 1, 512>}, {pipeline_mode = #tpu.pipeline_mode<synchronous>, transform_indices = @transform_6, window_bounds = array<i64: 1, 512>}, {}, {pipeline_mode = #tpu.pipeline_mode<synchronous>, transform_indices = @transform_8, window_bounds = array<i64: 1, 2048>}, {pipeline_mode = #tpu.pipeline_mode<synchronous>, transform_indices = @transform_9, window_bounds = array<i64: 1, 2048>}, {pipeline_mode = #tpu.pipeline_mode<synchronous>, transform_indices = @transform_10, window_bounds = array<i64: 2048, 32>}, {pipeline_mode = #tpu.pipeline_mode<synchronous>, transform_indices = @transform_11, window_bounds = array<i64: 1, 32>}, {pipeline_mode = #tpu.pipeline_mode<synchronous>, transform_indices = @transform_12, window_bounds = array<i64: 1, 32>}, {transform_indices = @transform_13, window_bounds = array<i64: 16, 32>}]} {
    tpu.enqueue_dma source(%arg8 : memref<512x2048xi8, #tpu.memory_space<any>>) target(%arg15 : memref<512x2048xi8, #tpu.memory_space<vmem>>) target_semaphore(%arg16 : memref<!tpu.dma_semaphore, #tpu.memory_space<semaphore_mem>>)
    %c0 = arith.constant 0 : index
    %c0_0 = arith.constant 0 : index
    %0 = vector.load %arg1[%c0, %c0_0] : memref<16x32xbf16, #tpu.memory_space<vmem>>, vector<16x32xbf16>
    %c0_1 = arith.constant 0 : index
    %c0_2 = arith.constant 0 : index
    %1 = vector.load %arg2[%c0_1, %c0_2] : memref<32x512xi8, #tpu.memory_space<vmem>>, vector<32x512xi8>
    %c0_3 = arith.constant 0 : index
    %c0_4 = arith.constant 0 : index
    %2 = vector.load %arg3[%c0_3, %c0_4] : memref<1x512xf32, #tpu.memory_space<vmem>>, vector<1x512xf32>
    %c0_5 = arith.constant 0 : index
    %c0_6 = arith.constant 0 : index
    %3 = vector.load %arg4[%c0_5, %c0_6] : memref<1x512xf32, #tpu.memory_space<vmem>>, vector<1x512xf32>
    %4 = arith.sitofp %1 : vector<32x512xi8> to vector<32x512xf32>
    %5 = arith.truncf %4 : vector<32x512xf32> to vector<32x512xbf16>
    %cst = arith.constant dense<0.000000e+00> : vector<16x512xf32>
    %6 = tpu.matmul %0, %5, %cst {dimension_numbers = #tpu.dot_dimension_numbers<[1], [0], [0], [1], [0, 0, 1, 1], [], []>} : vector<16x32xbf16>, vector<32x512xbf16>, vector<16x512xf32> -> vector<16x512xf32>
    %7 = vector.broadcast %2 : vector<1x512xf32> to vector<16x512xf32>
    %8 = arith.mulf %6, %7 : vector<16x512xf32>
    %9 = vector.broadcast %3 : vector<1x512xf32> to vector<16x512xf32>
    %10 = arith.addf %8, %9 : vector<16x512xf32>
    %cst_7 = arith.constant 0.000000e+00 : f32
    %11 = vector.broadcast %cst_7 : f32 to vector<16x512xf32>
    %12 = arith.maximumf %10, %11 : vector<16x512xf32>
    %13 = arith.truncf %12 : vector<16x512xf32> to vector<16x512xbf16>
    %c0_8 = arith.constant 0 : index
    %c0_9 = arith.constant 0 : index
    %14 = vector.load %arg5[%c0_8, %c0_9] : memref<512x512xi8, #tpu.memory_space<vmem>>, vector<512x512xi8>
    %c0_10 = arith.constant 0 : index
    %c0_11 = arith.constant 0 : index
    %15 = vector.load %arg6[%c0_10, %c0_11] : memref<1x512xf32, #tpu.memory_space<vmem>>, vector<1x512xf32>
    %c0_12 = arith.constant 0 : index
    %c0_13 = arith.constant 0 : index
    %16 = vector.load %arg7[%c0_12, %c0_13] : memref<1x512xf32, #tpu.memory_space<vmem>>, vector<1x512xf32>
    %17 = arith.sitofp %14 : vector<512x512xi8> to vector<512x512xf32>
    %18 = arith.truncf %17 : vector<512x512xf32> to vector<512x512xbf16>
    %cst_14 = arith.constant dense<0.000000e+00> : vector<16x512xf32>
    %19 = tpu.matmul %13, %18, %cst_14 {dimension_numbers = #tpu.dot_dimension_numbers<[1], [0], [0], [1], [0, 0, 1, 1], [], []>} : vector<16x512xbf16>, vector<512x512xbf16>, vector<16x512xf32> -> vector<16x512xf32>
    %20 = vector.broadcast %15 : vector<1x512xf32> to vector<16x512xf32>
    %21 = arith.mulf %19, %20 : vector<16x512xf32>
    %22 = vector.broadcast %16 : vector<1x512xf32> to vector<16x512xf32>
    %23 = arith.addf %21, %22 : vector<16x512xf32>
    %cst_15 = arith.constant 0.000000e+00 : f32
    %24 = vector.broadcast %cst_15 : f32 to vector<16x512xf32>
    %25 = arith.maximumf %23, %24 : vector<16x512xf32>
    %26 = arith.truncf %25 : vector<16x512xf32> to vector<16x512xbf16>
    tpu.wait_dma2 semaphore(%arg16 : memref<!tpu.dma_semaphore, #tpu.memory_space<semaphore_mem>>) src(%arg8 : memref<512x2048xi8, #tpu.memory_space<any>>) dst(%arg15 : memref<512x2048xi8, #tpu.memory_space<vmem>>)
    %c0_16 = arith.constant 0 : index
    %c0_17 = arith.constant 0 : index
    %27 = vector.load %arg15[%c0_16, %c0_17] : memref<512x2048xi8, #tpu.memory_space<vmem>>, vector<512x2048xi8>
    %c0_18 = arith.constant 0 : index
    %c0_19 = arith.constant 0 : index
    %28 = vector.load %arg9[%c0_18, %c0_19] : memref<1x2048xf32, #tpu.memory_space<vmem>>, vector<1x2048xf32>
    %c0_20 = arith.constant 0 : index
    %c0_21 = arith.constant 0 : index
    %29 = vector.load %arg10[%c0_20, %c0_21] : memref<1x2048xf32, #tpu.memory_space<vmem>>, vector<1x2048xf32>
    %30 = arith.sitofp %27 : vector<512x2048xi8> to vector<512x2048xf32>
    %31 = arith.truncf %30 : vector<512x2048xf32> to vector<512x2048xbf16>
    %cst_22 = arith.constant dense<0.000000e+00> : vector<16x2048xf32>
    %32 = tpu.matmul %26, %31, %cst_22 {dimension_numbers = #tpu.dot_dimension_numbers<[1], [0], [0], [1], [0, 0, 1, 1], [], []>} : vector<16x512xbf16>, vector<512x2048xbf16>, vector<16x2048xf32> -> vector<16x2048xf32>
    %33 = vector.broadcast %28 : vector<1x2048xf32> to vector<16x2048xf32>
    %34 = arith.mulf %32, %33 : vector<16x2048xf32>
    %35 = vector.broadcast %29 : vector<1x2048xf32> to vector<16x2048xf32>
    %36 = arith.addf %34, %35 : vector<16x2048xf32>
    %cst_23 = arith.constant 0.000000e+00 : f32
    %37 = vector.broadcast %cst_23 : f32 to vector<16x2048xf32>
    %38 = arith.maximumf %36, %37 : vector<16x2048xf32>
    %39 = arith.truncf %38 : vector<16x2048xf32> to vector<16x2048xbf16>
    %c0_24 = arith.constant 0 : index
    %c0_25 = arith.constant 0 : index
    %40 = vector.load %arg11[%c0_24, %c0_25] : memref<2048x32xi8, #tpu.memory_space<vmem>>, vector<2048x32xi8>
    %c0_26 = arith.constant 0 : index
    %c0_27 = arith.constant 0 : index
    %41 = vector.load %arg12[%c0_26, %c0_27] : memref<1x32xf32, #tpu.memory_space<vmem>>, vector<1x32xf32>
    %c0_28 = arith.constant 0 : index
    %c0_29 = arith.constant 0 : index
    %42 = vector.load %arg13[%c0_28, %c0_29] : memref<1x32xf32, #tpu.memory_space<vmem>>, vector<1x32xf32>
    %43 = arith.sitofp %40 : vector<2048x32xi8> to vector<2048x32xf32>
    %44 = arith.truncf %43 : vector<2048x32xf32> to vector<2048x32xbf16>
    %cst_30 = arith.constant dense<0.000000e+00> : vector<16x32xf32>
    %45 = tpu.matmul %39, %44, %cst_30 {dimension_numbers = #tpu.dot_dimension_numbers<[1], [0], [0], [1], [0, 0, 1, 1], [], []>} : vector<16x2048xbf16>, vector<2048x32xbf16>, vector<16x32xf32> -> vector<16x32xf32>
    %46 = vector.broadcast %41 : vector<1x32xf32> to vector<16x32xf32>
    %47 = arith.mulf %45, %46 : vector<16x32xf32>
    %48 = vector.broadcast %42 : vector<1x32xf32> to vector<16x32xf32>
    %49 = arith.addf %47, %48 : vector<16x32xf32>
    %c0_31 = arith.constant 0 : index
    %c0_32 = arith.constant 0 : index
    %50 = vector.load %arg14[%c0_31, %c0_32] : memref<16x32xf32, #tpu.memory_space<vmem>>, vector<16x32xf32>
    tpu.vector_store %arg14[%c0_31, %c0_32], %49 {strides = array<i32>} : memref<16x32xf32, #tpu.memory_space<vmem>>, vector<16x32xf32>,
    return
  }
  func.func @transform_0(%arg0: i32) -> (i32, i32) {
    %c0_i32 = arith.constant 0 : i32
    %c0_i32_0 = arith.constant 0 : i32
    return %arg0, %c0_i32 : i32, i32
  }
  func.func @transform_1(%arg0: i32) -> (i32, i32) {
    %c0_i32 = arith.constant 0 : i32
    %c0_i32_0 = arith.constant 0 : i32
    %c0_i32_1 = arith.constant 0 : i32
    return %c0_i32, %c0_i32_0 : i32, i32
  }
  func.func @transform_2(%arg0: i32) -> (i32, i32) {
    %c0_i32 = arith.constant 0 : i32
    %c0_i32_0 = arith.constant 0 : i32
    %c0_i32_1 = arith.constant 0 : i32
    return %c0_i32, %c0_i32_0 : i32, i32
  }
  func.func @transform_3(%arg0: i32) -> (i32, i32) {
    %c0_i32 = arith.constant 0 : i32
    %c0_i32_0 = arith.constant 0 : i32
    %c0_i32_1 = arith.constant 0 : i32
    return %c0_i32, %c0_i32_0 : i32, i32
  }
  func.func @transform_4(%arg0: i32) -> (i32, i32) {
    %c0_i32 = arith.constant 0 : i32
    %c0_i32_0 = arith.constant 0 : i32
    %c0_i32_1 = arith.constant 0 : i32
    return %c0_i32, %c0_i32_0 : i32, i32
  }
  func.func @transform_5(%arg0: i32) -> (i32, i32) {
    %c0_i32 = arith.constant 0 : i32
    %c0_i32_0 = arith.constant 0 : i32
    %c0_i32_1 = arith.constant 0 : i32
    return %c0_i32, %c0_i32_0 : i32, i32
  }
  func.func @transform_6(%arg0: i32) -> (i32, i32) {
    %c0_i32 = arith.constant 0 : i32
    %c0_i32_0 = arith.constant 0 : i32
    %c0_i32_1 = arith.constant 0 : i32
    return %c0_i32, %c0_i32_0 : i32, i32
  }
  func.func @transform_8(%arg0: i32) -> (i32, i32) {
    %c0_i32 = arith.constant 0 : i32
    %c0_i32_0 = arith.constant 0 : i32
    %c0_i32_1 = arith.constant 0 : i32
    return %c0_i32, %c0_i32_0 : i32, i32
  }
  func.func @transform_9(%arg0: i32) -> (i32, i32) {
    %c0_i32 = arith.constant 0 : i32
    %c0_i32_0 = arith.constant 0 : i32
    %c0_i32_1 = arith.constant 0 : i32
    return %c0_i32, %c0_i32_0 : i32, i32
  }
  func.func @transform_10(%arg0: i32) -> (i32, i32) {
    %c0_i32 = arith.constant 0 : i32
    %c0_i32_0 = arith.constant 0 : i32
    %c0_i32_1 = arith.constant 0 : i32
    return %c0_i32, %c0_i32_0 : i32, i32
  }
  func.func @transform_11(%arg0: i32) -> (i32, i32) {
    %c0_i32 = arith.constant 0 : i32
    %c0_i32_0 = arith.constant 0 : i32
    %c0_i32_1 = arith.constant 0 : i32
    return %c0_i32, %c0_i32_0 : i32, i32
  }
  func.func @transform_12(%arg0: i32) -> (i32, i32) {
    %c0_i32 = arith.constant 0 : i32
    %c0_i32_0 = arith.constant 0 : i32
    %c0_i32_1 = arith.constant 0 : i32
    return %c0_i32, %c0_i32_0 : i32, i32
  }
  func.func @transform_13(%arg0: i32) -> (i32, i32) {
    %c0_i32 = arith.constant 0 : i32
    %c0_i32_0 = arith.constant 0 : i32
    return %arg0, %c0_i32 : i32, i32
  }
}

</mosaic_0001>

<llo_original>
// kernel: tpu_custom_call.1
$region0: #{tpu_custom_call.1}
  #allocation0 [shape = 'u32[]', space=smem, size = 0x4, offset = 0x4, fixed_abs, tag = 'smem constant byte address 0x4 - core index']
  #allocation1 [shape = 'u32[144,128]{1,0:T(1,128)}', space=vmem, size = 0x12000, scoped, tag = 'internal scratch']
  #allocation2 [shape = 's8[512,2048]{1,0:T(32,128)(4,1)}', space=vmem, size = 0x100000, scoped, tag = 'scratch operand']
  #allocation3 [shape = 's32[1]{0}', space=sflag, size = 0x4, scoped, tag = 'scratch operand']
  #allocation6 [shape = 's32[]', space=sflag, size = 0x4, offset = 0, fixed_abs, tag = 'sflag constant byte address 0x0 - dummy sync flag']
  #allocation7 [shape = 's32[]', space=sflag, size = 0x4, offset = 0, fixed_abs, tag = 'sflag constant byte address 0x0 - dummy sync flag']
  #allocation8 [shape = 'u32[]', space=smem, size = 0x4, offset = 0x44, fixed_abs, tag = 'smem constant byte address 0x44 - assertion arg 0']
  #allocation9 [shape = 'u32[]', space=smem, size = 0x4, offset = 0x48, fixed_abs, tag = 'smem constant byte address 0x48 - assertion arg 1']
  %s0 = inlined_call_operand.vmem [shape: bf16[16,32], index: 0, kind: input, shape index: {}]
  %s1 = inlined_call_operand.vmem [shape: s8[32,512], index: 1, kind: input, shape index: {}]
  %s2 = inlined_call_operand.vmem [shape: f32[1,512], index: 2, kind: input, shape index: {}]
  %s3 = inlined_call_operand.vmem [shape: f32[1,512], index: 3, kind: input, shape index: {}]
  %s4 = inlined_call_operand.vmem [shape: s8[512,512], index: 4, kind: input, shape index: {}]
  %s5 = inlined_call_operand.vmem [shape: f32[1,512], index: 5, kind: input, shape index: {}]
  %s6 = inlined_call_operand.vmem [shape: f32[1,512], index: 6, kind: input, shape index: {}]
  %s7 = inlined_call_operand.hbm [shape: s8[512,2048], index: 7, kind: input, shape index: {}]
  %s8 = inlined_call_operand.vmem [shape: f32[1,2048], index: 8, kind: input, shape index: {}]
  %s9 = inlined_call_operand.vmem [shape: f32[1,2048], index: 9, kind: input, shape index: {}]
  %s10 = inlined_call_operand.vmem [shape: s8[2048,32], index: 10, kind: input, shape index: {}]
  %s11 = inlined_call_operand.vmem [shape: f32[1,32], index: 11, kind: input, shape index: {}]
  %s12 = inlined_call_operand.vmem [shape: f32[1,32], index: 12, kind: input, shape index: {}]
  %s13 = inlined_call_operand.hbm [shape: f32[16,32], index: 13, kind: output, shape index: {}]
  %s14 = sld [smem:[#allocation0]]
  $region62: #{tpu_custom_call.1} parent=0
    _
  %s16 = ssub.s32 1, %s14
  %s17 = scalar_select 0, %s16, %s14
  $region1: #{tpu_custom_call.1} parent=0
    #allocation4 [shape = 'u8[8192]{0}', space=vmem, size = 0x2000, scoped, tag = 'output window, operand 0, single buffered']
    #allocation5 [shape = 's32[1]{0}', space=sflag, size = 0x4, scoped, tag = 'scoped memory for tpu_custom_call.1']
    %18 = vsyncpa [#allocation5], 0
    // Predicated region
    $region2: #{tpu_custom_call.1} parent=1 // pred_check
      _
    $region3: #{tpu_custom_call.1} parent=1 // pred_check_branch
      %20 = sbr.rel (0) target = $region5
    $region4: #{tpu_custom_call.1} parent=1 // pred_region
      _
    $region5: #{tpu_custom_call.1} parent=1 // pred_fallthru
      _
    // Predicated region
    $region6: #{tpu_custom_call.1} parent=1 // pred_check
      _
    $region7: #{tpu_custom_call.1} parent=1 // pred_check_branch
      %22 = sbr.rel (0) target = $region9
    $region8: #{tpu_custom_call.1} parent=1 // pred_region
      _
    $region9: #{tpu_custom_call.1} parent=1 // pred_fallthru
      _
    // Predicated region
    $region10: #{tpu_custom_call.1} parent=1 // pred_check
      _
    $region11: #{tpu_custom_call.1} parent=1 // pred_check_branch
      %24 = sbr.rel (0) target = $region13
    $region12: #{tpu_custom_call.1} parent=1 // pred_region
      _
    $region13: #{tpu_custom_call.1} parent=1 // pred_fallthru
      _
    // Predicated region
    $region14: #{tpu_custom_call.1} parent=1 // pred_check
      _
    $region15: #{tpu_custom_call.1} parent=1 // pred_check_branch
      %26 = sbr.rel (0) target = $region17
    $region16: #{tpu_custom_call.1} parent=1 // pred_region
      _
    $region17: #{tpu_custom_call.1} parent=1 // pred_fallthru
      _
    // Predicated region
    $region18: #{tpu_custom_call.1} parent=1 // pred_check
      _
    $region19: #{tpu_custom_call.1} parent=1 // pred_check_branch
      %28 = sbr.rel (0) target = $region21
    $region20: #{tpu_custom_call.1} parent=1 // pred_region
      _
    $region21: #{tpu_custom_call.1} parent=1 // pred_fallthru
      _
    // Predicated region
    $region22: #{tpu_custom_call.1} parent=1 // pred_check
      _
    $region23: #{tpu_custom_call.1} parent=1 // pred_check_branch
      %30 = sbr.rel (0) target = $region25
    $region24: #{tpu_custom_call.1} parent=1 // pred_region
      _
    $region25: #{tpu_custom_call.1} parent=1 // pred_fallthru
      _
    // Predicated region
    $region26: #{tpu_custom_call.1} parent=1 // pred_check
      _
    $region27: #{tpu_custom_call.1} parent=1 // pred_check_branch
      %32 = sbr.rel (0) target = $region29
    $region28: #{tpu_custom_call.1} parent=1 // pred_region
      _
    $region29: #{tpu_custom_call.1} parent=1 // pred_fallthru
      _
    // Predicated region
    $region30: #{tpu_custom_call.1} parent=1 // pred_check
      _
    $region31: #{tpu_custom_call.1} parent=1 // pred_check_branch
      %34 = sbr.rel (0) target = $region33
    $region32: #{tpu_custom_call.1} parent=1 // pred_region
      _
    $region33: #{tpu_custom_call.1} parent=1 // pred_fallthru
      _
    // Predicated region
    $region34: #{tpu_custom_call.1} parent=1 // pred_check
      _
    $region35: #{tpu_custom_call.1} parent=1 // pred_check_branch
      %36 = sbr.rel (0) target = $region37
    $region36: #{tpu_custom_call.1} parent=1 // pred_region
      _
    $region37: #{tpu_custom_call.1} parent=1 // pred_fallthru
      _
    // Predicated region
    $region38: #{tpu_custom_call.1} parent=1 // pred_check
      _
    $region39: #{tpu_custom_call.1} parent=1 // pred_check_branch
      %38 = sbr.rel (0) target = $region41
    $region40: #{tpu_custom_call.1} parent=1 // pred_region
      _
    $region41: #{tpu_custom_call.1} parent=1 // pred_fallthru
      _
    // Predicated region
    $region42: #{tpu_custom_call.1} parent=1 // pred_check
      _
    $region43: #{tpu_custom_call.1} parent=1 // pred_check_branch
      %40 = sbr.rel (0) target = $region45
    $region44: #{tpu_custom_call.1} parent=1 // pred_region
      _
    $region45: #{tpu_custom_call.1} parent=1 // pred_fallthru
      _
    // Predicated region
    $region46: #{tpu_custom_call.1} parent=1 // pred_check
      _
    $region47: #{tpu_custom_call.1} parent=1 // pred_check_branch
      %42 = sbr.rel (0) target = $region49
    $region48: #{tpu_custom_call.1} parent=1 // pred_region
      _
    $region49: #{tpu_custom_call.1} parent=1 // pred_fallthru
      _
    // Predicated region
    $region50: #{tpu_custom_call.1} parent=1 // pred_check
      _
    $region51: #{tpu_custom_call.1} parent=1 // pred_check_branch
      %45 = sbr.rel target = $region53
    $region52: #{tpu_custom_call.1} parent=1 // pred_region
      %46 = sst [smem:[#allocation8]] [#allocation7]
      %47 = sst [smem:[#allocation9]] [#allocation6]
    $region53: #{tpu_custom_call.1} parent=1 // pred_fallthru
      _
    %49 = shalt.err (0)
    %s51 = sshll.u32 [#allocation2], 4
    %s52 = int_to_ptr.vmem [resolvable:$true] %s51
    %54 = dma.hbm_to_vmem [thread:$0]  %s7, 32768, %s52, [#allocation3]
    %v55 = vld [vmem:[%s0] sm:$0xf]
    %v56 = vld [vmem:[%s0 + $0x4] sm:$0xf]
    %v57 = vld [vmem:[%s1] sm:$0xff]
    %v58 = vld [vmem:[%s1 + $0x8] sm:$0xff]
    %v59 = vld [vmem:[%s1 + $0x10] sm:$0xff]
    %v60 = vld [vmem:[%s1 + $0x18] sm:$0xff]
    %v61 = vld [vmem:[%s2] sm:$0xf]
    %v62 = vld [vmem:[%s3] sm:$0xf]
    %v63 = vunpack.c.l.s8.bf16 %v57
    %v64 = vunpack.c.l.s8.bf16 %v58
    %v65 = vunpack.c.l.s8.bf16 %v59
    %v66 = vunpack.c.l.s8.bf16 %v60
    %v67 = vunpack.c.h.s8.bf16 %v57
    %v68 = vunpack.c.h.s8.bf16 %v58
    %v69 = vunpack.c.h.s8.bf16 %v59
    %v70 = vunpack.c.h.s8.bf16 %v60
    %v73 = vunpack.c.l.b16 %v55
    %v74 = vunpack.c.l.b16 %v56
    %v75 = vpack.c.b16 %v74, %v73
    %vm76 = vcmask 261120
    %v78 = vsel %vm76, %v75, 0
    %80 = vmatprep.subr.bf16.mxu0 0
    %81 = vmatpush1.bf16.msra.mxu0 0
    %82 = vmatprep.subr.bf16.mxu0 0
    %83 = vmatpush1.bf16.msra.mxu0 0
    %84 = vmatprep.subr.bf16.mxu0 0
    %85 = vmatpush1.bf16.msra.mxu0 0
    %86 = vmatprep.subr.bf16.mxu0 0
    %87 = vmatpush1.bf16.msra.mxu0 0
    %88 = vmatprep.subr.bf16.mxu0 0
    %89 = vmatpush1.bf16.msra.mxu0 0
    %90 = vmatprep.subr.bf16.mxu0 0
    %91 = vmatpush1.bf16.msra.mxu0 0
    %92 = vmatprep.subr.bf16.mxu0 %v68
    %93 = vmatpush1.bf16.msra.mxu0 %v67
    %94 = vmatprep.subr.bf16.mxu0 %v64
    %95 = vmatpush1.bf16.msra.mxu0 %v63
    %96 = vmatprep.subr.bf16.mxu0 0
    %97 = vmatpush2.bf16.msra.mxu0 0
    %98 = vmatprep.subr.bf16.mxu0 0
    %99 = vmatpush2.bf16.msra.mxu0 0
    %100 = vmatprep.subr.bf16.mxu0 0
    %101 = vmatpush2.bf16.msra.mxu0 0
    %102 = vmatprep.subr.bf16.mxu0 0
    %103 = vmatpush2.bf16.msra.mxu0 0
    %104 = vmatprep.subr.bf16.mxu0 0
    %105 = vmatpush2.bf16.msra.mxu0 0
    %106 = vmatprep.subr.bf16.mxu0 0
    %107 = vmatpush2.bf16.msra.mxu0 0
    %108 = vmatprep.subr.bf16.mxu0 0
    %109 = vmatpush2.bf16.msra.mxu0 0
    %110 = vmatprep.subr.bf16.mxu0 0
    %111 = vmatpush2.bf16.msra.mxu0 0
    %112 = vmatprep.mubr.bf16.mxu0 0
    %113 = vmatmul.mubr.bf16.gmra.mxu0 %v78
    %v114 = vpop.f32.mrf.mxu0
    %v115 = vadd.f32 0.0, %v114
    %v116 = vpop.f32.mrf.mxu0
    %v117 = vadd.f32 0.0, %v116
    %v118 = vpop.f32.mrf.mxu0
    %v119 = vadd.f32 0.0, %v118
    %v120 = vpop.f32.mrf.mxu0
    %v121 = vadd.f32 0.0, %v120
    %122 = vdwg.mxu0
    %123 = vmatprep.subr.bf16.mxu0 0
    %124 = vmatpush1.bf16.msra.mxu0 0
    %125 = vmatprep.subr.bf16.mxu0 0
    %126 = vmatpush1.bf16.msra.mxu0 0
    %127 = vmatprep.subr.bf16.mxu0 0
    %128 = vmatpush1.bf16.msra.mxu0 0
    %129 = vmatprep.subr.bf16.mxu0 0
    %130 = vmatpush1.bf16.msra.mxu0 0
    %131 = vmatprep.subr.bf16.mxu0 0
    %132 = vmatpush1.bf16.msra.mxu0 0
    %133 = vmatprep.subr.bf16.mxu0 0
    %134 = vmatpush1.bf16.msra.mxu0 0
    %135 = vmatprep.subr.bf16.mxu0 %v70
    %136 = vmatpush1.bf16.msra.mxu0 %v69
    %137 = vmatprep.subr.bf16.mxu0 %v66
    %138 = vmatpush1.bf16.msra.mxu0 %v65
    %139 = vmatprep.subr.bf16.mxu0 0
    %140 = vmatpush2.bf16.msra.mxu0 0
    %141 = vmatprep.subr.bf16.mxu0 0
    %142 = vmatpush2.bf16.msra.mxu0 0
    %143 = vmatprep.subr.bf16.mxu0 0
    %144 = vmatpush2.bf16.msra.mxu0 0
    %145 = vmatprep.subr.bf16.mxu0 0
    %146 = vmatpush2.bf16.msra.mxu0 0
    %147 = vmatprep.subr.bf16.mxu0 0
    %148 = vmatpush2.bf16.msra.mxu0 0
    %149 = vmatprep.subr.bf16.mxu0 0
    %150 = vmatpush2.bf16.msra.mxu0 0
    %151 = vmatprep.subr.bf16.mxu0 0
    %152 = vmatpush2.bf16.msra.mxu0 0
    %153 = vmatprep.subr.bf16.mxu0 0
    %154 = vmatpush2.bf16.msra.mxu0 0
    %155 = vmatprep.mubr.bf16.mxu0 0
    %156 = vmatmul.mubr.bf16.gmra.mxu0 %v78
    %v157 = vpop.f32.mrf.mxu0
    %v158 = vadd.f32 0.0, %v157
    %v159 = vpop.f32.mrf.mxu0
    %v160 = vadd.f32 0.0, %v159
    %v161 = vpop.f32.mrf.mxu0
    %v162 = vadd.f32 0.0, %v161
    %v163 = vpop.f32.mrf.mxu0
    %v164 = vadd.f32 0.0, %v163
    %165 = vdwg.mxu0
    %v167 = vlaneseq
    %v168 = vshrl.u32 %v167, 7
    %v169 = vsub.s32 0, %v168
    %v170 = vrot.slane %v61, %v169
    %v171 = vlaneseq
    %v172 = vshrl.u32 %v171, 7
    %v173 = vsub.s32 1, %v172
    %v174 = vrot.slane %v61, %v173
    %v175 = vlaneseq
    %v176 = vshrl.u32 %v175, 7
    %v177 = vsub.s32 2, %v176
    %v178 = vrot.slane %v61, %v177
    %v179 = vlaneseq
    %v180 = vshrl.u32 %v179, 7
    %v181 = vsub.s32 3, %v180
    %v182 = vrot.slane %v61, %v181
    %v187 = vmul.f32 %v115, %v170
    %v188 = vmul.f32 %v117, %v174
    %v189 = vmul.f32 %v158, %v178
    %v190 = vmul.f32 %v160, %v182
    %v191 = vmul.f32 %v119, %v170
    %v192 = vmul.f32 %v121, %v174
    %v193 = vmul.f32 %v162, %v178
    %v194 = vmul.f32 %v164, %v182
    %v196 = vlaneseq
    %v197 = vshrl.u32 %v196, 7
    %v198 = vsub.s32 0, %v197
    %v199 = vrot.slane %v62, %v198
    %v200 = vlaneseq
    %v201 = vshrl.u32 %v200, 7
    %v202 = vsub.s32 1, %v201
    %v203 = vrot.slane %v62, %v202
    %v204 = vlaneseq
    %v205 = vshrl.u32 %v204, 7
    %v206 = vsub.s32 2, %v205
    %v207 = vrot.slane %v62, %v206
    %v208 = vlaneseq
    %v209 = vshrl.u32 %v208, 7
    %v210 = vsub.s32 3, %v209
    %v211 = vrot.slane %v62, %v210
    %v216 = vadd.f32 %v187, %v199
    %v217 = vadd.f32 %v188, %v203
    %v218 = vadd.f32 %v189, %v207
    %v219 = vadd.f32 %v190, %v211
    %v220 = vadd.f32 %v191, %v199
    %v221 = vadd.f32 %v192, %v203
    %v222 = vadd.f32 %v193, %v207
    %v223 = vadd.f32 %v194, %v211
    %v224 = vmax.f32 %v216, 0.0
    %v225 = vmax.f32 %v217, 0.0
    %v226 = vmax.f32 %v218, 0.0
    %v227 = vmax.f32 %v219, 0.0
    %v228 = vmax.f32 %v220, 0.0
    %v229 = vmax.f32 %v221, 0.0
    %v230 = vmax.f32 %v222, 0.0
    %v231 = vmax.f32 %v223, 0.0
    %v232 = vpack.c.bf16 %v228, %v224
    %v233 = vpack.c.bf16 %v229, %v225
    %v234 = vpack.c.bf16 %v230, %v226
    %v235 = vpack.c.bf16 %v231, %v227
    %v236 = vld [vmem:[%s4] sm:$0xff]
    %v237 = vld [vmem:[%s4 + $0x8] sm:$0xff]
    %v238 = vld [vmem:[%s4 + $0x10] sm:$0xff]
    %v239 = vld [vmem:[%s4 + $0x18] sm:$0xff]
    %v240 = vld [vmem:[%s4 + $0x20] sm:$0xff]
    %v241 = vld [vmem:[%s4 + $0x28] sm:$0xff]
    %v242 = vld [vmem:[%s4 + $0x30] sm:$0xff]
    %v243 = vld [vmem:[%s4 + $0x38] sm:$0xff]
    %v244 = vld [vmem:[%s4 + $0x40] sm:$0xff]
    %v245 = vld [vmem:[%s4 + $0x48] sm:$0xff]
    %v246 = vld [vmem:[%s4 + $0x50] sm:$0xff]
    %v247 = vld [vmem:[%s4 + $0x58] sm:$0xff]
    %v248 = vld [vmem:[%s4 + $0x60] sm:$0xff]
    %v249 = vld [vmem:[%s4 + $0x68] sm:$0xff]
    %v250 = vld [vmem:[%s4 + $0x70] sm:$0xff]
    %v251 = vld [vmem:[%s4 + $0x78] sm:$0xff]
    %v252 = vld [vmem:[%s4 + $0x80] sm:$0xff]
    %v253 = vld [vmem:[%s4 + $0x88] sm:$0xff]
    %v254 = vld [vmem:[%s4 + $0x90] sm:$0xff]
    %v255 = vld [vmem:[%s4 + $0x98] sm:$0xff]
    %v256 = vld [vmem:[%s4 + $0xa0] sm:$0xff]
    %v257 = vld [vmem:[%s4 + $0xa8] sm:$0xff]
    %v258 = vld [vmem:[%s4 + $0xb0] sm:$0xff]
    %v259 = vld [vmem:[%s4 + $0xb8] sm:$0xff]
    %v260 = vld [vmem:[%s4 + $0xc0] sm:$0xff]
    %v261 = vld [vmem:[%s4 + $0xc8] sm:$0xff]
    %v262 = vld [vmem:[%s4 + $0xd0] sm:$0xff]
    %v263 = vld [vmem:[%s4 + $0xd8] sm:$0xff]
    %v264 = vld [vmem:[%s4 + $0xe0] sm:$0xff]
    %v265 = vld [vmem:[%s4 + $0xe8] sm:$0xff]
    %v266 = vld [vmem:[%s4 + $0xf0] sm:$0xff]
    %v267 = vld [vmem:[%s4 + $0xf8] sm:$0xff]
    %v268 = vld [vmem:[%s4 + $0x100] sm:$0xff]
    %v269 = vld [vmem:[%s4 + $0x108] sm:$0xff]
    %v270 = vld [vmem:[%s4 + $0x110] sm:$0xff]
    %v271 = vld [vmem:[%s4 + $0x118] sm:$0xff]
    %v272 = vld [vmem:[%s4 + $0x120] sm:$0xff]
    %v273 = vld [vmem:[%s4 + $0x128] sm:$0xff]
    %v274 = vld [vmem:[%s4 + $0x130] sm:$0xff]
    %v275 = vld [vmem:[%s4 + $0x138] sm:$0xff]
    %v276 = vld [vmem:[%s4 + $0x140] sm:$0xff]
    %v277 = vld [vmem:[%s4 + $0x148] sm:$0xff]
    %v278 = vld [vmem:[%s4 + $0x150] sm:$0xff]
    %v279 = vld [vmem:[%s4 + $0x158] sm:$0xff]
    %v280 = vld [vmem:[%s4 + $0x160] sm:$0xff]
    %v281 = vld [vmem:[%s4 + $0x168] sm:$0xff]
    %v282 = vld [vmem:[%s4 + $0x170] sm:$0xff]
    %v283 = vld [vmem:[%s4 + $0x178] sm:$0xff]
    %v284 = vld [vmem:[%s4 + $0x180] sm:$0xff]
    %v285 = vld [vmem:[%s4 + $0x188] sm:$0xff]
    %v286 = vld [vmem:[%s4 + $0x190] sm:$0xff]
    %v287 = vld [vmem:[%s4 + $0x198] sm:$0xff]
    %v288 = vld [vmem:[%s4 + $0x1a0] sm:$0xff]
    %v289 = vld [vmem:[%s4 + $0x1a8] sm:$0xff]
    %v290 = vld [vmem:[%s4 + $0x1b0] sm:$0xff]
    %v291 = vld [vmem:[%s4 + $0x1b8] sm:$0xff]
    %v292 = vld [vmem:[%s4 + $0x1c0] sm:$0xff]
    %v293 = vld [vmem:[%s4 + $0x1c8] sm:$0xff]
    %v294 = vld [vmem:[%s4 + $0x1d0] sm:$0xff]
    %v295 = vld [vmem:[%s4 + $0x1d8] sm:$0xff]
    %v296 = vld [vmem:[%s4 + $0x1e0] sm:$0xff]
    %v297 = vld [vmem:[%s4 + $0x1e8] sm:$0xff]
    %v298 = vld [vmem:[%s4 + $0x1f0] sm:$0xff]
    %v299 = vld [vmem:[%s4 + $0x1f8] sm:$0xff]
    %v300 = vld [vmem:[%s5] sm:$0xf]
    %v301 = vld [vmem:[%s6] sm:$0xf]
    %v302 = vunpack.c.l.s8.bf16 %v236
    %v303 = vunpack.c.l.s8.bf16 %v237
    %v304 = vunpack.c.l.s8.bf16 %v238
    %v305 = vunpack.c.l.s8.bf16 %v239
    %v306 = vunpack.c.h.s8.bf16 %v236
    %v307 = vunpack.c.h.s8.bf16 %v237
    %v308 = vunpack.c.h.s8.bf16 %v238
    %v309 = vunpack.c.h.s8.bf16 %v239
    %v310 = vunpack.c.l.s8.bf16 %v240
    %v311 = vunpack.c.l.s8.bf16 %v241
    %v312 = vunpack.c.l.s8.bf16 %v242
    %v313 = vunpack.c.l.s8.bf16 %v243
    %v314 = vunpack.c.h.s8.bf16 %v240
    %v315 = vunpack.c.h.s8.bf16 %v241
    %v316 = vunpack.c.h.s8.bf16 %v242
    %v317 = vunpack.c.h.s8.bf16 %v243
    %v318 = vunpack.c.l.s8.bf16 %v244
    %v319 = vunpack.c.l.s8.bf16 %v245
    %v320 = vunpack.c.l.s8.bf16 %v246
    %v321 = vunpack.c.l.s8.bf16 %v247
    %v322 = vunpack.c.h.s8.bf16 %v244
    %v323 = vunpack.c.h.s8.bf16 %v245
    %v324 = vunpack.c.h.s8.bf16 %v246
    %v325 = vunpack.c.h.s8.bf16 %v247
    %v326 = vunpack.c.l.s8.bf16 %v248
    %v327 = vunpack.c.l.s8.bf16 %v249
    %v328 = vunpack.c.l.s8.bf16 %v250
    %v329 = vunpack.c.l.s8.bf16 %v251
    %v330 = vunpack.c.h.s8.bf16 %v248
    %v331 = vunpack.c.h.s8.bf16 %v249
    %v332 = vunpack.c.h.s8.bf16 %v250
    %v333 = vunpack.c.h.s8.bf16 %v251
    %v334 = vunpack.c.l.s8.bf16 %v252
    %v335 = vunpack.c.l.s8.bf16 %v253
    %v336 = vunpack.c.l.s8.bf16 %v254
    %v337 = vunpack.c.l.s8.bf16 %v255
    %v338 = vunpack.c.h.s8.bf16 %v252
    %v339 = vunpack.c.h.s8.bf16 %v253
    %v340 = vunpack.c.h.s8.bf16 %v254
    %v341 = vunpack.c.h.s8.bf16 %v255
    %v342 = vunpack.c.l.s8.bf16 %v256
    %v343 = vunpack.c.l.s8.bf16 %v257
    %v344 = vunpack.c.l.s8.bf16 %v258
    %v345 = vunpack.c.l.s8.bf16 %v259
    %v346 = vunpack.c.h.s8.bf16 %v256
    %v347 = vunpack.c.h.s8.bf16 %v257
    %v348 = vunpack.c.h.s8.bf16 %v258
    %v349 = vunpack.c.h.s8.bf16 %v259
    %v350 = vunpack.c.l.s8.bf16 %v260
    %v351 = vunpack.c.l.s8.bf16 %v261
    %v352 = vunpack.c.l.s8.bf16 %v262
    %v353 = vunpack.c.l.s8.bf16 %v263
    %v354 = vunpack.c.h.s8.bf16 %v260
    %v355 = vunpack.c.h.s8.bf16 %v261
    %v356 = vunpack.c.h.s8.bf16 %v262
    %v357 = vunpack.c.h.s8.bf16 %v263
    %v358 = vunpack.c.l.s8.bf16 %v264
    %v359 = vunpack.c.l.s8.bf16 %v265
    %v360 = vunpack.c.l.s8.bf16 %v266
    %v361 = vunpack.c.l.s8.bf16 %v267
    %v362 = vunpack.c.h.s8.bf16 %v264
    %v363 = vunpack.c.h.s8.bf16 %v265
    %v364 = vunpack.c.h.s8.bf16 %v266
    %v365 = vunpack.c.h.s8.bf16 %v267
    %v366 = vunpack.c.l.s8.bf16 %v268
    %v367 = vunpack.c.l.s8.bf16 %v269
    %v368 = vunpack.c.l.s8.bf16 %v270
    %v369 = vunpack.c.l.s8.bf16 %v271
    %v370 = vunpack.c.h.s8.bf16 %v268
    %v371 = vunpack.c.h.s8.bf16 %v269
    %v372 = vunpack.c.h.s8.bf16 %v270
    %v373 = vunpack.c.h.s8.bf16 %v271
    %v374 = vunpack.c.l.s8.bf16 %v272
    %v375 = vunpack.c.l.s8.bf16 %v273
    %v376 = vunpack.c.l.s8.bf16 %v274
    %v377 = vunpack.c.l.s8.bf16 %v275
    %v378 = vunpack.c.h.s8.bf16 %v272
    %v379 = vunpack.c.h.s8.bf16 %v273
    %v380 = vunpack.c.h.s8.bf16 %v274
    %v381 = vunpack.c.h.s8.bf16 %v275
    %v382 = vunpack.c.l.s8.bf16 %v276
    %v383 = vunpack.c.l.s8.bf16 %v277
    %v384 = vunpack.c.l.s8.bf16 %v278
    %v385 = vunpack.c.l.s8.bf16 %v279
    %v386 = vunpack.c.h.s8.bf16 %v276
    %v387 = vunpack.c.h.s8.bf16 %v277
    %v388 = vunpack.c.h.s8.bf16 %v278
    %v389 = vunpack.c.h.s8.bf16 %v279
    %v390 = vunpack.c.l.s8.bf16 %v280
    %v391 = vunpack.c.l.s8.bf16 %v281
    %v392 = vunpack.c.l.s8.bf16 %v282
    %v393 = vunpack.c.l.s8.bf16 %v283
    %v394 = vunpack.c.h.s8.bf16 %v280
    %v395 = vunpack.c.h.s8.bf16 %v281
    %v396 = vunpack.c.h.s8.bf16 %v282
    %v397 = vunpack.c.h.s8.bf16 %v283
    %v398 = vunpack.c.l.s8.bf16 %v284
    %v399 = vunpack.c.l.s8.bf16 %v285
    %v400 = vunpack.c.l.s8.bf16 %v286
    %v401 = vunpack.c.l.s8.bf16 %v287
    %v402 = vunpack.c.h.s8.bf16 %v284
    %v403 = vunpack.c.h.s8.bf16 %v285
    %v404 = vunpack.c.h.s8.bf16 %v286
    %v405 = vunpack.c.h.s8.bf16 %v287
    %v406 = vunpack.c.l.s8.bf16 %v288
    %v407 = vunpack.c.l.s8.bf16 %v289
    %v408 = vunpack.c.l.s8.bf16 %v290
    %v409 = vunpack.c.l.s8.bf16 %v291
    %v410 = vunpack.c.h.s8.bf16 %v288
    %v411 = vunpack.c.h.s8.bf16 %v289
    %v412 = vunpack.c.h.s8.bf16 %v290
    %v413 = vunpack.c.h.s8.bf16 %v291
    %v414 = vunpack.c.l.s8.bf16 %v292
    %v415 = vunpack.c.l.s8.bf16 %v293
    %v416 = vunpack.c.l.s8.bf16 %v294
    %v417 = vunpack.c.l.s8.bf16 %v295
    %v418 = vunpack.c.h.s8.bf16 %v292
    %v419 = vunpack.c.h.s8.bf16 %v293
    %v420 = vunpack.c.h.s8.bf16 %v294
    %v421 = vunpack.c.h.s8.bf16 %v295
    %v422 = vunpack.c.l.s8.bf16 %v296
    %v423 = vunpack.c.l.s8.bf16 %v297
    %v424 = vunpack.c.l.s8.bf16 %v298
    %v425 = vunpack.c.l.s8.bf16 %v299
    %v426 = vunpack.c.h.s8.bf16 %v296
    %v427 = vunpack.c.h.s8.bf16 %v297
    %v428 = vunpack.c.h.s8.bf16 %v298
    %v429 = vunpack.c.h.s8.bf16 %v299
    %430 = vmatprep.subr.bf16.mxu0 %v331
    %431 = vmatpush1.bf16.msra.mxu0 %v330
    %432 = vmatprep.subr.bf16.mxu0 %v327
    %433 = vmatpush1.bf16.msra.mxu0 %v326
    %434 = vmatprep.subr.bf16.mxu0 %v323
    %435 = vmatpush1.bf16.msra.mxu0 %v322
    %436 = vmatprep.subr.bf16.mxu0 %v319
    %437 = vmatpush1.bf16.msra.mxu0 %v318
    %438 = vmatprep.subr.bf16.mxu0 %v315
    %439 = vmatpush1.bf16.msra.mxu0 %v314
    %440 = vmatprep.subr.bf16.mxu0 %v311
    %441 = vmatpush1.bf16.msra.mxu0 %v310
    %442 = vmatprep.subr.bf16.mxu0 %v307
    %443 = vmatpush1.bf16.msra.mxu0 %v306
    %444 = vmatprep.subr.bf16.mxu0 %v303
    %445 = vmatpush1.bf16.msra.mxu0 %v302
    %446 = vmatprep.subr.bf16.mxu0 %v363
    %447 = vmatpush2.bf16.msra.mxu0 %v362
    %448 = vmatprep.subr.bf16.mxu0 %v359
    %449 = vmatpush2.bf16.msra.mxu0 %v358
    %450 = vmatprep.subr.bf16.mxu0 %v355
    %451 = vmatpush2.bf16.msra.mxu0 %v354
    %452 = vmatprep.subr.bf16.mxu0 %v351
    %453 = vmatpush2.bf16.msra.mxu0 %v350
    %454 = vmatprep.subr.bf16.mxu0 %v347
    %455 = vmatpush2.bf16.msra.mxu0 %v346
    %456 = vmatprep.subr.bf16.mxu0 %v343
    %457 = vmatpush2.bf16.msra.mxu0 %v342
    %458 = vmatprep.subr.bf16.mxu0 %v339
    %459 = vmatpush2.bf16.msra.mxu0 %v338
    %460 = vmatprep.subr.bf16.mxu0 %v335
    %461 = vmatpush2.bf16.msra.mxu0 %v334
    %462 = vmatprep.mubr.bf16.mxu0 %v233
    %463 = vmatmul.mubr.bf16.gmra.mxu0 %v232
    %v464 = vpop.f32.mrf.mxu0
    %v465 = vadd.f32 0.0, %v464
    %v466 = vpop.f32.mrf.mxu0
    %v467 = vadd.f32 0.0, %v466
    %v468 = vpop.f32.mrf.mxu0
    %v469 = vadd.f32 0.0, %v468
    %v470 = vpop.f32.mrf.mxu0
    %v471 = vadd.f32 0.0, %v470
    %472 = vdwg.mxu0
    %473 = vmatprep.subr.bf16.mxu0 %v395
    %474 = vmatpush1.bf16.msra.mxu0 %v394
    %475 = vmatprep.subr.bf16.mxu0 %v391
    %476 = vmatpush1.bf16.msra.mxu0 %v390
    %477 = vmatprep.subr.bf16.mxu0 %v387
    %478 = vmatpush1.bf16.msra.mxu0 %v386
    %479 = vmatprep.subr.bf16.mxu0 %v383
    %480 = vmatpush1.bf16.msra.mxu0 %v382
    %481 = vmatprep.subr.bf16.mxu0 %v379
    %482 = vmatpush1.bf16.msra.mxu0 %v378
    %483 = vmatprep.subr.bf16.mxu0 %v375
    %484 = vmatpush1.bf16.msra.mxu0 %v374
    %485 = vmatprep.subr.bf16.mxu0 %v371
    %486 = vmatpush1.bf16.msra.mxu0 %v370
    %487 = vmatprep.subr.bf16.mxu0 %v367
    %488 = vmatpush1.bf16.msra.mxu0 %v366
    %489 = vmatprep.subr.bf16.mxu0 %v427
    %490 = vmatpush2.bf16.msra.mxu0 %v426
    %491 = vmatprep.subr.bf16.mxu0 %v423
    %492 = vmatpush2.bf16.msra.mxu0 %v422
    %493 = vmatprep.subr.bf16.mxu0 %v419
    %494 = vmatpush2.bf16.msra.mxu0 %v418
    %495 = vmatprep.subr.bf16.mxu0 %v415
    %496 = vmatpush2.bf16.msra.mxu0 %v414
    %497 = vmatprep.subr.bf16.mxu0 %v411
    %498 = vmatpush2.bf16.msra.mxu0 %v410
    %499 = vmatprep.subr.bf16.mxu0 %v407
    %500 = vmatpush2.bf16.msra.mxu0 %v406
    %501 = vmatprep.subr.bf16.mxu0 %v403
    %502 = vmatpush2.bf16.msra.mxu0 %v402
    %503 = vmatprep.subr.bf16.mxu0 %v399
    %504 = vmatpush2.bf16.msra.mxu0 %v398
    %505 = vmatprep.mubr.bf16.mxu0 %v235
    %506 = vmatmul.mubr.bf16.gmra.mxu0 %v234
    %v507 = vpop.f32.mrf.mxu0
    %v508 = vadd.f32 %v465, %v507
    %v509 = vpop.f32.mrf.mxu0
    %v510 = vadd.f32 %v467, %v509
    %v511 = vpop.f32.mrf.mxu0
    %v512 = vadd.f32 %v469, %v511
    %v513 = vpop.f32.mrf.mxu0
    %v514 = vadd.f32 %v471, %v513
    %515 = vdwg.mxu0
    %516 = vmatprep.subr.bf16.mxu0 %v333
    %517 = vmatpush1.bf16.msra.mxu0 %v332
    %518 = vmatprep.subr.bf16.mxu0 %v329
    %519 = vmatpush1.bf16.msra.mxu0 %v328
    %520 = vmatprep.subr.bf16.mxu0 %v325
    %521 = vmatpush1.bf16.msra.mxu0 %v324
    %522 = vmatprep.subr.bf16.mxu0 %v321
    %523 = vmatpush1.bf16.msra.mxu0 %v320
    %524 = vmatprep.subr.bf16.mxu0 %v317
    %525 = vmatpush1.bf16.msra.mxu0 %v316
    %526 = vmatprep.subr.bf16.mxu0 %v313
    %527 = vmatpush1.bf16.msra.mxu0 %v312
    %528 = vmatprep.subr.bf16.mxu0 %v309
    %529 = vmatpush1.bf16.msra.mxu0 %v308
    %530 = vmatprep.subr.bf16.mxu0 %v305
    %531 = vmatpush1.bf16.msra.mxu0 %v304
    %532 = vmatprep.subr.bf16.mxu0 %v365
    %533 = vmatpush2.bf16.msra.mxu0 %v364
    %534 = vmatprep.subr.bf16.mxu0 %v361
    %535 = vmatpush2.bf16.msra.mxu0 %v360
    %536 = vmatprep.subr.bf16.mxu0 %v357
    %537 = vmatpush2.bf16.msra.mxu0 %v356
    %538 = vmatprep.subr.bf16.mxu0 %v353
    %539 = vmatpush2.bf16.msra.mxu0 %v352
    %540 = vmatprep.subr.bf16.mxu0 %v349
    %541 = vmatpush2.bf16.msra.mxu0 %v348
    %542 = vmatprep.subr.bf16.mxu0 %v345
    %543 = vmatpush2.bf16.msra.mxu0 %v344
    %544 = vmatprep.subr.bf16.mxu0 %v341
    %545 = vmatpush2.bf16.msra.mxu0 %v340
    %546 = vmatprep.subr.bf16.mxu0 %v337
    %547 = vmatpush2.bf16.msra.mxu0 %v336
    %548 = vmatprep.mubr.bf16.mxu0 %v233
    %549 = vmatmul.mubr.bf16.gmra.mxu0 %v232
    %v550 = vpop.f32.mrf.mxu0
    %v551 = vadd.f32 0.0, %v550
    %v552 = vpop.f32.mrf.mxu0
    %v553 = vadd.f32 0.0, %v552
    %v554 = vpop.f32.mrf.mxu0
    %v555 = vadd.f32 0.0, %v554
    %v556 = vpop.f32.mrf.mxu0
    %v557 = vadd.f32 0.0, %v556
    %558 = vdwg.mxu0
    %559 = vmatprep.subr.bf16.mxu0 %v397
    %560 = vmatpush1.bf16.msra.mxu0 %v396
    %561 = vmatprep.subr.bf16.mxu0 %v393
    %562 = vmatpush1.bf16.msra.mxu0 %v392
    %563 = vmatprep.subr.bf16.mxu0 %v389
    %564 = vmatpush1.bf16.msra.mxu0 %v388
    %565 = vmatprep.subr.bf16.mxu0 %v385
    %566 = vmatpush1.bf16.msra.mxu0 %v384
    %567 = vmatprep.subr.bf16.mxu0 %v381
    %568 = vmatpush1.bf16.msra.mxu0 %v380
    %569 = vmatprep.subr.bf16.mxu0 %v377
    %570 = vmatpush1.bf16.msra.mxu0 %v376
    %571 = vmatprep.subr.bf16.mxu0 %v373
    %572 = vmatpush1.bf16.msra.mxu0 %v372
    %573 = vmatprep.subr.bf16.mxu0 %v369
    %574 = vmatpush1.bf16.msra.mxu0 %v368
    %575 = vmatprep.subr.bf16.mxu0 %v429
    %576 = vmatpush2.bf16.msra.mxu0 %v428
    %577 = vmatprep.subr.bf16.mxu0 %v425
    %578 = vmatpush2.bf16.msra.mxu0 %v424
    %579 = vmatprep.subr.bf16.mxu0 %v421
    %580 = vmatpush2.bf16.msra.mxu0 %v420
    %581 = vmatprep.subr.bf16.mxu0 %v417
    %582 = vmatpush2.bf16.msra.mxu0 %v416
    %583 = vmatprep.subr.bf16.mxu0 %v413
    %584 = vmatpush2.bf16.msra.mxu0 %v412
    %585 = vmatprep.subr.bf16.mxu0 %v409
    %586 = vmatpush2.bf16.msra.mxu0 %v408
    %587 = vmatprep.subr.bf16.mxu0 %v405
    %588 = vmatpush2.bf16.msra.mxu0 %v404
    %589 = vmatprep.subr.bf16.mxu0 %v401
    %590 = vmatpush2.bf16.msra.mxu0 %v400
    %591 = vmatprep.mubr.bf16.mxu0 %v235
    %592 = vmatmul.mubr.bf16.gmra.mxu0 %v234
    %v593 = vpop.f32.mrf.mxu0
    %v594 = vadd.f32 %v551, %v593
    %v595 = vpop.f32.mrf.mxu0
    %v596 = vadd.f32 %v553, %v595
    %v597 = vpop.f32.mrf.mxu0
    %v598 = vadd.f32 %v555, %v597
    %v599 = vpop.f32.mrf.mxu0
    %v600 = vadd.f32 %v557, %v599
    %601 = vdwg.mxu0
    %v603 = vlaneseq
    %v604 = vshrl.u32 %v603, 7
    %v605 = vsub.s32 0, %v604
    %v606 = vrot.slane %v300, %v605
    %v607 = vlaneseq
    %v608 = vshrl.u32 %v607, 7
    %v609 = vsub.s32 1, %v608
    %v610 = vrot.slane %v300, %v609
    %v611 = vlaneseq
    %v612 = vshrl.u32 %v611, 7
    %v613 = vsub.s32 2, %v612
    %v614 = vrot.slane %v300, %v613
    %v615 = vlaneseq
    %v616 = vshrl.u32 %v615, 7
    %v617 = vsub.s32 3, %v616
    %v618 = vrot.slane %v300, %v617
    %v623 = vmul.f32 %v508, %v606
    %v624 = vmul.f32 %v510, %v610
    %v625 = vmul.f32 %v594, %v614
    %v626 = vmul.f32 %v596, %v618
    %v627 = vmul.f32 %v512, %v606
    %v628 = vmul.f32 %v514, %v610
    %v629 = vmul.f32 %v598, %v614
    %v630 = vmul.f32 %v600, %v618
    %v632 = vlaneseq
    %v633 = vshrl.u32 %v632, 7
    %v634 = vsub.s32 0, %v633
    %v635 = vrot.slane %v301, %v634
    %v636 = vlaneseq
    %v637 = vshrl.u32 %v636, 7
    %v638 = vsub.s32 1, %v637
    %v639 = vrot.slane %v301, %v638
    %v640 = vlaneseq
    %v641 = vshrl.u32 %v640, 7
    %v642 = vsub.s32 2, %v641
    %v643 = vrot.slane %v301, %v642
    %v644 = vlaneseq
    %v645 = vshrl.u32 %v644, 7
    %v646 = vsub.s32 3, %v645
    %v647 = vrot.slane %v301, %v646
    %v652 = vadd.f32 %v623, %v635
    %v653 = vadd.f32 %v624, %v639
    %v654 = vadd.f32 %v625, %v643
    %v655 = vadd.f32 %v626, %v647
    %v656 = vadd.f32 %v627, %v635
    %v657 = vadd.f32 %v628, %v639
    %v658 = vadd.f32 %v629, %v643
    %v659 = vadd.f32 %v630, %v647
    %v660 = vmax.f32 %v652, 0.0
    %v661 = vmax.f32 %v653, 0.0
    %v662 = vmax.f32 %v654, 0.0
    %v663 = vmax.f32 %v655, 0.0
    %v664 = vmax.f32 %v656, 0.0
    %v665 = vmax.f32 %v657, 0.0
    %v666 = vmax.f32 %v658, 0.0
    %v667 = vmax.f32 %v659, 0.0
    %v668 = vpack.c.bf16 %v664, %v660
    %v669 = vpack.c.bf16 %v665, %v661
    %v670 = vpack.c.bf16 %v666, %v662
    %v671 = vpack.c.bf16 %v667, %v663
    %s672 = smul.u32 2, 64
    %s673 = smul.u32 %s672, 16
    %s674 = sshll.u32 %s673, 4
    %675 = dma.done [#allocation3], %s674
    %v676 = vld [vmem:[#allocation2] sm:$0xff]
    %v677 = vld [vmem:[#allocation2 + $0x8] sm:$0xff]
    %v678 = vld [vmem:[#allocation2 + $0x10] sm:$0xff]
    %v679 = vld [vmem:[#allocation2 + $0x18] sm:$0xff]
    %v680 = vld [vmem:[#allocation2 + $0x20] sm:$0xff]
    %v681 = vld [vmem:[#allocation2 + $0x28] sm:$0xff]
    %v682 = vld [vmem:[#allocation2 + $0x30] sm:$0xff]
    %v683 = vld [vmem:[#allocation2 + $0x38] sm:$0xff]
    %v684 = vld [vmem:[#allocation2 + $0x40] sm:$0xff]
    %v685 = vld [vmem:[#allocation2 + $0x48] sm:$0xff]
    %v686 = vld [vmem:[#allocation2 + $0x50] sm:$0xff]
    %v687 = vld [vmem:[#allocation2 + $0x58] sm:$0xff]
    %v688 = vld [vmem:[#allocation2 + $0x60] sm:$0xff]
    %v689 = vld [vmem:[#allocation2 + $0x68] sm:$0xff]
    %v690 = vld [vmem:[#allocation2 + $0x70] sm:$0xff]
    %v691 = vld [vmem:[#allocation2 + $0x78] sm:$0xff]
    %v692 = vld [vmem:[#allocation2 + $0x80] sm:$0xff]
    %v693 = vld [vmem:[#allocation2 + $0x88] sm:$0xff]
    %v694 = vld [vmem:[#allocation2 + $0x90] sm:$0xff]
    %v695 = vld [vmem:[#allocation2 + $0x98] sm:$0xff]
    %v696 = vld [vmem:[#allocation2 + $0xa0] sm:$0xff]
    %v697 = vld [vmem:[#allocation2 + $0xa8] sm:$0xff]
    %v698 = vld [vmem:[#allocation2 + $0xb0] sm:$0xff]
    %v699 = vld [vmem:[#allocation2 + $0xb8] sm:$0xff]
    %v700 = vld [vmem:[#allocation2 + $0xc0] sm:$0xff]
    %v701 = vld [vmem:[#allocation2 + $0xc8] sm:$0xff]
    %v702 = vld [vmem:[#allocation2 + $0xd0] sm:$0xff]
    %v703 = vld [vmem:[#allocation2 + $0xd8] sm:$0xff]
    %v704 = vld [vmem:[#allocation2 + $0xe0] sm:$0xff]
    %v705 = vld [vmem:[#allocation2 + $0xe8] sm:$0xff]
    %v706 = vld [vmem:[#allocation2 + $0xf0] sm:$0xff]
    %v707 = vld [vmem:[#allocation2 + $0xf8] sm:$0xff]
    %v708 = vld [vmem:[#allocation2 + $0x100] sm:$0xff]
    %v709 = vld [vmem:[#allocation2 + $0x108] sm:$0xff]
    %v710 = vld [vmem:[#allocation2 + $0x110] sm:$0xff]
    %v711 = vld [vmem:[#allocation2 + $0x118] sm:$0xff]
    %v712 = vld [vmem:[#allocation2 + $0x120] sm:$0xff]
    %v713 = vld [vmem:[#allocation2 + $0x128] sm:$0xff]
    %v714 = vld [vmem:[#allocation2 + $0x130] sm:$0xff]
    %v715 = vld [vmem:[#allocation2 + $0x138] sm:$0xff]
    %v716 = vld [vmem:[#allocation2 + $0x140] sm:$0xff]
    %v717 = vld [vmem:[#allocation2 + $0x148] sm:$0xff]
    %v718 = vld [vmem:[#allocation2 + $0x150] sm:$0xff]
    %v719 = vld [vmem:[#allocation2 + $0x158] sm:$0xff]
    %v720 = vld [vmem:[#allocation2 + $0x160] sm:$0xff]
    %v721 = vld [vmem:[#allocation2 + $0x168] sm:$0xff]
    %v722 = vld [vmem:[#allocation2 + $0x170] sm:$0xff]
    %v723 = vld [vmem:[#allocation2 + $0x178] sm:$0xff]
    %v724 = vld [vmem:[#allocation2 + $0x180] sm:$0xff]
    %v725 = vld [vmem:[#allocation2 + $0x188] sm:$0xff]
    %v726 = vld [vmem:[#allocation2 + $0x190] sm:$0xff]
    %v727 = vld [vmem:[#allocation2 + $0x198] sm:$0xff]
    %v728 = vld [vmem:[#allocation2 + $0x1a0] sm:$0xff]
    %v729 = vld [vmem:[#allocation2 + $0x1a8] sm:$0xff]
    %v730 = vld [vmem:[#allocation2 + $0x1b0] sm:$0xff]
    %v731 = vld [vmem:[#allocation2 + $0x1b8] sm:$0xff]
    %v732 = vld [vmem:[#allocation2 + $0x1c0] sm:$0xff]
    %v733 = vld [vmem:[#allocation2 + $0x1c8] sm:$0xff]
    %v734 = vld [vmem:[#allocation2 + $0x1d0] sm:$0xff]
    %v735 = vld [vmem:[#allocation2 + $0x1d8] sm:$0xff]
    %v736 = vld [vmem:[#allocation2 + $0x1e0] sm:$0xff]
    %v737 = vld [vmem:[#allocation2 + $0x1e8] sm:$0xff]
    %v738 = vld [vmem:[#allocation2 + $0x1f0] sm:$0xff]
    %v739 = vld [vmem:[#allocation2 + $0x1f8] sm:$0xff]
    %v740 = vld [vmem:[#allocation2 + $0x200] sm:$0xff]
    %v741 = vld [vmem:[#allocation2 + $0x208] sm:$0xff]
    %v742 = vld [vmem:[#allocation2 + $0x210] sm:$0xff]
    %v743 = vld [vmem:[#allocation2 + $0x218] sm:$0xff]
    %v744 = vld [vmem:[#allocation2 + $0x220] sm:$0xff]
    %v745 = vld [vmem:[#allocation2 + $0x228] sm:$0xff]
    %v746 = vld [vmem:[#allocation2 + $0x230] sm:$0xff]
    %v747 = vld [vmem:[#allocation2 + $0x238] sm:$0xff]
    %v748 = vld [vmem:[#allocation2 + $0x240] sm:$0xff]
    %v749 = vld [vmem:[#allocation2 + $0x248] sm:$0xff]
    %v750 = vld [vmem:[#allocation2 + $0x250] sm:$0xff]
    %v751 = vld [vmem:[#allocation2 + $0x258] sm:$0xff]
    %v752 = vld [vmem:[#allocation2 + $0x260] sm:$0xff]
    %v753 = vld [vmem:[#allocation2 + $0x268] sm:$0xff]
    %v754 = vld [vmem:[#allocation2 + $0x270] sm:$0xff]
    %v755 = vld [vmem:[#allocation2 + $0x278] sm:$0xff]
    %v756 = vld [vmem:[#allocation2 + $0x280] sm:$0xff]
    %v757 = vld [vmem:[#allocation2 + $0x288] sm:$0xff]
    %v758 = vld [vmem:[#allocation2 + $0x290] sm:$0xff]
    %v759 = vld [vmem:[#allocation2 + $0x298] sm:$0xff]
    %v760 = vld [vmem:[#allocation2 + $0x2a0] sm:$0xff]
    %v761 = vld [vmem:[#allocation2 + $0x2a8] sm:$0xff]
    %v762 = vld [vmem:[#allocation2 + $0x2b0] sm:$0xff]
    %v763 = vld [vmem:[#allocation2 + $0x2b8] sm:$0xff]
    %v764 = vld [vmem:[#allocation2 + $0x2c0] sm:$0xff]
    %v765 = vld [vmem:[#allocation2 + $0x2c8] sm:$0xff]
    %v766 = vld [vmem:[#allocation2 + $0x2d0] sm:$0xff]
    %v767 = vld [vmem:[#allocation2 + $0x2d8] sm:$0xff]
    %v768 = vld [vmem:[#allocation2 + $0x2e0] sm:$0xff]
    %v769 = vld [vmem:[#allocation2 + $0x2e8] sm:$0xff]
    %v770 = vld [vmem:[#allocation2 + $0x2f0] sm:$0xff]
    %v771 = vld [vmem:[#allocation2 + $0x2f8] sm:$0xff]
    %v772 = vld [vmem:[#allocation2 + $0x300] sm:$0xff]
    %v773 = vld [vmem:[#allocation2 + $0x308] sm:$0xff]
    %v774 = vld [vmem:[#allocation2 + $0x310] sm:$0xff]
    %v775 = vld [vmem:[#allocation2 + $0x318] sm:$0xff]
    %v776 = vld [vmem:[#allocation2 + $0x320] sm:$0xff]
    %v777 = vld [vmem:[#allocation2 + $0x328] sm:$0xff]
    %v778 = vld [vmem:[#allocation2 + $0x330] sm:$0xff]
    %v779 = vld [vmem:[#allocation2 + $0x338] sm:$0xff]
    %v780 = vld [vmem:[#allocation2 + $0x340] sm:$0xff]
    %v781 = vld [vmem:[#allocation2 + $0x348] sm:$0xff]
    %v782 = vld [vmem:[#allocation2 + $0x350] sm:$0xff]
    %v783 = vld [vmem:[#allocation2 + $0x358] sm:$0xff]
    %v784 = vld [vmem:[#allocation2 + $0x360] sm:$0xff]
    %v785 = vld [vmem:[#allocation2 + $0x368] sm:$0xff]
    %v786 = vld [vmem:[#allocation2 + $0x370] sm:$0xff]
    %v787 = vld [vmem:[#allocation2 + $0x378] sm:$0xff]
    %v788 = vld [vmem:[#allocation2 + $0x380] sm:$0xff]
    %v789 = vld [vmem:[#allocation2 + $0x388] sm:$0xff]
    %v790 = vld [vmem:[#allocation2 + $0x390] sm:$0xff]
    %v791 = vld [vmem:[#allocation2 + $0x398] sm:$0xff]
    %v792 = vld [vmem:[#allocation2 + $0x3a0] sm:$0xff]
    %v793 = vld [vmem:[#allocation2 + $0x3a8] sm:$0xff]
    %v794 = vld [vmem:[#allocation2 + $0x3b0] sm:$0xff]
    %v795 = vld [vmem:[#allocation2 + $0x3b8] sm:$0xff]
    %v796 = vld [vmem:[#allocation2 + $0x3c0] sm:$0xff]
    %v797 = vld [vmem:[#allocation2 + $0x3c8] sm:$0xff]
    %v798 = vld [vmem:[#allocation2 + $0x3d0] sm:$0xff]
    %v799 = vld [vmem:[#allocation2 + $0x3d8] sm:$0xff]
    %v800 = vld [vmem:[#allocation2 + $0x3e0] sm:$0xff]
    %v801 = vld [vmem:[#allocation2 + $0x3e8] sm:$0xff]
    %v802 = vld [vmem:[#allocation2 + $0x3f0] sm:$0xff]
    %v803 = vld [vmem:[#allocation2 + $0x3f8] sm:$0xff]
    %v804 = vld [vmem:[#allocation2 + $0x400] sm:$0xff]
    %v805 = vld [vmem:[#allocation2 + $0x408] sm:$0xff]
    %v806 = vld [vmem:[#allocation2 + $0x410] sm:$0xff]
    %v807 = vld [vmem:[#allocation2 + $0x418] sm:$0xff]
    %v808 = vld [vmem:[#allocation2 + $0x420] sm:$0xff]
    %v809 = vld [vmem:[#allocation2 + $0x428] sm:$0xff]
    %v810 = vld [vmem:[#allocation2 + $0x430] sm:$0xff]
    %v811 = vld [vmem:[#allocation2 + $0x438] sm:$0xff]
    %v812 = vld [vmem:[#allocation2 + $0x440] sm:$0xff]
    %v813 = vld [vmem:[#allocation2 + $0x448] sm:$0xff]
    %v814 = vld [vmem:[#allocation2 + $0x450] sm:$0xff]
    %v815 = vld [vmem:[#allocation2 + $0x458] sm:$0xff]
    %v816 = vld [vmem:[#allocation2 + $0x460] sm:$0xff]
    %v817 = vld [vmem:[#allocation2 + $0x468] sm:$0xff]
    %v818 = vld [vmem:[#allocation2 + $0x470] sm:$0xff]
    %v819 = vld [vmem:[#allocation2 + $0x478] sm:$0xff]
    %v820 = vld [vmem:[#allocation2 + $0x480] sm:$0xff]
    %v821 = vld [vmem:[#allocation2 + $0x488] sm:$0xff]
    %v822 = vld [vmem:[#allocation2 + $0x490] sm:$0xff]
    %v823 = vld [vmem:[#allocation2 + $0x498] sm:$0xff]
    %v824 = vld [vmem:[#allocation2 + $0x4a0] sm:$0xff]
    %v825 = vld [vmem:[#allocation2 + $0x4a8] sm:$0xff]
    %v826 = vld [vmem:[#allocation2 + $0x4b0] sm:$0xff]
    %v827 = vld [vmem:[#allocation2 + $0x4b8] sm:$0xff]
    %v828 = vld [vmem:[#allocation2 + $0x4c0] sm:$0xff]
    %v829 = vld [vmem:[#allocation2 + $0x4c8] sm:$0xff]
    %v830 = vld [vmem:[#allocation2 + $0x4d0] sm:$0xff]
    %v831 = vld [vmem:[#allocation2 + $0x4d8] sm:$0xff]
    %v832 = vld [vmem:[#allocation2 + $0x4e0] sm:$0xff]
    %v833 = vld [vmem:[#allocation2 + $0x4e8] sm:$0xff]
    %v834 = vld [vmem:[#allocation2 + $0x4f0] sm:$0xff]
    %v835 = vld [vmem:[#allocation2 + $0x4f8] sm:$0xff]
    %v836 = vld [vmem:[#allocation2 + $0x500] sm:$0xff]
    %v837 = vld [vmem:[#allocation2 + $0x508] sm:$0xff]
    %v838 = vld [vmem:[#allocation2 + $0x510] sm:$0xff]
    %v839 = vld [vmem:[#allocation2 + $0x518] sm:$0xff]
    %v840 = vld [vmem:[#allocation2 + $0x520] sm:$0xff]
    %v841 = vld [vmem:[#allocation2 + $0x528] sm:$0xff]
    %v842 = vld [vmem:[#allocation2 + $0x530] sm:$0xff]
    %v843 = vld [vmem:[#allocation2 + $0x538] sm:$0xff]
    %v844 = vld [vmem:[#allocation2 + $0x540] sm:$0xff]
    %v845 = vld [vmem:[#allocation2 + $0x548] sm:$0xff]
    %v846 = vld [vmem:[#allocation2 + $0x550] sm:$0xff]
    %v847 = vld [vmem:[#allocation2 + $0x558] sm:$0xff]
    %v848 = vld [vmem:[#allocation2 + $0x560] sm:$0xff]
    %v849 = vld [vmem:[#allocation2 + $0x568] sm:$0xff]
    %v850 = vld [vmem:[#allocation2 + $0x570] sm:$0xff]
    %v851 = vld [vmem:[#allocation2 + $0x578] sm:$0xff]
    %v852 = vld [vmem:[#allocation2 + $0x580] sm:$0xff]
    %v853 = vld [vmem:[#allocation2 + $0x588] sm:$0xff]
    %v854 = vld [vmem:[#allocation2 + $0x590] sm:$0xff]
    %v855 = vld [vmem:[#allocation2 + $0x598] sm:$0xff]
    %v856 = vld [vmem:[#allocation2 + $0x5a0] sm:$0xff]
    %v857 = vld [vmem:[#allocation2 + $0x5a8] sm:$0xff]
    %v858 = vld [vmem:[#allocation2 + $0x5b0] sm:$0xff]
    %v859 = vld [vmem:[#allocation2 + $0x5b8] sm:$0xff]
    %v860 = vld [vmem:[#allocation2 + $0x5c0] sm:$0xff]
    %v861 = vld [vmem:[#allocation2 + $0x5c8] sm:$0xff]
    %v862 = vld [vmem:[#allocation2 + $0x5d0] sm:$0xff]
    %v863 = vld [vmem:[#allocation2 + $0x5d8] sm:$0xff]
    %v864 = vld [vmem:[#allocation2 + $0x5e0] sm:$0xff]
    %v865 = vld [vmem:[#allocation2 + $0x5e8] sm:$0xff]
    %v866 = vld [vmem:[#allocation2 + $0x5f0] sm:$0xff]
    %v867 = vld [vmem:[#allocation2 + $0x5f8] sm:$0xff]
    %v868 = vld [vmem:[#allocation2 + $0x600] sm:$0xff]
    %v869 = vld [vmem:[#allocation2 + $0x608] sm:$0xff]
    %v870 = vld [vmem:[#allocation2 + $0x610] sm:$0xff]
    %v871 = vld [vmem:[#allocation2 + $0x618] sm:$0xff]
    %v872 = vld [vmem:[#allocation2 + $0x620] sm:$0xff]
    %v873 = vld [vmem:[#allocation2 + $0x628] sm:$0xff]
    %v874 = vld [vmem:[#allocation2 + $0x630] sm:$0xff]
    %v875 = vld [vmem:[#allocation2 + $0x638] sm:$0xff]
    %v876 = vld [vmem:[#allocation2 + $0x640] sm:$0xff]
    %v877 = vld [vmem:[#allocation2 + $0x648] sm:$0xff]
    %v878 = vld [vmem:[#allocation2 + $0x650] sm:$0xff]
    %v879 = vld [vmem:[#allocation2 + $0x658] sm:$0xff]
    %v880 = vld [vmem:[#allocation2 + $0x660] sm:$0xff]
    %v881 = vld [vmem:[#allocation2 + $0x668] sm:$0xff]
    %v882 = vld [vmem:[#allocation2 + $0x670] sm:$0xff]
    %v883 = vld [vmem:[#allocation2 + $0x678] sm:$0xff]
    %v884 = vld [vmem:[#allocation2 + $0x680] sm:$0xff]
    %v885 = vld [vmem:[#allocation2 + $0x688] sm:$0xff]
    %v886 = vld [vmem:[#allocation2 + $0x690] sm:$0xff]
    %v887 = vld [vmem:[#allocation2 + $0x698] sm:$0xff]
    %v888 = vld [vmem:[#allocation2 + $0x6a0] sm:$0xff]
    %v889 = vld [vmem:[#allocation2 + $0x6a8] sm:$0xff]
    %v890 = vld [vmem:[#allocation2 + $0x6b0] sm:$0xff]
    %v891 = vld [vmem:[#allocation2 + $0x6b8] sm:$0xff]
    %v892 = vld [vmem:[#allocation2 + $0x6c0] sm:$0xff]
    %v893 = vld [vmem:[#allocation2 + $0x6c8] sm:$0xff]
    %v894 = vld [vmem:[#allocation2 + $0x6d0] sm:$0xff]
    %v895 = vld [vmem:[#allocation2 + $0x6d8] sm:$0xff]
    %v896 = vld [vmem:[#allocation2 + $0x6e0] sm:$0xff]
    %v897 = vld [vmem:[#allocation2 + $0x6e8] sm:$0xff]
    %v898 = vld [vmem:[#allocation2 + $0x6f0] sm:$0xff]
    %v899 = vld [vmem:[#allocation2 + $0x6f8] sm:$0xff]
    %v900 = vld [vmem:[#allocation2 + $0x700] sm:$0xff]
    %v901 = vld [vmem:[#allocation2 + $0x708] sm:$0xff]
    %v902 = vld [vmem:[#allocation2 + $0x710] sm:$0xff]
    %v903 = vld [vmem:[#allocation2 + $0x718] sm:$0xff]
    %v904 = vld [vmem:[#allocation2 + $0x720] sm:$0xff]
    %v905 = vld [vmem:[#allocation2 + $0x728] sm:$0xff]
    %v906 = vld [vmem:[#allocation2 + $0x730] sm:$0xff]
    %v907 = vld [vmem:[#allocation2 + $0x738] sm:$0xff]
    %v908 = vld [vmem:[#allocation2 + $0x740] sm:$0xff]
    %v909 = vld [vmem:[#allocation2 + $0x748] sm:$0xff]
    %v910 = vld [vmem:[#allocation2 + $0x750] sm:$0xff]
    %v911 = vld [vmem:[#allocation2 + $0x758] sm:$0xff]
    %v912 = vld [vmem:[#allocation2 + $0x760] sm:$0xff]
    %v913 = vld [vmem:[#allocation2 + $0x768] sm:$0xff]
    %v914 = vld [vmem:[#allocation2 + $0x770] sm:$0xff]
    %v915 = vld [vmem:[#allocation2 + $0x778] sm:$0xff]
    %v916 = vld [vmem:[#allocation2 + $0x780] sm:$0xff]
    %v917 = vld [vmem:[#allocation2 + $0x788] sm:$0xff]
    %v918 = vld [vmem:[#allocation2 + $0x790] sm:$0xff]
    %v919 = vld [vmem:[#allocation2 + $0x798] sm:$0xff]
    %v920 = vld [vmem:[#allocation2 + $0x7a0] sm:$0xff]
    %v921 = vld [vmem:[#allocation2 + $0x7a8] sm:$0xff]
    %v922 = vld [vmem:[#allocation2 + $0x7b0] sm:$0xff]
    %v923 = vld [vmem:[#allocation2 + $0x7b8] sm:$0xff]
    %v924 = vld [vmem:[#allocation2 + $0x7c0] sm:$0xff]
    %v925 = vld [vmem:[#allocation2 + $0x7c8] sm:$0xff]
    %v926 = vld [vmem:[#allocation2 + $0x7d0] sm:$0xff]
    %v927 = vld [vmem:[#allocation2 + $0x7d8] sm:$0xff]
    %v928 = vld [vmem:[#allocation2 + $0x7e0] sm:$0xff]
    %v929 = vld [vmem:[#allocation2 + $0x7e8] sm:$0xff]
    %v930 = vld [vmem:[#allocation2 + $0x7f0] sm:$0xff]
    %v931 = vld [vmem:[#allocation2 + $0x7f8] sm:$0xff]
    %v932 = vld [vmem:[%s8] sm:$0xff]
    %v933 = vld [vmem:[%s8 + $0x8] sm:$0xff]
    %v934 = vld [vmem:[%s9] sm:$0xff]
    %v935 = vld [vmem:[%s9 + $0x8] sm:$0xff]
    %v936 = vunpack.c.l.s8.bf16 %v676
    %v937 = vunpack.c.l.s8.bf16 %v677
    %v938 = vunpack.c.l.s8.bf16 %v678
    %v939 = vunpack.c.l.s8.bf16 %v679
    %v940 = vunpack.c.l.s8.bf16 %v680
    %v941 = vunpack.c.l.s8.bf16 %v681
    %v942 = vunpack.c.l.s8.bf16 %v682
    %v943 = vunpack.c.l.s8.bf16 %v683
    %v944 = vunpack.c.l.s8.bf16 %v684
    %v945 = vunpack.c.l.s8.bf16 %v685
    %v946 = vunpack.c.l.s8.bf16 %v686
    %v947 = vunpack.c.l.s8.bf16 %v687
    %v948 = vunpack.c.l.s8.bf16 %v688
    %v949 = vunpack.c.l.s8.bf16 %v689
    %v950 = vunpack.c.l.s8.bf16 %v690
    %v951 = vunpack.c.l.s8.bf16 %v691
    %v952 = vunpack.c.h.s8.bf16 %v676
    %v953 = vunpack.c.h.s8.bf16 %v677
    %v954 = vunpack.c.h.s8.bf16 %v678
    %v955 = vunpack.c.h.s8.bf16 %v679
    %v956 = vunpack.c.h.s8.bf16 %v680
    %v957 = vunpack.c.h.s8.bf16 %v681
    %v958 = vunpack.c.h.s8.bf16 %v682
    %v959 = vunpack.c.h.s8.bf16 %v683
    %v960 = vunpack.c.h.s8.bf16 %v684
    %v961 = vunpack.c.h.s8.bf16 %v685
    %v962 = vunpack.c.h.s8.bf16 %v686
    %v963 = vunpack.c.h.s8.bf16 %v687
    %v964 = vunpack.c.h.s8.bf16 %v688
    %v965 = vunpack.c.h.s8.bf16 %v689
    %v966 = vunpack.c.h.s8.bf16 %v690
    %v967 = vunpack.c.h.s8.bf16 %v691
    %v968 = vunpack.c.l.s8.bf16 %v692
    %v969 = vunpack.c.l.s8.bf16 %v693
    %v970 = vunpack.c.l.s8.bf16 %v694
    %v971 = vunpack.c.l.s8.bf16 %v695
    %v972 = vunpack.c.l.s8.bf16 %v696
    %v973 = vunpack.c.l.s8.bf16 %v697
    %v974 = vunpack.c.l.s8.bf16 %v698
    %v975 = vunpack.c.l.s8.bf16 %v699
    %v976 = vunpack.c.l.s8.bf16 %v700
    %v977 = vunpack.c.l.s8.bf16 %v701
    %v978 = vunpack.c.l.s8.bf16 %v702
    %v979 = vunpack.c.l.s8.bf16 %v703
    %v980 = vunpack.c.l.s8.bf16 %v704
    %v981 = vunpack.c.l.s8.bf16 %v705
    %v982 = vunpack.c.l.s8.bf16 %v706
    %v983 = vunpack.c.l.s8.bf16 %v707
    %v984 = vunpack.c.h.s8.bf16 %v692
    %v985 = vunpack.c.h.s8.bf16 %v693
    %v986 = vunpack.c.h.s8.bf16 %v694
    %v987 = vunpack.c.h.s8.bf16 %v695
    %v988 = vunpack.c.h.s8.bf16 %v696
    %v989 = vunpack.c.h.s8.bf16 %v697
    %v990 = vunpack.c.h.s8.bf16 %v698
    %v991 = vunpack.c.h.s8.bf16 %v699
    %v992 = vunpack.c.h.s8.bf16 %v700
    %v993 = vunpack.c.h.s8.bf16 %v701
    %v994 = vunpack.c.h.s8.bf16 %v702
    %v995 = vunpack.c.h.s8.bf16 %v703
    %v996 = vunpack.c.h.s8.bf16 %v704
    %v997 = vunpack.c.h.s8.bf16 %v705
    %v998 = vunpack.c.h.s8.bf16 %v706
    %v999 = vunpack.c.h.s8.bf16 %v707
    %v1000 = vunpack.c.l.s8.bf16 %v708
    %v1001 = vunpack.c.l.s8.bf16 %v709
    %v1002 = vunpack.c.l.s8.bf16 %v710
    %v1003 = vunpack.c.l.s8.bf16 %v711
    %v1004 = vunpack.c.l.s8.bf16 %v712
    %v1005 = vunpack.c.l.s8.bf16 %v713
    %v1006 = vunpack.c.l.s8.bf16 %v714
    %v1007 = vunpack.c.l.s8.bf16 %v715
    %v1008 = vunpack.c.l.s8.bf16 %v716
    %v1009 = vunpack.c.l.s8.bf16 %v717
    %v1010 = vunpack.c.l.s8.bf16 %v718
    %v1011 = vunpack.c.l.s8.bf16 %v719
    %v1012 = vunpack.c.l.s8.bf16 %v720
    %v1013 = vunpack.c.l.s8.bf16 %v721
    %v1014 = vunpack.c.l.s8.bf16 %v722
    %v1015 = vunpack.c.l.s8.bf16 %v723
    %v1016 = vunpack.c.h.s8.bf16 %v708
    %v1017 = vunpack.c.h.s8.bf16 %v709
    %v1018 = vunpack.c.h.s8.bf16 %v710
    %v1019 = vunpack.c.h.s8.bf16 %v711
    %v1020 = vunpack.c.h.s8.bf16 %v712
    %v1021 = vunpack.c.h.s8.bf16 %v713
    %v1022 = vunpack.c.h.s8.bf16 %v714
    %v1023 = vunpack.c.h.s8.bf16 %v715
    %v1024 = vunpack.c.h.s8.bf16 %v716
    %v1025 = vunpack.c.h.s8.bf16 %v717
    %v1026 = vunpack.c.h.s8.bf16 %v718
    %v1027 = vunpack.c.h.s8.bf16 %v719
    %v1028 = vunpack.c.h.s8.bf16 %v720
    %v1029 = vunpack.c.h.s8.bf16 %v721
    %v1030 = vunpack.c.h.s8.bf16 %v722
    %v1031 = vunpack.c.h.s8.bf16 %v723
    %v1032 = vunpack.c.l.s8.bf16 %v724
    %v1033 = vunpack.c.l.s8.bf16 %v725
    %v1034 = vunpack.c.l.s8.bf16 %v726
    %v1035 = vunpack.c.l.s8.bf16 %v727
    %v1036 = vunpack.c.l.s8.bf16 %v728
    %v1037 = vunpack.c.l.s8.bf16 %v729
    %v1038 = vunpack.c.l.s8.bf16 %v730
    %v1039 = vunpack.c.l.s8.bf16 %v731
    %v1040 = vunpack.c.l.s8.bf16 %v732
    %v1041 = vunpack.c.l.s8.bf16 %v733
    %v1042 = vunpack.c.l.s8.bf16 %v734
    %v1043 = vunpack.c.l.s8.bf16 %v735
    %v1044 = vunpack.c.l.s8.bf16 %v736
    %v1045 = vunpack.c.l.s8.bf16 %v737
    %v1046 = vunpack.c.l.s8.bf16 %v738
    %v1047 = vunpack.c.l.s8.bf16 %v739
    %v1048 = vunpack.c.h.s8.bf16 %v724
    %v1049 = vunpack.c.h.s8.bf16 %v725
    %v1050 = vunpack.c.h.s8.bf16 %v726
    %v1051 = vunpack.c.h.s8.bf16 %v727
    %v1052 = vunpack.c.h.s8.bf16 %v728
    %v1053 = vunpack.c.h.s8.bf16 %v729
    %v1054 = vunpack.c.h.s8.bf16 %v730
    %v1055 = vunpack.c.h.s8.bf16 %v731
    %v1056 = vunpack.c.h.s8.bf16 %v732
    %v1057 = vunpack.c.h.s8.bf16 %v733
    %v1058 = vunpack.c.h.s8.bf16 %v734
    %v1059 = vunpack.c.h.s8.bf16 %v735
    %v1060 = vunpack.c.h.s8.bf16 %v736
    %v1061 = vunpack.c.h.s8.bf16 %v737
    %v1062 = vunpack.c.h.s8.bf16 %v738
    %v1063 = vunpack.c.h.s8.bf16 %v739
    %v1064 = vunpack.c.l.s8.bf16 %v740
    %v1065 = vunpack.c.l.s8.bf16 %v741
    %v1066 = vunpack.c.l.s8.bf16 %v742
    %v1067 = vunpack.c.l.s8.bf16 %v743
    %v1068 = vunpack.c.l.s8.bf16 %v744
    %v1069 = vunpack.c.l.s8.bf16 %v745
    %v1070 = vunpack.c.l.s8.bf16 %v746
    %v1071 = vunpack.c.l.s8.bf16 %v747
    %v1072 = vunpack.c.l.s8.bf16 %v748
    %v1073 = vunpack.c.l.s8.bf16 %v749
    %v1074 = vunpack.c.l.s8.bf16 %v750
    %v1075 = vunpack.c.l.s8.bf16 %v751
    %v1076 = vunpack.c.l.s8.bf16 %v752
    %v1077 = vunpack.c.l.s8.bf16 %v753
    %v1078 = vunpack.c.l.s8.bf16 %v754
    %v1079 = vunpack.c.l.s8.bf16 %v755
    %v1080 = vunpack.c.h.s8.bf16 %v740
    %v1081 = vunpack.c.h.s8.bf16 %v741
    %v1082 = vunpack.c.h.s8.bf16 %v742
    %v1083 = vunpack.c.h.s8.bf16 %v743
    %v1084 = vunpack.c.h.s8.bf16 %v744
    %v1085 = vunpack.c.h.s8.bf16 %v745
    %v1086 = vunpack.c.h.s8.bf16 %v746
    %v1087 = vunpack.c.h.s8.bf16 %v747
    %v1088 = vunpack.c.h.s8.bf16 %v748
    %v1089 = vunpack.c.h.s8.bf16 %v749
    %v1090 = vunpack.c.h.s8.bf16 %v750
    %v1091 = vunpack.c.h.s8.bf16 %v751
    %v1092 = vunpack.c.h.s8.bf16 %v752
    %v1093 = vunpack.c.h.s8.bf16 %v753
    %v1094 = vunpack.c.h.s8.bf16 %v754
    %v1095 = vunpack.c.h.s8.bf16 %v755
    %v1096 = vunpack.c.l.s8.bf16 %v756
    %v1097 = vunpack.c.l.s8.bf16 %v757
    %v1098 = vunpack.c.l.s8.bf16 %v758
    %v1099 = vunpack.c.l.s8.bf16 %v759
    %v1100 = vunpack.c.l.s8.bf16 %v760
    %v1101 = vunpack.c.l.s8.bf16 %v761
    %v1102 = vunpack.c.l.s8.bf16 %v762
    %v1103 = vunpack.c.l.s8.bf16 %v763
    %v1104 = vunpack.c.l.s8.bf16 %v764
    %v1105 = vunpack.c.l.s8.bf16 %v765
    %v1106 = vunpack.c.l.s8.bf16 %v766
    %v1107 = vunpack.c.l.s8.bf16 %v767
    %v1108 = vunpack.c.l.s8.bf16 %v768
    %v1109 = vunpack.c.l.s8.bf16 %v769
    %v1110 = vunpack.c.l.s8.bf16 %v770
    %v1111 = vunpack.c.l.s8.bf16 %v771
    %v1112 = vunpack.c.h.s8.bf16 %v756
    %v1113 = vunpack.c.h.s8.bf16 %v757
    %v1114 = vunpack.c.h.s8.bf16 %v758
    %v1115 = vunpack.c.h.s8.bf16 %v759
    %v1116 = vunpack.c.h.s8.bf16 %v760
    %v1117 = vunpack.c.h.s8.bf16 %v761
    %v1118 = vunpack.c.h.s8.bf16 %v762
    %v1119 = vunpack.c.h.s8.bf16 %v763
    %v1120 = vunpack.c.h.s8.bf16 %v764
    %v1121 = vunpack.c.h.s8.bf16 %v765
    %v1122 = vunpack.c.h.s8.bf16 %v766
    %v1123 = vunpack.c.h.s8.bf16 %v767
    %v1124 = vunpack.c.h.s8.bf16 %v768
    %v1125 = vunpack.c.h.s8.bf16 %v769
    %v1126 = vunpack.c.h.s8.bf16 %v770
    %v1127 = vunpack.c.h.s8.bf16 %v771
    %v1128 = vunpack.c.l.s8.bf16 %v772
    %v1129 = vunpack.c.l.s8.bf16 %v773
    %v1130 = vunpack.c.l.s8.bf16 %v774
    %v1131 = vunpack.c.l.s8.bf16 %v775
    %v1132 = vunpack.c.l.s8.bf16 %v776
    %v1133 = vunpack.c.l.s8.bf16 %v777
    %v1134 = vunpack.c.l.s8.bf16 %v778
    %v1135 = vunpack.c.l.s8.bf16 %v779
    %v1136 = vunpack.c.l.s8.bf16 %v780
    %v1137 = vunpack.c.l.s8.bf16 %v781
    %v1138 = vunpack.c.l.s8.bf16 %v782
    %v1139 = vunpack.c.l.s8.bf16 %v783
    %v1140 = vunpack.c.l.s8.bf16 %v784
    %v1141 = vunpack.c.l.s8.bf16 %v785
    %v1142 = vunpack.c.l.s8.bf16 %v786
    %v1143 = vunpack.c.l.s8.bf16 %v787
    %v1144 = vunpack.c.h.s8.bf16 %v772
    %v1145 = vunpack.c.h.s8.bf16 %v773
    %v1146 = vunpack.c.h.s8.bf16 %v774
    %v1147 = vunpack.c.h.s8.bf16 %v775
    %v1148 = vunpack.c.h.s8.bf16 %v776
    %v1149 = vunpack.c.h.s8.bf16 %v777
    %v1150 = vunpack.c.h.s8.bf16 %v778
    %v1151 = vunpack.c.h.s8.bf16 %v779
    %v1152 = vunpack.c.h.s8.bf16 %v780
    %v1153 = vunpack.c.h.s8.bf16 %v781
    %v1154 = vunpack.c.h.s8.bf16 %v782
    %v1155 = vunpack.c.h.s8.bf16 %v783
    %v1156 = vunpack.c.h.s8.bf16 %v784
    %v1157 = vunpack.c.h.s8.bf16 %v785
    %v1158 = vunpack.c.h.s8.bf16 %v786
    %v1159 = vunpack.c.h.s8.bf16 %v787
    %v1160 = vunpack.c.l.s8.bf16 %v788
    %v1161 = vunpack.c.l.s8.bf16 %v789
    %v1162 = vunpack.c.l.s8.bf16 %v790
    %v1163 = vunpack.c.l.s8.bf16 %v791
    %v1164 = vunpack.c.l.s8.bf16 %v792
    %v1165 = vunpack.c.l.s8.bf16 %v793
    %v1166 = vunpack.c.l.s8.bf16 %v794
    %v1167 = vunpack.c.l.s8.bf16 %v795
    %v1168 = vunpack.c.l.s8.bf16 %v796
    %v1169 = vunpack.c.l.s8.bf16 %v797
    %v1170 = vunpack.c.l.s8.bf16 %v798
    %v1171 = vunpack.c.l.s8.bf16 %v799
    %v1172 = vunpack.c.l.s8.bf16 %v800
    %v1173 = vunpack.c.l.s8.bf16 %v801
    %v1174 = vunpack.c.l.s8.bf16 %v802
    %v1175 = vunpack.c.l.s8.bf16 %v803
    %v1176 = vunpack.c.h.s8.bf16 %v788
    %v1177 = vunpack.c.h.s8.bf16 %v789
    %v1178 = vunpack.c.h.s8.bf16 %v790
    %v1179 = vunpack.c.h.s8.bf16 %v791
    %v1180 = vunpack.c.h.s8.bf16 %v792
    %v1181 = vunpack.c.h.s8.bf16 %v793
    %v1182 = vunpack.c.h.s8.bf16 %v794
    %v1183 = vunpack.c.h.s8.bf16 %v795
    %v1184 = vunpack.c.h.s8.bf16 %v796
    %v1185 = vunpack.c.h.s8.bf16 %v797
    %v1186 = vunpack.c.h.s8.bf16 %v798
    %v1187 = vunpack.c.h.s8.bf16 %v799
    %v1188 = vunpack.c.h.s8.bf16 %v800
    %v1189 = vunpack.c.h.s8.bf16 %v801
    %v1190 = vunpack.c.h.s8.bf16 %v802
    %v1191 = vunpack.c.h.s8.bf16 %v803
    %v1192 = vunpack.c.l.s8.bf16 %v804
    %v1193 = vunpack.c.l.s8.bf16 %v805
    %v1194 = vunpack.c.l.s8.bf16 %v806
    %v1195 = vunpack.c.l.s8.bf16 %v807
    %v1196 = vunpack.c.l.s8.bf16 %v808
    %v1197 = vunpack.c.l.s8.bf16 %v809
    %v1198 = vunpack.c.l.s8.bf16 %v810
    %v1199 = vunpack.c.l.s8.bf16 %v811
    %v1200 = vunpack.c.l.s8.bf16 %v812
    %v1201 = vunpack.c.l.s8.bf16 %v813
    %v1202 = vunpack.c.l.s8.bf16 %v814
    %v1203 = vunpack.c.l.s8.bf16 %v815
    %v1204 = vunpack.c.l.s8.bf16 %v816
    %v1205 = vunpack.c.l.s8.bf16 %v817
    %v1206 = vunpack.c.l.s8.bf16 %v818
    %v1207 = vunpack.c.l.s8.bf16 %v819
    %v1208 = vunpack.c.h.s8.bf16 %v804
    %v1209 = vunpack.c.h.s8.bf16 %v805
    %v1210 = vunpack.c.h.s8.bf16 %v806
    %v1211 = vunpack.c.h.s8.bf16 %v807
    %v1212 = vunpack.c.h.s8.bf16 %v808
    %v1213 = vunpack.c.h.s8.bf16 %v809
    %v1214 = vunpack.c.h.s8.bf16 %v810
    %v1215 = vunpack.c.h.s8.bf16 %v811
    %v1216 = vunpack.c.h.s8.bf16 %v812
    %v1217 = vunpack.c.h.s8.bf16 %v813
    %v1218 = vunpack.c.h.s8.bf16 %v814
    %v1219 = vunpack.c.h.s8.bf16 %v815
    %v1220 = vunpack.c.h.s8.bf16 %v816
    %v1221 = vunpack.c.h.s8.bf16 %v817
    %v1222 = vunpack.c.h.s8.bf16 %v818
    %v1223 = vunpack.c.h.s8.bf16 %v819
    %v1224 = vunpack.c.l.s8.bf16 %v820
    %v1225 = vunpack.c.l.s8.bf16 %v821
    %v1226 = vunpack.c.l.s8.bf16 %v822
    %v1227 = vunpack.c.l.s8.bf16 %v823
    %v1228 = vunpack.c.l.s8.bf16 %v824
    %v1229 = vunpack.c.l.s8.bf16 %v825
    %v1230 = vunpack.c.l.s8.bf16 %v826
    %v1231 = vunpack.c.l.s8.bf16 %v827
    %v1232 = vunpack.c.l.s8.bf16 %v828
    %v1233 = vunpack.c.l.s8.bf16 %v829
    %v1234 = vunpack.c.l.s8.bf16 %v830
    %v1235 = vunpack.c.l.s8.bf16 %v831
    %v1236 = vunpack.c.l.s8.bf16 %v832
    %v1237 = vunpack.c.l.s8.bf16 %v833
    %v1238 = vunpack.c.l.s8.bf16 %v834
    %v1239 = vunpack.c.l.s8.bf16 %v835
    %v1240 = vunpack.c.h.s8.bf16 %v820
    %v1241 = vunpack.c.h.s8.bf16 %v821
    %v1242 = vunpack.c.h.s8.bf16 %v822
    %v1243 = vunpack.c.h.s8.bf16 %v823
    %v1244 = vunpack.c.h.s8.bf16 %v824
    %v1245 = vunpack.c.h.s8.bf16 %v825
    %v1246 = vunpack.c.h.s8.bf16 %v826
    %v1247 = vunpack.c.h.s8.bf16 %v827
    %v1248 = vunpack.c.h.s8.bf16 %v828
    %v1249 = vunpack.c.h.s8.bf16 %v829
    %v1250 = vunpack.c.h.s8.bf16 %v830
    %v1251 = vunpack.c.h.s8.bf16 %v831
    %v1252 = vunpack.c.h.s8.bf16 %v832
    %v1253 = vunpack.c.h.s8.bf16 %v833
    %v1254 = vunpack.c.h.s8.bf16 %v834
    %v1255 = vunpack.c.h.s8.bf16 %v835
    %v1256 = vunpack.c.l.s8.bf16 %v836
    %v1257 = vunpack.c.l.s8.bf16 %v837
    %v1258 = vunpack.c.l.s8.bf16 %v838
    %v1259 = vunpack.c.l.s8.bf16 %v839
    %v1260 = vunpack.c.l.s8.bf16 %v840
    %v1261 = vunpack.c.l.s8.bf16 %v841
    %v1262 = vunpack.c.l.s8.bf16 %v842
    %v1263 = vunpack.c.l.s8.bf16 %v843
    %v1264 = vunpack.c.l.s8.bf16 %v844
    %v1265 = vunpack.c.l.s8.bf16 %v845
    %v1266 = vunpack.c.l.s8.bf16 %v846
    %v1267 = vunpack.c.l.s8.bf16 %v847
    %v1268 = vunpack.c.l.s8.bf16 %v848
    %v1269 = vunpack.c.l.s8.bf16 %v849
    %v1270 = vunpack.c.l.s8.bf16 %v850
    %v1271 = vunpack.c.l.s8.bf16 %v851
    %v1272 = vunpack.c.h.s8.bf16 %v836
    %v1273 = vunpack.c.h.s8.bf16 %v837
    %v1274 = vunpack.c.h.s8.bf16 %v838
    %v1275 = vunpack.c.h.s8.bf16 %v839
    %v1276 = vunpack.c.h.s8.bf16 %v840
    %v1277 = vunpack.c.h.s8.bf16 %v841
    %v1278 = vunpack.c.h.s8.bf16 %v842
    %v1279 = vunpack.c.h.s8.bf16 %v843
    %v1280 = vunpack.c.h.s8.bf16 %v844
    %v1281 = vunpack.c.h.s8.bf16 %v845
    %v1282 = vunpack.c.h.s8.bf16 %v846
    %v1283 = vunpack.c.h.s8.bf16 %v847
    %v1284 = vunpack.c.h.s8.bf16 %v848
    %v1285 = vunpack.c.h.s8.bf16 %v849
    %v1286 = vunpack.c.h.s8.bf16 %v850
    %v1287 = vunpack.c.h.s8.bf16 %v851
    %v1288 = vunpack.c.l.s8.bf16 %v852
    %v1289 = vunpack.c.l.s8.bf16 %v853
    %v1290 = vunpack.c.l.s8.bf16 %v854
    %v1291 = vunpack.c.l.s8.bf16 %v855
    %v1292 = vunpack.c.l.s8.bf16 %v856
    %v1293 = vunpack.c.l.s8.bf16 %v857
    %v1294 = vunpack.c.l.s8.bf16 %v858
    %v1295 = vunpack.c.l.s8.bf16 %v859
    %v1296 = vunpack.c.l.s8.bf16 %v860
    %v1297 = vunpack.c.l.s8.bf16 %v861
    %v1298 = vunpack.c.l.s8.bf16 %v862
    %v1299 = vunpack.c.l.s8.bf16 %v863
    %v1300 = vunpack.c.l.s8.bf16 %v864
    %v1301 = vunpack.c.l.s8.bf16 %v865
    %v1302 = vunpack.c.l.s8.bf16 %v866
    %v1303 = vunpack.c.l.s8.bf16 %v867
    %v1304 = vunpack.c.h.s8.bf16 %v852
    %v1305 = vunpack.c.h.s8.bf16 %v853
    %v1306 = vunpack.c.h.s8.bf16 %v854
    %v1307 = vunpack.c.h.s8.bf16 %v855
    %v1308 = vunpack.c.h.s8.bf16 %v856
    %v1309 = vunpack.c.h.s8.bf16 %v857
    %v1310 = vunpack.c.h.s8.bf16 %v858
    %v1311 = vunpack.c.h.s8.bf16 %v859
    %v1312 = vunpack.c.h.s8.bf16 %v860
    %v1313 = vunpack.c.h.s8.bf16 %v861
    %v1314 = vunpack.c.h.s8.bf16 %v862
    %v1315 = vunpack.c.h.s8.bf16 %v863
    %v1316 = vunpack.c.h.s8.bf16 %v864
    %v1317 = vunpack.c.h.s8.bf16 %v865
    %v1318 = vunpack.c.h.s8.bf16 %v866
    %v1319 = vunpack.c.h.s8.bf16 %v867
    %v1320 = vunpack.c.l.s8.bf16 %v868
    %v1321 = vunpack.c.l.s8.bf16 %v869
    %v1322 = vunpack.c.l.s8.bf16 %v870
    %v1323 = vunpack.c.l.s8.bf16 %v871
    %v1324 = vunpack.c.l.s8.bf16 %v872
    %v1325 = vunpack.c.l.s8.bf16 %v873
    %v1326 = vunpack.c.l.s8.bf16 %v874
    %v1327 = vunpack.c.l.s8.bf16 %v875
    %v1328 = vunpack.c.l.s8.bf16 %v876
    %v1329 = vunpack.c.l.s8.bf16 %v877
    %v1330 = vunpack.c.l.s8.bf16 %v878
    %v1331 = vunpack.c.l.s8.bf16 %v879
    %v1332 = vunpack.c.l.s8.bf16 %v880
    %v1333 = vunpack.c.l.s8.bf16 %v881
    %v1334 = vunpack.c.l.s8.bf16 %v882
    %v1335 = vunpack.c.l.s8.bf16 %v883
    %v1336 = vunpack.c.h.s8.bf16 %v868
    %v1337 = vunpack.c.h.s8.bf16 %v869
    %v1338 = vunpack.c.h.s8.bf16 %v870
    %v1339 = vunpack.c.h.s8.bf16 %v871
    %v1340 = vunpack.c.h.s8.bf16 %v872
    %v1341 = vunpack.c.h.s8.bf16 %v873
    %v1342 = vunpack.c.h.s8.bf16 %v874
    %v1343 = vunpack.c.h.s8.bf16 %v875
    %v1344 = vunpack.c.h.s8.bf16 %v876
    %v1345 = vunpack.c.h.s8.bf16 %v877
    %v1346 = vunpack.c.h.s8.bf16 %v878
    %v1347 = vunpack.c.h.s8.bf16 %v879
    %v1348 = vunpack.c.h.s8.bf16 %v880
    %v1349 = vunpack.c.h.s8.bf16 %v881
    %v1350 = vunpack.c.h.s8.bf16 %v882
    %v1351 = vunpack.c.h.s8.bf16 %v883
    %v1352 = vunpack.c.l.s8.bf16 %v884
    %v1353 = vunpack.c.l.s8.bf16 %v885
    %v1354 = vunpack.c.l.s8.bf16 %v886
    %v1355 = vunpack.c.l.s8.bf16 %v887
    %v1356 = vunpack.c.l.s8.bf16 %v888
    %v1357 = vunpack.c.l.s8.bf16 %v889
    %v1358 = vunpack.c.l.s8.bf16 %v890
    %v1359 = vunpack.c.l.s8.bf16 %v891
    %v1360 = vunpack.c.l.s8.bf16 %v892
    %v1361 = vunpack.c.l.s8.bf16 %v893
    %v1362 = vunpack.c.l.s8.bf16 %v894
    %v1363 = vunpack.c.l.s8.bf16 %v895
    %v1364 = vunpack.c.l.s8.bf16 %v896
    %v1365 = vunpack.c.l.s8.bf16 %v897
    %v1366 = vunpack.c.l.s8.bf16 %v898
    %v1367 = vunpack.c.l.s8.bf16 %v899
    %v1368 = vunpack.c.h.s8.bf16 %v884
    %v1369 = vunpack.c.h.s8.bf16 %v885
    %v1370 = vunpack.c.h.s8.bf16 %v886
    %v1371 = vunpack.c.h.s8.bf16 %v887
    %v1372 = vunpack.c.h.s8.bf16 %v888
    %v1373 = vunpack.c.h.s8.bf16 %v889
    %v1374 = vunpack.c.h.s8.bf16 %v890
    %v1375 = vunpack.c.h.s8.bf16 %v891
    %v1376 = vunpack.c.h.s8.bf16 %v892
    %v1377 = vunpack.c.h.s8.bf16 %v893
    %v1378 = vunpack.c.h.s8.bf16 %v894
    %v1379 = vunpack.c.h.s8.bf16 %v895
    %v1380 = vunpack.c.h.s8.bf16 %v896
    %v1381 = vunpack.c.h.s8.bf16 %v897
    %v1382 = vunpack.c.h.s8.bf16 %v898
    %v1383 = vunpack.c.h.s8.bf16 %v899
    %v1384 = vunpack.c.l.s8.bf16 %v900
    %v1385 = vunpack.c.l.s8.bf16 %v901
    %v1386 = vunpack.c.l.s8.bf16 %v902
    %v1387 = vunpack.c.l.s8.bf16 %v903
    %v1388 = vunpack.c.l.s8.bf16 %v904
    %v1389 = vunpack.c.l.s8.bf16 %v905
    %v1390 = vunpack.c.l.s8.bf16 %v906
    %v1391 = vunpack.c.l.s8.bf16 %v907
    %v1392 = vunpack.c.l.s8.bf16 %v908
    %v1393 = vunpack.c.l.s8.bf16 %v909
    %v1394 = vunpack.c.l.s8.bf16 %v910
    %v1395 = vunpack.c.l.s8.bf16 %v911
    %v1396 = vunpack.c.l.s8.bf16 %v912
    %v1397 = vunpack.c.l.s8.bf16 %v913
    %v1398 = vunpack.c.l.s8.bf16 %v914
    %v1399 = vunpack.c.l.s8.bf16 %v915
    %v1400 = vunpack.c.h.s8.bf16 %v900
    %v1401 = vunpack.c.h.s8.bf16 %v901
    %v1402 = vunpack.c.h.s8.bf16 %v902
    %v1403 = vunpack.c.h.s8.bf16 %v903
    %v1404 = vunpack.c.h.s8.bf16 %v904
    %v1405 = vunpack.c.h.s8.bf16 %v905
    %v1406 = vunpack.c.h.s8.bf16 %v906
    %v1407 = vunpack.c.h.s8.bf16 %v907
    %v1408 = vunpack.c.h.s8.bf16 %v908
    %v1409 = vunpack.c.h.s8.bf16 %v909
    %v1410 = vunpack.c.h.s8.bf16 %v910
    %v1411 = vunpack.c.h.s8.bf16 %v911
    %v1412 = vunpack.c.h.s8.bf16 %v912
    %v1413 = vunpack.c.h.s8.bf16 %v913
    %v1414 = vunpack.c.h.s8.bf16 %v914
    %v1415 = vunpack.c.h.s8.bf16 %v915
    %v1416 = vunpack.c.l.s8.bf16 %v916
    %v1417 = vunpack.c.l.s8.bf16 %v917
    %v1418 = vunpack.c.l.s8.bf16 %v918
    %v1419 = vunpack.c.l.s8.bf16 %v919
    %v1420 = vunpack.c.l.s8.bf16 %v920
    %v1421 = vunpack.c.l.s8.bf16 %v921
    %v1422 = vunpack.c.l.s8.bf16 %v922
    %v1423 = vunpack.c.l.s8.bf16 %v923
    %v1424 = vunpack.c.l.s8.bf16 %v924
    %v1425 = vunpack.c.l.s8.bf16 %v925
    %v1426 = vunpack.c.l.s8.bf16 %v926
    %v1427 = vunpack.c.l.s8.bf16 %v927
    %v1428 = vunpack.c.l.s8.bf16 %v928
    %v1429 = vunpack.c.l.s8.bf16 %v929
    %v1430 = vunpack.c.l.s8.bf16 %v930
    %v1431 = vunpack.c.l.s8.bf16 %v931
    %v1432 = vunpack.c.h.s8.bf16 %v916
    %v1433 = vunpack.c.h.s8.bf16 %v917
    %v1434 = vunpack.c.h.s8.bf16 %v918
    %v1435 = vunpack.c.h.s8.bf16 %v919
    %v1436 = vunpack.c.h.s8.bf16 %v920
    %v1437 = vunpack.c.h.s8.bf16 %v921
    %v1438 = vunpack.c.h.s8.bf16 %v922
    %v1439 = vunpack.c.h.s8.bf16 %v923
    %v1440 = vunpack.c.h.s8.bf16 %v924
    %v1441 = vunpack.c.h.s8.bf16 %v925
    %v1442 = vunpack.c.h.s8.bf16 %v926
    %v1443 = vunpack.c.h.s8.bf16 %v927
    %v1444 = vunpack.c.h.s8.bf16 %v928
    %v1445 = vunpack.c.h.s8.bf16 %v929
    %v1446 = vunpack.c.h.s8.bf16 %v930
    %v1447 = vunpack.c.h.s8.bf16 %v931
    %1448 = vmatprep.subr.bf16.mxu0 %v1049
    %1449 = vmatpush1.bf16.msra.mxu0 %v1048
    %1450 = vmatprep.subr.bf16.mxu0 %v1033
    %1451 = vmatpush1.bf16.msra.mxu0 %v1032
    %1452 = vmatprep.subr.bf16.mxu0 %v1017
    %1453 = vmatpush1.bf16.msra.mxu0 %v1016
    %1454 = vmatprep.subr.bf16.mxu0 %v1001
    %1455 = vmatpush1.bf16.msra.mxu0 %v1000
    %1456 = vmatprep.subr.bf16.mxu0 %v985
    %1457 = vmatpush1.bf16.msra.mxu0 %v984
    %1458 = vmatprep.subr.bf16.mxu0 %v969
    %1459 = vmatpush1.bf16.msra.mxu0 %v968
    %1460 = vmatprep.subr.bf16.mxu0 %v953
    %1461 = vmatpush1.bf16.msra.mxu0 %v952
    %1462 = vmatprep.subr.bf16.mxu0 %v937
    %1463 = vmatpush1.bf16.msra.mxu0 %v936
    %1464 = vmatprep.subr.bf16.mxu0 %v1177
    %1465 = vmatpush2.bf16.msra.mxu0 %v1176
    %1466 = vmatprep.subr.bf16.mxu0 %v1161
    %1467 = vmatpush2.bf16.msra.mxu0 %v1160
    %1468 = vmatprep.subr.bf16.mxu0 %v1145
    %1469 = vmatpush2.bf16.msra.mxu0 %v1144
    %1470 = vmatprep.subr.bf16.mxu0 %v1129
    %1471 = vmatpush2.bf16.msra.mxu0 %v1128
    %1472 = vmatprep.subr.bf16.mxu0 %v1113
    %1473 = vmatpush2.bf16.msra.mxu0 %v1112
    %1474 = vmatprep.subr.bf16.mxu0 %v1097
    %1475 = vmatpush2.bf16.msra.mxu0 %v1096
    %1476 = vmatprep.subr.bf16.mxu0 %v1081
    %1477 = vmatpush2.bf16.msra.mxu0 %v1080
    %1478 = vmatprep.subr.bf16.mxu0 %v1065
    %1479 = vmatpush2.bf16.msra.mxu0 %v1064
    %1480 = vmatprep.mubr.bf16.mxu0 %v669
    %1481 = vmatmul.mubr.bf16.gmra.mxu0 %v668
    %v1482 = vpop.f32.mrf.mxu0
    %v1483 = vadd.f32 0.0, %v1482
    %v1484 = vpop.f32.mrf.mxu0
    %v1485 = vadd.f32 0.0, %v1484
    %v1486 = vpop.f32.mrf.mxu0
    %v1487 = vadd.f32 0.0, %v1486
    %v1488 = vpop.f32.mrf.mxu0
    %v1489 = vadd.f32 0.0, %v1488
    %1490 = vdwg.mxu0
    %1491 = vmatprep.subr.bf16.mxu0 %v1305
    %1492 = vmatpush1.bf16.msra.mxu0 %v1304
    %1493 = vmatprep.subr.bf16.mxu0 %v1289
    %1494 = vmatpush1.bf16.msra.mxu0 %v1288
    %1495 = vmatprep.subr.bf16.mxu0 %v1273
    %1496 = vmatpush1.bf16.msra.mxu0 %v1272
    %1497 = vmatprep.subr.bf16.mxu0 %v1257
    %1498 = vmatpush1.bf16.msra.mxu0 %v1256
    %1499 = vmatprep.subr.bf16.mxu0 %v1241
    %1500 = vmatpush1.bf16.msra.mxu0 %v1240
    %1501 = vmatprep.subr.bf16.mxu0 %v1225
    %1502 = vmatpush1.bf16.msra.mxu0 %v1224
    %1503 = vmatprep.subr.bf16.mxu0 %v1209
    %1504 = vmatpush1.bf16.msra.mxu0 %v1208
    %1505 = vmatprep.subr.bf16.mxu0 %v1193
    %1506 = vmatpush1.bf16.msra.mxu0 %v1192
    %1507 = vmatprep.subr.bf16.mxu0 %v1433
    %1508 = vmatpush2.bf16.msra.mxu0 %v1432
    %1509 = vmatprep.subr.bf16.mxu0 %v1417
    %1510 = vmatpush2.bf16.msra.mxu0 %v1416
    %1511 = vmatprep.subr.bf16.mxu0 %v1401
    %1512 = vmatpush2.bf16.msra.mxu0 %v1400
    %1513 = vmatprep.subr.bf16.mxu0 %v1385
    %1514 = vmatpush2.bf16.msra.mxu0 %v1384
    %1515 = vmatprep.subr.bf16.mxu0 %v1369
    %1516 = vmatpush2.bf16.msra.mxu0 %v1368
    %1517 = vmatprep.subr.bf16.mxu0 %v1353
    %1518 = vmatpush2.bf16.msra.mxu0 %v1352
    %1519 = vmatprep.subr.bf16.mxu0 %v1337
    %1520 = vmatpush2.bf16.msra.mxu0 %v1336
    %1521 = vmatprep.subr.bf16.mxu0 %v1321
    %1522 = vmatpush2.bf16.msra.mxu0 %v1320
    %1523 = vmatprep.mubr.bf16.mxu0 %v671
    %1524 = vmatmul.mubr.bf16.gmra.mxu0 %v670
    %v1525 = vpop.f32.mrf.mxu0
    %v1526 = vadd.f32 %v1483, %v1525
    %v1527 = vpop.f32.mrf.mxu0
    %v1528 = vadd.f32 %v1485, %v1527
    %v1529 = vpop.f32.mrf.mxu0
    %v1530 = vadd.f32 %v1487, %v1529
    %v1531 = vpop.f32.mrf.mxu0
    %v1532 = vadd.f32 %v1489, %v1531
    %1533 = vdwg.mxu0
    %1534 = vmatprep.subr.bf16.mxu0 %v1051
    %1535 = vmatpush1.bf16.msra.mxu0 %v1050
    %1536 = vmatprep.subr.bf16.mxu0 %v1035
    %1537 = vmatpush1.bf16.msra.mxu0 %v1034
    %1538 = vmatprep.subr.bf16.mxu0 %v1019
    %1539 = vmatpush1.bf16.msra.mxu0 %v1018
    %1540 = vmatprep.subr.bf16.mxu0 %v1003
    %1541 = vmatpush1.bf16.msra.mxu0 %v1002
    %1542 = vmatprep.subr.bf16.mxu0 %v987
    %1543 = vmatpush1.bf16.msra.mxu0 %v986
    %1544 = vmatprep.subr.bf16.mxu0 %v971
    %1545 = vmatpush1.bf16.msra.mxu0 %v970
    %1546 = vmatprep.subr.bf16.mxu0 %v955
    %1547 = vmatpush1.bf16.msra.mxu0 %v954
    %1548 = vmatprep.subr.bf16.mxu0 %v939
    %1549 = vmatpush1.bf16.msra.mxu0 %v938
    %1550 = vmatprep.subr.bf16.mxu0 %v1179
    %1551 = vmatpush2.bf16.msra.mxu0 %v1178
    %1552 = vmatprep.subr.bf16.mxu0 %v1163
    %1553 = vmatpush2.bf16.msra.mxu0 %v1162
    %1554 = vmatprep.subr.bf16.mxu0 %v1147
    %1555 = vmatpush2.bf16.msra.mxu0 %v1146
    %1556 = vmatprep.subr.bf16.mxu0 %v1131
    %1557 = vmatpush2.bf16.msra.mxu0 %v1130
    %1558 = vmatprep.subr.bf16.mxu0 %v1115
    %1559 = vmatpush2.bf16.msra.mxu0 %v1114
    %1560 = vmatprep.subr.bf16.mxu0 %v1099
    %1561 = vmatpush2.bf16.msra.mxu0 %v1098
    %1562 = vmatprep.subr.bf16.mxu0 %v1083
    %1563 = vmatpush2.bf16.msra.mxu0 %v1082
    %1564 = vmatprep.subr.bf16.mxu0 %v1067
    %1565 = vmatpush2.bf16.msra.mxu0 %v1066
    %1566 = vmatprep.mubr.bf16.mxu0 %v669
    %1567 = vmatmul.mubr.bf16.gmra.mxu0 %v668
    %v1568 = vpop.f32.mrf.mxu0
    %v1569 = vadd.f32 0.0, %v1568
    %v1570 = vpop.f32.mrf.mxu0
    %v1571 = vadd.f32 0.0, %v1570
    %v1572 = vpop.f32.mrf.mxu0
    %v1573 = vadd.f32 0.0, %v1572
    %v1574 = vpop.f32.mrf.mxu0
    %v1575 = vadd.f32 0.0, %v1574
    %1576 = vdwg.mxu0
    %1577 = vmatprep.subr.bf16.mxu0 %v1307
    %1578 = vmatpush1.bf16.msra.mxu0 %v1306
    %1579 = vmatprep.subr.bf16.mxu0 %v1291
    %1580 = vmatpush1.bf16.msra.mxu0 %v1290
    %1581 = vmatprep.subr.bf16.mxu0 %v1275
    %1582 = vmatpush1.bf16.msra.mxu0 %v1274
    %1583 = vmatprep.subr.bf16.mxu0 %v1259
    %1584 = vmatpush1.bf16.msra.mxu0 %v1258
    %1585 = vmatprep.subr.bf16.mxu0 %v1243
    %1586 = vmatpush1.bf16.msra.mxu0 %v1242
    %1587 = vmatprep.subr.bf16.mxu0 %v1227
    %1588 = vmatpush1.bf16.msra.mxu0 %v1226
    %1589 = vmatprep.subr.bf16.mxu0 %v1211
    %1590 = vmatpush1.bf16.msra.mxu0 %v1210
    %1591 = vmatprep.subr.bf16.mxu0 %v1195
    %1592 = vmatpush1.bf16.msra.mxu0 %v1194
    %1593 = vmatprep.subr.bf16.mxu0 %v1435
    %1594 = vmatpush2.bf16.msra.mxu0 %v1434
    %1595 = vmatprep.subr.bf16.mxu0 %v1419
    %1596 = vmatpush2.bf16.msra.mxu0 %v1418
    %1597 = vmatprep.subr.bf16.mxu0 %v1403
    %1598 = vmatpush2.bf16.msra.mxu0 %v1402
    %1599 = vmatprep.subr.bf16.mxu0 %v1387
    %1600 = vmatpush2.bf16.msra.mxu0 %v1386
    %1601 = vmatprep.subr.bf16.mxu0 %v1371
    %1602 = vmatpush2.bf16.msra.mxu0 %v1370
    %1603 = vmatprep.subr.bf16.mxu0 %v1355
    %1604 = vmatpush2.bf16.msra.mxu0 %v1354
    %1605 = vmatprep.subr.bf16.mxu0 %v1339
    %1606 = vmatpush2.bf16.msra.mxu0 %v1338
    %1607 = vmatprep.subr.bf16.mxu0 %v1323
    %1608 = vmatpush2.bf16.msra.mxu0 %v1322
    %1609 = vmatprep.mubr.bf16.mxu0 %v671
    %1610 = vmatmul.mubr.bf16.gmra.mxu0 %v670
    %v1611 = vpop.f32.mrf.mxu0
    %v1612 = vadd.f32 %v1569, %v1611
    %v1613 = vpop.f32.mrf.mxu0
    %v1614 = vadd.f32 %v1571, %v1613
    %v1615 = vpop.f32.mrf.mxu0
    %v1616 = vadd.f32 %v1573, %v1615
    %v1617 = vpop.f32.mrf.mxu0
    %v1618 = vadd.f32 %v1575, %v1617
    %1619 = vdwg.mxu0
    %1620 = vmatprep.subr.bf16.mxu0 %v1053
    %1621 = vmatpush1.bf16.msra.mxu0 %v1052
    %1622 = vmatprep.subr.bf16.mxu0 %v1037
    %1623 = vmatpush1.bf16.msra.mxu0 %v1036
    %1624 = vmatprep.subr.bf16.mxu0 %v1021
    %1625 = vmatpush1.bf16.msra.mxu0 %v1020
    %1626 = vmatprep.subr.bf16.mxu0 %v1005
    %1627 = vmatpush1.bf16.msra.mxu0 %v1004
    %1628 = vmatprep.subr.bf16.mxu0 %v989
    %1629 = vmatpush1.bf16.msra.mxu0 %v988
    %1630 = vmatprep.subr.bf16.mxu0 %v973
    %1631 = vmatpush1.bf16.msra.mxu0 %v972
    %1632 = vmatprep.subr.bf16.mxu0 %v957
    %1633 = vmatpush1.bf16.msra.mxu0 %v956
    %1634 = vmatprep.subr.bf16.mxu0 %v941
    %1635 = vmatpush1.bf16.msra.mxu0 %v940
    %1636 = vmatprep.subr.bf16.mxu0 %v1181
    %1637 = vmatpush2.bf16.msra.mxu0 %v1180
    %1638 = vmatprep.subr.bf16.mxu0 %v1165
    %1639 = vmatpush2.bf16.msra.mxu0 %v1164
    %1640 = vmatprep.subr.bf16.mxu0 %v1149
    %1641 = vmatpush2.bf16.msra.mxu0 %v1148
    %1642 = vmatprep.subr.bf16.mxu0 %v1133
    %1643 = vmatpush2.bf16.msra.mxu0 %v1132
    %1644 = vmatprep.subr.bf16.mxu0 %v1117
    %1645 = vmatpush2.bf16.msra.mxu0 %v1116
    %1646 = vmatprep.subr.bf16.mxu0 %v1101
    %1647 = vmatpush2.bf16.msra.mxu0 %v1100
    %1648 = vmatprep.subr.bf16.mxu0 %v1085
    %1649 = vmatpush2.bf16.msra.mxu0 %v1084
    %1650 = vmatprep.subr.bf16.mxu0 %v1069
    %1651 = vmatpush2.bf16.msra.mxu0 %v1068
    %1652 = vmatprep.mubr.bf16.mxu0 %v669
    %1653 = vmatmul.mubr.bf16.gmra.mxu0 %v668
    %v1654 = vpop.f32.mrf.mxu0
    %v1655 = vadd.f32 0.0, %v1654
    %v1656 = vpop.f32.mrf.mxu0
    %v1657 = vadd.f32 0.0, %v1656
    %v1658 = vpop.f32.mrf.mxu0
    %v1659 = vadd.f32 0.0, %v1658
    %v1660 = vpop.f32.mrf.mxu0
    %v1661 = vadd.f32 0.0, %v1660
    %1662 = vdwg.mxu0
    %1663 = vmatprep.subr.bf16.mxu0 %v1309
    %1664 = vmatpush1.bf16.msra.mxu0 %v1308
    %1665 = vmatprep.subr.bf16.mxu0 %v1293
    %1666 = vmatpush1.bf16.msra.mxu0 %v1292
    %1667 = vmatprep.subr.bf16.mxu0 %v1277
    %1668 = vmatpush1.bf16.msra.mxu0 %v1276
    %1669 = vmatprep.subr.bf16.mxu0 %v1261
    %1670 = vmatpush1.bf16.msra.mxu0 %v1260
    %1671 = vmatprep.subr.bf16.mxu0 %v1245
    %1672 = vmatpush1.bf16.msra.mxu0 %v1244
    %1673 = vmatprep.subr.bf16.mxu0 %v1229
    %1674 = vmatpush1.bf16.msra.mxu0 %v1228
    %1675 = vmatprep.subr.bf16.mxu0 %v1213
    %1676 = vmatpush1.bf16.msra.mxu0 %v1212
    %1677 = vmatprep.subr.bf16.mxu0 %v1197
    %1678 = vmatpush1.bf16.msra.mxu0 %v1196
    %1679 = vmatprep.subr.bf16.mxu0 %v1437
    %1680 = vmatpush2.bf16.msra.mxu0 %v1436
    %1681 = vmatprep.subr.bf16.mxu0 %v1421
    %1682 = vmatpush2.bf16.msra.mxu0 %v1420
    %1683 = vmatprep.subr.bf16.mxu0 %v1405
    %1684 = vmatpush2.bf16.msra.mxu0 %v1404
    %1685 = vmatprep.subr.bf16.mxu0 %v1389
    %1686 = vmatpush2.bf16.msra.mxu0 %v1388
    %1687 = vmatprep.subr.bf16.mxu0 %v1373
    %1688 = vmatpush2.bf16.msra.mxu0 %v1372
    %1689 = vmatprep.subr.bf16.mxu0 %v1357
    %1690 = vmatpush2.bf16.msra.mxu0 %v1356
    %1691 = vmatprep.subr.bf16.mxu0 %v1341
    %1692 = vmatpush2.bf16.msra.mxu0 %v1340
    %1693 = vmatprep.subr.bf16.mxu0 %v1325
    %1694 = vmatpush2.bf16.msra.mxu0 %v1324
    %1695 = vmatprep.mubr.bf16.mxu0 %v671
    %1696 = vmatmul.mubr.bf16.gmra.mxu0 %v670
    %v1697 = vpop.f32.mrf.mxu0
    %v1698 = vadd.f32 %v1655, %v1697
    %v1699 = vpop.f32.mrf.mxu0
    %v1700 = vadd.f32 %v1657, %v1699
    %v1701 = vpop.f32.mrf.mxu0
    %v1702 = vadd.f32 %v1659, %v1701
    %v1703 = vpop.f32.mrf.mxu0
    %v1704 = vadd.f32 %v1661, %v1703
    %1705 = vdwg.mxu0
    %1706 = vmatprep.subr.bf16.mxu0 %v1055
    %1707 = vmatpush1.bf16.msra.mxu0 %v1054
    %1708 = vmatprep.subr.bf16.mxu0 %v1039
    %1709 = vmatpush1.bf16.msra.mxu0 %v1038
    %1710 = vmatprep.subr.bf16.mxu0 %v1023
    %1711 = vmatpush1.bf16.msra.mxu0 %v1022
    %1712 = vmatprep.subr.bf16.mxu0 %v1007
    %1713 = vmatpush1.bf16.msra.mxu0 %v1006
    %1714 = vmatprep.subr.bf16.mxu0 %v991
    %1715 = vmatpush1.bf16.msra.mxu0 %v990
    %1716 = vmatprep.subr.bf16.mxu0 %v975
    %1717 = vmatpush1.bf16.msra.mxu0 %v974
    %1718 = vmatprep.subr.bf16.mxu0 %v959
    %1719 = vmatpush1.bf16.msra.mxu0 %v958
    %1720 = vmatprep.subr.bf16.mxu0 %v943
    %1721 = vmatpush1.bf16.msra.mxu0 %v942
    %1722 = vmatprep.subr.bf16.mxu0 %v1183
    %1723 = vmatpush2.bf16.msra.mxu0 %v1182
    %1724 = vmatprep.subr.bf16.mxu0 %v1167
    %1725 = vmatpush2.bf16.msra.mxu0 %v1166
    %1726 = vmatprep.subr.bf16.mxu0 %v1151
    %1727 = vmatpush2.bf16.msra.mxu0 %v1150
    %1728 = vmatprep.subr.bf16.mxu0 %v1135
    %1729 = vmatpush2.bf16.msra.mxu0 %v1134
    %1730 = vmatprep.subr.bf16.mxu0 %v1119
    %1731 = vmatpush2.bf16.msra.mxu0 %v1118
    %1732 = vmatprep.subr.bf16.mxu0 %v1103
    %1733 = vmatpush2.bf16.msra.mxu0 %v1102
    %1734 = vmatprep.subr.bf16.mxu0 %v1087
    %1735 = vmatpush2.bf16.msra.mxu0 %v1086
    %1736 = vmatprep.subr.bf16.mxu0 %v1071
    %1737 = vmatpush2.bf16.msra.mxu0 %v1070
    %1738 = vmatprep.mubr.bf16.mxu0 %v669
    %1739 = vmatmul.mubr.bf16.gmra.mxu0 %v668
    %v1740 = vpop.f32.mrf.mxu0
    %v1741 = vadd.f32 0.0, %v1740
    %v1742 = vpop.f32.mrf.mxu0
    %v1743 = vadd.f32 0.0, %v1742
    %v1744 = vpop.f32.mrf.mxu0
    %v1745 = vadd.f32 0.0, %v1744
    %v1746 = vpop.f32.mrf.mxu0
    %v1747 = vadd.f32 0.0, %v1746
    %1748 = vdwg.mxu0
    %1749 = vmatprep.subr.bf16.mxu0 %v1311
    %1750 = vmatpush1.bf16.msra.mxu0 %v1310
    %1751 = vmatprep.subr.bf16.mxu0 %v1295
    %1752 = vmatpush1.bf16.msra.mxu0 %v1294
    %1753 = vmatprep.subr.bf16.mxu0 %v1279
    %1754 = vmatpush1.bf16.msra.mxu0 %v1278
    %1755 = vmatprep.subr.bf16.mxu0 %v1263
    %1756 = vmatpush1.bf16.msra.mxu0 %v1262
    %1757 = vmatprep.subr.bf16.mxu0 %v1247
    %1758 = vmatpush1.bf16.msra.mxu0 %v1246
    %1759 = vmatprep.subr.bf16.mxu0 %v1231
    %1760 = vmatpush1.bf16.msra.mxu0 %v1230
    %1761 = vmatprep.subr.bf16.mxu0 %v1215
    %1762 = vmatpush1.bf16.msra.mxu0 %v1214
    %1763 = vmatprep.subr.bf16.mxu0 %v1199
    %1764 = vmatpush1.bf16.msra.mxu0 %v1198
    %1765 = vmatprep.subr.bf16.mxu0 %v1439
    %1766 = vmatpush2.bf16.msra.mxu0 %v1438
    %1767 = vmatprep.subr.bf16.mxu0 %v1423
    %1768 = vmatpush2.bf16.msra.mxu0 %v1422
    %1769 = vmatprep.subr.bf16.mxu0 %v1407
    %1770 = vmatpush2.bf16.msra.mxu0 %v1406
    %1771 = vmatprep.subr.bf16.mxu0 %v1391
    %1772 = vmatpush2.bf16.msra.mxu0 %v1390
    %1773 = vmatprep.subr.bf16.mxu0 %v1375
    %1774 = vmatpush2.bf16.msra.mxu0 %v1374
    %1775 = vmatprep.subr.bf16.mxu0 %v1359
    %1776 = vmatpush2.bf16.msra.mxu0 %v1358
    %1777 = vmatprep.subr.bf16.mxu0 %v1343
    %1778 = vmatpush2.bf16.msra.mxu0 %v1342
    %1779 = vmatprep.subr.bf16.mxu0 %v1327
    %1780 = vmatpush2.bf16.msra.mxu0 %v1326
    %1781 = vmatprep.mubr.bf16.mxu0 %v671
    %1782 = vmatmul.mubr.bf16.gmra.mxu0 %v670
    %v1783 = vpop.f32.mrf.mxu0
    %v1784 = vadd.f32 %v1741, %v1783
    %v1785 = vpop.f32.mrf.mxu0
    %v1786 = vadd.f32 %v1743, %v1785
    %v1787 = vpop.f32.mrf.mxu0
    %v1788 = vadd.f32 %v1745, %v1787
    %v1789 = vpop.f32.mrf.mxu0
    %v1790 = vadd.f32 %v1747, %v1789
    %1791 = vdwg.mxu0
    %1792 = vmatprep.subr.bf16.mxu0 %v1057
    %1793 = vmatpush1.bf16.msra.mxu0 %v1056
    %1794 = vmatprep.subr.bf16.mxu0 %v1041
    %1795 = vmatpush1.bf16.msra.mxu0 %v1040
    %1796 = vmatprep.subr.bf16.mxu0 %v1025
    %1797 = vmatpush1.bf16.msra.mxu0 %v1024
    %1798 = vmatprep.subr.bf16.mxu0 %v1009
    %1799 = vmatpush1.bf16.msra.mxu0 %v1008
    %1800 = vmatprep.subr.bf16.mxu0 %v993
    %1801 = vmatpush1.bf16.msra.mxu0 %v992
    %1802 = vmatprep.subr.bf16.mxu0 %v977
    %1803 = vmatpush1.bf16.msra.mxu0 %v976
    %1804 = vmatprep.subr.bf16.mxu0 %v961
    %1805 = vmatpush1.bf16.msra.mxu0 %v960
    %1806 = vmatprep.subr.bf16.mxu0 %v945
    %1807 = vmatpush1.bf16.msra.mxu0 %v944
    %1808 = vmatprep.subr.bf16.mxu0 %v1185
    %1809 = vmatpush2.bf16.msra.mxu0 %v1184
    %1810 = vmatprep.subr.bf16.mxu0 %v1169
    %1811 = vmatpush2.bf16.msra.mxu0 %v1168
    %1812 = vmatprep.subr.bf16.mxu0 %v1153
    %1813 = vmatpush2.bf16.msra.mxu0 %v1152
    %1814 = vmatprep.subr.bf16.mxu0 %v1137
    %1815 = vmatpush2.bf16.msra.mxu0 %v1136
    %1816 = vmatprep.subr.bf16.mxu0 %v1121
    %1817 = vmatpush2.bf16.msra.mxu0 %v1120
    %1818 = vmatprep.subr.bf16.mxu0 %v1105
    %1819 = vmatpush2.bf16.msra.mxu0 %v1104
    %1820 = vmatprep.subr.bf16.mxu0 %v1089
    %1821 = vmatpush2.bf16.msra.mxu0 %v1088
    %1822 = vmatprep.subr.bf16.mxu0 %v1073
    %1823 = vmatpush2.bf16.msra.mxu0 %v1072
    %1824 = vmatprep.mubr.bf16.mxu0 %v669
    %1825 = vmatmul.mubr.bf16.gmra.mxu0 %v668
    %v1826 = vpop.f32.mrf.mxu0
    %v1827 = vadd.f32 0.0, %v1826
    %v1828 = vpop.f32.mrf.mxu0
    %v1829 = vadd.f32 0.0, %v1828
    %v1830 = vpop.f32.mrf.mxu0
    %v1831 = vadd.f32 0.0, %v1830
    %v1832 = vpop.f32.mrf.mxu0
    %v1833 = vadd.f32 0.0, %v1832
    %1834 = vdwg.mxu0
    %1835 = vmatprep.subr.bf16.mxu0 %v1313
    %1836 = vmatpush1.bf16.msra.mxu0 %v1312
    %1837 = vmatprep.subr.bf16.mxu0 %v1297
    %1838 = vmatpush1.bf16.msra.mxu0 %v1296
    %1839 = vmatprep.subr.bf16.mxu0 %v1281
    %1840 = vmatpush1.bf16.msra.mxu0 %v1280
    %1841 = vmatprep.subr.bf16.mxu0 %v1265
    %1842 = vmatpush1.bf16.msra.mxu0 %v1264
    %1843 = vmatprep.subr.bf16.mxu0 %v1249
    %1844 = vmatpush1.bf16.msra.mxu0 %v1248
    %1845 = vmatprep.subr.bf16.mxu0 %v1233
    %1846 = vmatpush1.bf16.msra.mxu0 %v1232
    %1847 = vmatprep.subr.bf16.mxu0 %v1217
    %1848 = vmatpush1.bf16.msra.mxu0 %v1216
    %1849 = vmatprep.subr.bf16.mxu0 %v1201
    %1850 = vmatpush1.bf16.msra.mxu0 %v1200
    %1851 = vmatprep.subr.bf16.mxu0 %v1441
    %1852 = vmatpush2.bf16.msra.mxu0 %v1440
    %1853 = vmatprep.subr.bf16.mxu0 %v1425
    %1854 = vmatpush2.bf16.msra.mxu0 %v1424
    %1855 = vmatprep.subr.bf16.mxu0 %v1409
    %1856 = vmatpush2.bf16.msra.mxu0 %v1408
    %1857 = vmatprep.subr.bf16.mxu0 %v1393
    %1858 = vmatpush2.bf16.msra.mxu0 %v1392
    %1859 = vmatprep.subr.bf16.mxu0 %v1377
    %1860 = vmatpush2.bf16.msra.mxu0 %v1376
    %1861 = vmatprep.subr.bf16.mxu0 %v1361
    %1862 = vmatpush2.bf16.msra.mxu0 %v1360
    %1863 = vmatprep.subr.bf16.mxu0 %v1345
    %1864 = vmatpush2.bf16.msra.mxu0 %v1344
    %1865 = vmatprep.subr.bf16.mxu0 %v1329
    %1866 = vmatpush2.bf16.msra.mxu0 %v1328
    %1867 = vmatprep.mubr.bf16.mxu0 %v671
    %1868 = vmatmul.mubr.bf16.gmra.mxu0 %v670
    %v1869 = vpop.f32.mrf.mxu0
    %v1870 = vadd.f32 %v1827, %v1869
    %v1871 = vpop.f32.mrf.mxu0
    %v1872 = vadd.f32 %v1829, %v1871
    %v1873 = vpop.f32.mrf.mxu0
    %v1874 = vadd.f32 %v1831, %v1873
    %v1875 = vpop.f32.mrf.mxu0
    %v1876 = vadd.f32 %v1833, %v1875
    %1877 = vdwg.mxu0
    %1878 = vmatprep.subr.bf16.mxu0 %v1059
    %1879 = vmatpush1.bf16.msra.mxu0 %v1058
    %1880 = vmatprep.subr.bf16.mxu0 %v1043
    %1881 = vmatpush1.bf16.msra.mxu0 %v1042
    %1882 = vmatprep.subr.bf16.mxu0 %v1027
    %1883 = vmatpush1.bf16.msra.mxu0 %v1026
    %1884 = vmatprep.subr.bf16.mxu0 %v1011
    %1885 = vmatpush1.bf16.msra.mxu0 %v1010
    %1886 = vmatprep.subr.bf16.mxu0 %v995
    %1887 = vmatpush1.bf16.msra.mxu0 %v994
    %1888 = vmatprep.subr.bf16.mxu0 %v979
    %1889 = vmatpush1.bf16.msra.mxu0 %v978
    %1890 = vmatprep.subr.bf16.mxu0 %v963
    %1891 = vmatpush1.bf16.msra.mxu0 %v962
    %1892 = vmatprep.subr.bf16.mxu0 %v947
    %1893 = vmatpush1.bf16.msra.mxu0 %v946
    %1894 = vmatprep.subr.bf16.mxu0 %v1187
    %1895 = vmatpush2.bf16.msra.mxu0 %v1186
    %1896 = vmatprep.subr.bf16.mxu0 %v1171
    %1897 = vmatpush2.bf16.msra.mxu0 %v1170
    %1898 = vmatprep.subr.bf16.mxu0 %v1155
    %1899 = vmatpush2.bf16.msra.mxu0 %v1154
    %1900 = vmatprep.subr.bf16.mxu0 %v1139
    %1901 = vmatpush2.bf16.msra.mxu0 %v1138
    %1902 = vmatprep.subr.bf16.mxu0 %v1123
    %1903 = vmatpush2.bf16.msra.mxu0 %v1122
    %1904 = vmatprep.subr.bf16.mxu0 %v1107
    %1905 = vmatpush2.bf16.msra.mxu0 %v1106
    %1906 = vmatprep.subr.bf16.mxu0 %v1091
    %1907 = vmatpush2.bf16.msra.mxu0 %v1090
    %1908 = vmatprep.subr.bf16.mxu0 %v1075
    %1909 = vmatpush2.bf16.msra.mxu0 %v1074
    %1910 = vmatprep.mubr.bf16.mxu0 %v669
    %1911 = vmatmul.mubr.bf16.gmra.mxu0 %v668
    %v1912 = vpop.f32.mrf.mxu0
    %v1913 = vadd.f32 0.0, %v1912
    %v1914 = vpop.f32.mrf.mxu0
    %v1915 = vadd.f32 0.0, %v1914
    %v1916 = vpop.f32.mrf.mxu0
    %v1917 = vadd.f32 0.0, %v1916
    %v1918 = vpop.f32.mrf.mxu0
    %v1919 = vadd.f32 0.0, %v1918
    %1920 = vdwg.mxu0
    %1921 = vmatprep.subr.bf16.mxu0 %v1315
    %1922 = vmatpush1.bf16.msra.mxu0 %v1314
    %1923 = vmatprep.subr.bf16.mxu0 %v1299
    %1924 = vmatpush1.bf16.msra.mxu0 %v1298
    %1925 = vmatprep.subr.bf16.mxu0 %v1283
    %1926 = vmatpush1.bf16.msra.mxu0 %v1282
    %1927 = vmatprep.subr.bf16.mxu0 %v1267
    %1928 = vmatpush1.bf16.msra.mxu0 %v1266
    %1929 = vmatprep.subr.bf16.mxu0 %v1251
    %1930 = vmatpush1.bf16.msra.mxu0 %v1250
    %1931 = vmatprep.subr.bf16.mxu0 %v1235
    %1932 = vmatpush1.bf16.msra.mxu0 %v1234
    %1933 = vmatprep.subr.bf16.mxu0 %v1219
    %1934 = vmatpush1.bf16.msra.mxu0 %v1218
    %1935 = vmatprep.subr.bf16.mxu0 %v1203
    %1936 = vmatpush1.bf16.msra.mxu0 %v1202
    %1937 = vmatprep.subr.bf16.mxu0 %v1443
    %1938 = vmatpush2.bf16.msra.mxu0 %v1442
    %1939 = vmatprep.subr.bf16.mxu0 %v1427
    %1940 = vmatpush2.bf16.msra.mxu0 %v1426
    %1941 = vmatprep.subr.bf16.mxu0 %v1411
    %1942 = vmatpush2.bf16.msra.mxu0 %v1410
    %1943 = vmatprep.subr.bf16.mxu0 %v1395
    %1944 = vmatpush2.bf16.msra.mxu0 %v1394
    %1945 = vmatprep.subr.bf16.mxu0 %v1379
    %1946 = vmatpush2.bf16.msra.mxu0 %v1378
    %1947 = vmatprep.subr.bf16.mxu0 %v1363
    %1948 = vmatpush2.bf16.msra.mxu0 %v1362
    %1949 = vmatprep.subr.bf16.mxu0 %v1347
    %1950 = vmatpush2.bf16.msra.mxu0 %v1346
    %1951 = vmatprep.subr.bf16.mxu0 %v1331
    %1952 = vmatpush2.bf16.msra.mxu0 %v1330
    %1953 = vmatprep.mubr.bf16.mxu0 %v671
    %1954 = vmatmul.mubr.bf16.gmra.mxu0 %v670
    %v1955 = vpop.f32.mrf.mxu0
    %v1956 = vadd.f32 %v1913, %v1955
    %v1957 = vpop.f32.mrf.mxu0
    %v1958 = vadd.f32 %v1915, %v1957
    %v1959 = vpop.f32.mrf.mxu0
    %v1960 = vadd.f32 %v1917, %v1959
    %v1961 = vpop.f32.mrf.mxu0
    %v1962 = vadd.f32 %v1919, %v1961
    %1963 = vdwg.mxu0
    %1964 = vmatprep.subr.bf16.mxu0 %v1061
    %1965 = vmatpush1.bf16.msra.mxu0 %v1060
    %1966 = vmatprep.subr.bf16.mxu0 %v1045
    %1967 = vmatpush1.bf16.msra.mxu0 %v1044
    %1968 = vmatprep.subr.bf16.mxu0 %v1029
    %1969 = vmatpush1.bf16.msra.mxu0 %v1028
    %1970 = vmatprep.subr.bf16.mxu0 %v1013
    %1971 = vmatpush1.bf16.msra.mxu0 %v1012
    %1972 = vmatprep.subr.bf16.mxu0 %v997
    %1973 = vmatpush1.bf16.msra.mxu0 %v996
    %1974 = vmatprep.subr.bf16.mxu0 %v981
    %1975 = vmatpush1.bf16.msra.mxu0 %v980
    %1976 = vmatprep.subr.bf16.mxu0 %v965
    %1977 = vmatpush1.bf16.msra.mxu0 %v964
    %1978 = vmatprep.subr.bf16.mxu0 %v949
    %1979 = vmatpush1.bf16.msra.mxu0 %v948
    %1980 = vmatprep.subr.bf16.mxu0 %v1189
    %1981 = vmatpush2.bf16.msra.mxu0 %v1188
    %1982 = vmatprep.subr.bf16.mxu0 %v1173
    %1983 = vmatpush2.bf16.msra.mxu0 %v1172
    %1984 = vmatprep.subr.bf16.mxu0 %v1157
    %1985 = vmatpush2.bf16.msra.mxu0 %v1156
    %1986 = vmatprep.subr.bf16.mxu0 %v1141
    %1987 = vmatpush2.bf16.msra.mxu0 %v1140
    %1988 = vmatprep.subr.bf16.mxu0 %v1125
    %1989 = vmatpush2.bf16.msra.mxu0 %v1124
    %1990 = vmatprep.subr.bf16.mxu0 %v1109
    %1991 = vmatpush2.bf16.msra.mxu0 %v1108
    %1992 = vmatprep.subr.bf16.mxu0 %v1093
    %1993 = vmatpush2.bf16.msra.mxu0 %v1092
    %1994 = vmatprep.subr.bf16.mxu0 %v1077
    %1995 = vmatpush2.bf16.msra.mxu0 %v1076
    %1996 = vmatprep.mubr.bf16.mxu0 %v669
    %1997 = vmatmul.mubr.bf16.gmra.mxu0 %v668
    %v1998 = vpop.f32.mrf.mxu0
    %v1999 = vadd.f32 0.0, %v1998
    %v2000 = vpop.f32.mrf.mxu0
    %v2001 = vadd.f32 0.0, %v2000
    %v2002 = vpop.f32.mrf.mxu0
    %v2003 = vadd.f32 0.0, %v2002
    %v2004 = vpop.f32.mrf.mxu0
    %v2005 = vadd.f32 0.0, %v2004
    %2006 = vdwg.mxu0
    %2007 = vmatprep.subr.bf16.mxu0 %v1317
    %2008 = vmatpush1.bf16.msra.mxu0 %v1316
    %2009 = vmatprep.subr.bf16.mxu0 %v1301
    %2010 = vmatpush1.bf16.msra.mxu0 %v1300
    %2011 = vmatprep.subr.bf16.mxu0 %v1285
    %2012 = vmatpush1.bf16.msra.mxu0 %v1284
    %2013 = vmatprep.subr.bf16.mxu0 %v1269
    %2014 = vmatpush1.bf16.msra.mxu0 %v1268
    %2015 = vmatprep.subr.bf16.mxu0 %v1253
    %2016 = vmatpush1.bf16.msra.mxu0 %v1252
    %2017 = vmatprep.subr.bf16.mxu0 %v1237
    %2018 = vmatpush1.bf16.msra.mxu0 %v1236
    %2019 = vmatprep.subr.bf16.mxu0 %v1221
    %2020 = vmatpush1.bf16.msra.mxu0 %v1220
    %2021 = vmatprep.subr.bf16.mxu0 %v1205
    %2022 = vmatpush1.bf16.msra.mxu0 %v1204
    %2023 = vmatprep.subr.bf16.mxu0 %v1445
    %2024 = vmatpush2.bf16.msra.mxu0 %v1444
    %2025 = vmatprep.subr.bf16.mxu0 %v1429
    %2026 = vmatpush2.bf16.msra.mxu0 %v1428
    %2027 = vmatprep.subr.bf16.mxu0 %v1413
    %2028 = vmatpush2.bf16.msra.mxu0 %v1412
    %2029 = vmatprep.subr.bf16.mxu0 %v1397
    %2030 = vmatpush2.bf16.msra.mxu0 %v1396
    %2031 = vmatprep.subr.bf16.mxu0 %v1381
    %2032 = vmatpush2.bf16.msra.mxu0 %v1380
    %2033 = vmatprep.subr.bf16.mxu0 %v1365
    %2034 = vmatpush2.bf16.msra.mxu0 %v1364
    %2035 = vmatprep.subr.bf16.mxu0 %v1349
    %2036 = vmatpush2.bf16.msra.mxu0 %v1348
    %2037 = vmatprep.subr.bf16.mxu0 %v1333
    %2038 = vmatpush2.bf16.msra.mxu0 %v1332
    %2039 = vmatprep.mubr.bf16.mxu0 %v671
    %2040 = vmatmul.mubr.bf16.gmra.mxu0 %v670
    %v2041 = vpop.f32.mrf.mxu0
    %v2042 = vadd.f32 %v1999, %v2041
    %v2043 = vpop.f32.mrf.mxu0
    %v2044 = vadd.f32 %v2001, %v2043
    %v2045 = vpop.f32.mrf.mxu0
    %v2046 = vadd.f32 %v2003, %v2045
    %v2047 = vpop.f32.mrf.mxu0
    %v2048 = vadd.f32 %v2005, %v2047
    %2049 = vdwg.mxu0
    %2050 = vmatprep.subr.bf16.mxu0 %v1063
    %2051 = vmatpush1.bf16.msra.mxu0 %v1062
    %2052 = vmatprep.subr.bf16.mxu0 %v1047
    %2053 = vmatpush1.bf16.msra.mxu0 %v1046
    %2054 = vmatprep.subr.bf16.mxu0 %v1031
    %2055 = vmatpush1.bf16.msra.mxu0 %v1030
    %2056 = vmatprep.subr.bf16.mxu0 %v1015
    %2057 = vmatpush1.bf16.msra.mxu0 %v1014
    %2058 = vmatprep.subr.bf16.mxu0 %v999
    %2059 = vmatpush1.bf16.msra.mxu0 %v998
    %2060 = vmatprep.subr.bf16.mxu0 %v983
    %2061 = vmatpush1.bf16.msra.mxu0 %v982
    %2062 = vmatprep.subr.bf16.mxu0 %v967
    %2063 = vmatpush1.bf16.msra.mxu0 %v966
    %2064 = vmatprep.subr.bf16.mxu0 %v951
    %2065 = vmatpush1.bf16.msra.mxu0 %v950
    %2066 = vmatprep.subr.bf16.mxu0 %v1191
    %2067 = vmatpush2.bf16.msra.mxu0 %v1190
    %2068 = vmatprep.subr.bf16.mxu0 %v1175
    %2069 = vmatpush2.bf16.msra.mxu0 %v1174
    %2070 = vmatprep.subr.bf16.mxu0 %v1159
    %2071 = vmatpush2.bf16.msra.mxu0 %v1158
    %2072 = vmatprep.subr.bf16.mxu0 %v1143
    %2073 = vmatpush2.bf16.msra.mxu0 %v1142
    %2074 = vmatprep.subr.bf16.mxu0 %v1127
    %2075 = vmatpush2.bf16.msra.mxu0 %v1126
    %2076 = vmatprep.subr.bf16.mxu0 %v1111
    %2077 = vmatpush2.bf16.msra.mxu0 %v1110
    %2078 = vmatprep.subr.bf16.mxu0 %v1095
    %2079 = vmatpush2.bf16.msra.mxu0 %v1094
    %2080 = vmatprep.subr.bf16.mxu0 %v1079
    %2081 = vmatpush2.bf16.msra.mxu0 %v1078
    %2082 = vmatprep.mubr.bf16.mxu0 %v669
    %2083 = vmatmul.mubr.bf16.gmra.mxu0 %v668
    %v2084 = vpop.f32.mrf.mxu0
    %v2085 = vadd.f32 0.0, %v2084
    %v2086 = vpop.f32.mrf.mxu0
    %v2087 = vadd.f32 0.0, %v2086
    %v2088 = vpop.f32.mrf.mxu0
    %v2089 = vadd.f32 0.0, %v2088
    %v2090 = vpop.f32.mrf.mxu0
    %v2091 = vadd.f32 0.0, %v2090
    %2092 = vdwg.mxu0
    %2093 = vmatprep.subr.bf16.mxu0 %v1319
    %2094 = vmatpush1.bf16.msra.mxu0 %v1318
    %2095 = vmatprep.subr.bf16.mxu0 %v1303
    %2096 = vmatpush1.bf16.msra.mxu0 %v1302
    %2097 = vmatprep.subr.bf16.mxu0 %v1287
    %2098 = vmatpush1.bf16.msra.mxu0 %v1286
    %2099 = vmatprep.subr.bf16.mxu0 %v1271
    %2100 = vmatpush1.bf16.msra.mxu0 %v1270
    %2101 = vmatprep.subr.bf16.mxu0 %v1255
    %2102 = vmatpush1.bf16.msra.mxu0 %v1254
    %2103 = vmatprep.subr.bf16.mxu0 %v1239
    %2104 = vmatpush1.bf16.msra.mxu0 %v1238
    %2105 = vmatprep.subr.bf16.mxu0 %v1223
    %2106 = vmatpush1.bf16.msra.mxu0 %v1222
    %2107 = vmatprep.subr.bf16.mxu0 %v1207
    %2108 = vmatpush1.bf16.msra.mxu0 %v1206
    %2109 = vmatprep.subr.bf16.mxu0 %v1447
    %2110 = vmatpush2.bf16.msra.mxu0 %v1446
    %2111 = vmatprep.subr.bf16.mxu0 %v1431
    %2112 = vmatpush2.bf16.msra.mxu0 %v1430
    %2113 = vmatprep.subr.bf16.mxu0 %v1415
    %2114 = vmatpush2.bf16.msra.mxu0 %v1414
    %2115 = vmatprep.subr.bf16.mxu0 %v1399
    %2116 = vmatpush2.bf16.msra.mxu0 %v1398
    %2117 = vmatprep.subr.bf16.mxu0 %v1383
    %2118 = vmatpush2.bf16.msra.mxu0 %v1382
    %2119 = vmatprep.subr.bf16.mxu0 %v1367
    %2120 = vmatpush2.bf16.msra.mxu0 %v1366
    %2121 = vmatprep.subr.bf16.mxu0 %v1351
    %2122 = vmatpush2.bf16.msra.mxu0 %v1350
    %2123 = vmatprep.subr.bf16.mxu0 %v1335
    %2124 = vmatpush2.bf16.msra.mxu0 %v1334
    %2125 = vmatprep.mubr.bf16.mxu0 %v671
    %2126 = vmatmul.mubr.bf16.gmra.mxu0 %v670
    %v2127 = vpop.f32.mrf.mxu0
    %v2128 = vadd.f32 %v2085, %v2127
    %v2129 = vpop.f32.mrf.mxu0
    %v2130 = vadd.f32 %v2087, %v2129
    %v2131 = vpop.f32.mrf.mxu0
    %v2132 = vadd.f32 %v2089, %v2131
    %v2133 = vpop.f32.mrf.mxu0
    %v2134 = vadd.f32 %v2091, %v2133
    %2135 = vdwg.mxu0
    %v2138 = vlaneseq
    %v2139 = vshrl.u32 %v2138, 7
    %v2140 = vsub.s32 0, %v2139
    %v2141 = vrot.slane %v932, %v2140
    %v2142 = vlaneseq
    %v2143 = vshrl.u32 %v2142, 7
    %v2144 = vsub.s32 1, %v2143
    %v2145 = vrot.slane %v932, %v2144
    %v2146 = vlaneseq
    %v2147 = vshrl.u32 %v2146, 7
    %v2148 = vsub.s32 2, %v2147
    %v2149 = vrot.slane %v932, %v2148
    %v2150 = vlaneseq
    %v2151 = vshrl.u32 %v2150, 7
    %v2152 = vsub.s32 3, %v2151
    %v2153 = vrot.slane %v932, %v2152
    %v2154 = vlaneseq
    %v2155 = vshrl.u32 %v2154, 7
    %v2156 = vsub.s32 4, %v2155
    %v2157 = vrot.slane %v932, %v2156
    %v2158 = vlaneseq
    %v2159 = vshrl.u32 %v2158, 7
    %v2160 = vsub.s32 5, %v2159
    %v2161 = vrot.slane %v932, %v2160
    %v2162 = vlaneseq
    %v2163 = vshrl.u32 %v2162, 7
    %v2164 = vsub.s32 6, %v2163
    %v2165 = vrot.slane %v932, %v2164
    %v2166 = vlaneseq
    %v2167 = vshrl.u32 %v2166, 7
    %v2168 = vsub.s32 7, %v2167
    %v2169 = vrot.slane %v932, %v2168
    %v2170 = vlaneseq
    %v2171 = vshrl.u32 %v2170, 7
    %v2172 = vsub.s32 0, %v2171
    %v2173 = vrot.slane %v933, %v2172
    %v2174 = vlaneseq
    %v2175 = vshrl.u32 %v2174, 7
    %v2176 = vsub.s32 1, %v2175
    %v2177 = vrot.slane %v933, %v2176
    %v2178 = vlaneseq
    %v2179 = vshrl.u32 %v2178, 7
    %v2180 = vsub.s32 2, %v2179
    %v2181 = vrot.slane %v933, %v2180
    %v2182 = vlaneseq
    %v2183 = vshrl.u32 %v2182, 7
    %v2184 = vsub.s32 3, %v2183
    %v2185 = vrot.slane %v933, %v2184
    %v2186 = vlaneseq
    %v2187 = vshrl.u32 %v2186, 7
    %v2188 = vsub.s32 4, %v2187
    %v2189 = vrot.slane %v933, %v2188
    %v2190 = vlaneseq
    %v2191 = vshrl.u32 %v2190, 7
    %v2192 = vsub.s32 5, %v2191
    %v2193 = vrot.slane %v933, %v2192
    %v2194 = vlaneseq
    %v2195 = vshrl.u32 %v2194, 7
    %v2196 = vsub.s32 6, %v2195
    %v2197 = vrot.slane %v933, %v2196
    %v2198 = vlaneseq
    %v2199 = vshrl.u32 %v2198, 7
    %v2200 = vsub.s32 7, %v2199
    %v2201 = vrot.slane %v933, %v2200
    %v2218 = vmul.f32 %v1526, %v2141
    %v2219 = vmul.f32 %v1528, %v2145
    %v2220 = vmul.f32 %v1612, %v2149
    %v2221 = vmul.f32 %v1614, %v2153
    %v2222 = vmul.f32 %v1698, %v2157
    %v2223 = vmul.f32 %v1700, %v2161
    %v2224 = vmul.f32 %v1784, %v2165
    %v2225 = vmul.f32 %v1786, %v2169
    %v2226 = vmul.f32 %v1870, %v2173
    %v2227 = vmul.f32 %v1872, %v2177
    %v2228 = vmul.f32 %v1956, %v2181
    %v2229 = vmul.f32 %v1958, %v2185
    %v2230 = vmul.f32 %v2042, %v2189
    %v2231 = vmul.f32 %v2044, %v2193
    %v2232 = vmul.f32 %v2128, %v2197
    %v2233 = vmul.f32 %v2130, %v2201
    %v2234 = vmul.f32 %v1530, %v2141
    %v2235 = vmul.f32 %v1532, %v2145
    %v2236 = vmul.f32 %v1616, %v2149
    %v2237 = vmul.f32 %v1618, %v2153
    %v2238 = vmul.f32 %v1702, %v2157
    %v2239 = vmul.f32 %v1704, %v2161
    %v2240 = vmul.f32 %v1788, %v2165
    %v2241 = vmul.f32 %v1790, %v2169
    %v2242 = vmul.f32 %v1874, %v2173
    %v2243 = vmul.f32 %v1876, %v2177
    %v2244 = vmul.f32 %v1960, %v2181
    %v2245 = vmul.f32 %v1962, %v2185
    %v2246 = vmul.f32 %v2046, %v2189
    %v2247 = vmul.f32 %v2048, %v2193
    %v2248 = vmul.f32 %v2132, %v2197
    %v2249 = vmul.f32 %v2134, %v2201
    %v2252 = vlaneseq
    %v2253 = vshrl.u32 %v2252, 7
    %v2254 = vsub.s32 0, %v2253
    %v2255 = vrot.slane %v934, %v2254
    %v2256 = vlaneseq
    %v2257 = vshrl.u32 %v2256, 7
    %v2258 = vsub.s32 1, %v2257
    %v2259 = vrot.slane %v934, %v2258
    %v2260 = vlaneseq
    %v2261 = vshrl.u32 %v2260, 7
    %v2262 = vsub.s32 2, %v2261
    %v2263 = vrot.slane %v934, %v2262
    %v2264 = vlaneseq
    %v2265 = vshrl.u32 %v2264, 7
    %v2266 = vsub.s32 3, %v2265
    %v2267 = vrot.slane %v934, %v2266
    %v2268 = vlaneseq
    %v2269 = vshrl.u32 %v2268, 7
    %v2270 = vsub.s32 4, %v2269
    %v2271 = vrot.slane %v934, %v2270
    %v2272 = vlaneseq
    %v2273 = vshrl.u32 %v2272, 7
    %v2274 = vsub.s32 5, %v2273
    %v2275 = vrot.slane %v934, %v2274
    %v2276 = vlaneseq
    %v2277 = vshrl.u32 %v2276, 7
    %v2278 = vsub.s32 6, %v2277
    %v2279 = vrot.slane %v934, %v2278
    %v2280 = vlaneseq
    %v2281 = vshrl.u32 %v2280, 7
    %v2282 = vsub.s32 7, %v2281
    %v2283 = vrot.slane %v934, %v2282
    %v2284 = vlaneseq
    %v2285 = vshrl.u32 %v2284, 7
    %v2286 = vsub.s32 0, %v2285
    %v2287 = vrot.slane %v935, %v2286
    %v2288 = vlaneseq
    %v2289 = vshrl.u32 %v2288, 7
    %v2290 = vsub.s32 1, %v2289
    %v2291 = vrot.slane %v935, %v2290
    %v2292 = vlaneseq
    %v2293 = vshrl.u32 %v2292, 7
    %v2294 = vsub.s32 2, %v2293
    %v2295 = vrot.slane %v935, %v2294
    %v2296 = vlaneseq
    %v2297 = vshrl.u32 %v2296, 7
    %v2298 = vsub.s32 3, %v2297
    %v2299 = vrot.slane %v935, %v2298
    %v2300 = vlaneseq
    %v2301 = vshrl.u32 %v2300, 7
    %v2302 = vsub.s32 4, %v2301
    %v2303 = vrot.slane %v935, %v2302
    %v2304 = vlaneseq
    %v2305 = vshrl.u32 %v2304, 7
    %v2306 = vsub.s32 5, %v2305
    %v2307 = vrot.slane %v935, %v2306
    %v2308 = vlaneseq
    %v2309 = vshrl.u32 %v2308, 7
    %v2310 = vsub.s32 6, %v2309
    %v2311 = vrot.slane %v935, %v2310
    %v2312 = vlaneseq
    %v2313 = vshrl.u32 %v2312, 7
    %v2314 = vsub.s32 7, %v2313
    %v2315 = vrot.slane %v935, %v2314
    %v2332 = vadd.f32 %v2218, %v2255
    %v2333 = vadd.f32 %v2219, %v2259
    %v2334 = vadd.f32 %v2220, %v2263
    %v2335 = vadd.f32 %v2221, %v2267
    %v2336 = vadd.f32 %v2222, %v2271
    %v2337 = vadd.f32 %v2223, %v2275
    %v2338 = vadd.f32 %v2224, %v2279
    %v2339 = vadd.f32 %v2225, %v2283
    %v2340 = vadd.f32 %v2226, %v2287
    %v2341 = vadd.f32 %v2227, %v2291
    %v2342 = vadd.f32 %v2228, %v2295
    %v2343 = vadd.f32 %v2229, %v2299
    %v2344 = vadd.f32 %v2230, %v2303
    %v2345 = vadd.f32 %v2231, %v2307
    %v2346 = vadd.f32 %v2232, %v2311
    %v2347 = vadd.f32 %v2233, %v2315
    %v2348 = vadd.f32 %v2234, %v2255
    %v2349 = vadd.f32 %v2235, %v2259
    %v2350 = vadd.f32 %v2236, %v2263
    %v2351 = vadd.f32 %v2237, %v2267
    %v2352 = vadd.f32 %v2238, %v2271
    %v2353 = vadd.f32 %v2239, %v2275
    %v2354 = vadd.f32 %v2240, %v2279
    %v2355 = vadd.f32 %v2241, %v2283
    %v2356 = vadd.f32 %v2242, %v2287
    %v2357 = vadd.f32 %v2243, %v2291
    %v2358 = vadd.f32 %v2244, %v2295
    %v2359 = vadd.f32 %v2245, %v2299
    %v2360 = vadd.f32 %v2246, %v2303
    %v2361 = vadd.f32 %v2247, %v2307
    %v2362 = vadd.f32 %v2248, %v2311
    %v2363 = vadd.f32 %v2249, %v2315
    %v2364 = vmax.f32 %v2332, 0.0
    %v2365 = vmax.f32 %v2333, 0.0
    %v2366 = vmax.f32 %v2334, 0.0
    %v2367 = vmax.f32 %v2335, 0.0
    %v2368 = vmax.f32 %v2336, 0.0
    %v2369 = vmax.f32 %v2337, 0.0
    %v2370 = vmax.f32 %v2338, 0.0
    %v2371 = vmax.f32 %v2339, 0.0
    %v2372 = vmax.f32 %v2340, 0.0
    %v2373 = vmax.f32 %v2341, 0.0
    %v2374 = vmax.f32 %v2342, 0.0
    %v2375 = vmax.f32 %v2343, 0.0
    %v2376 = vmax.f32 %v2344, 0.0
    %v2377 = vmax.f32 %v2345, 0.0
    %v2378 = vmax.f32 %v2346, 0.0
    %v2379 = vmax.f32 %v2347, 0.0
    %v2380 = vmax.f32 %v2348, 0.0
    %v2381 = vmax.f32 %v2349, 0.0
    %v2382 = vmax.f32 %v2350, 0.0
    %v2383 = vmax.f32 %v2351, 0.0
    %v2384 = vmax.f32 %v2352, 0.0
    %v2385 = vmax.f32 %v2353, 0.0
    %v2386 = vmax.f32 %v2354, 0.0
    %v2387 = vmax.f32 %v2355, 0.0
    %v2388 = vmax.f32 %v2356, 0.0
    %v2389 = vmax.f32 %v2357, 0.0
    %v2390 = vmax.f32 %v2358, 0.0
    %v2391 = vmax.f32 %v2359, 0.0
    %v2392 = vmax.f32 %v2360, 0.0
    %v2393 = vmax.f32 %v2361, 0.0
    %v2394 = vmax.f32 %v2362, 0.0
    %v2395 = vmax.f32 %v2363, 0.0
    %v2396 = vpack.c.bf16 %v2380, %v2364
    %v2397 = vpack.c.bf16 %v2381, %v2365
    %v2398 = vpack.c.bf16 %v2382, %v2366
    %v2399 = vpack.c.bf16 %v2383, %v2367
    %v2400 = vpack.c.bf16 %v2384, %v2368
    %v2401 = vpack.c.bf16 %v2385, %v2369
    %v2402 = vpack.c.bf16 %v2386, %v2370
    %v2403 = vpack.c.bf16 %v2387, %v2371
    %v2404 = vpack.c.bf16 %v2388, %v2372
    %v2405 = vpack.c.bf16 %v2389, %v2373
    %v2406 = vpack.c.bf16 %v2390, %v2374
    %v2407 = vpack.c.bf16 %v2391, %v2375
    %v2408 = vpack.c.bf16 %v2392, %v2376
    %v2409 = vpack.c.bf16 %v2393, %v2377
    %v2410 = vpack.c.bf16 %v2394, %v2378
    %v2411 = vpack.c.bf16 %v2395, %v2379
    %v2412 = vld [vmem:[%s10] sm:$0xff]
    %v2413 = vld [vmem:[%s10 + $0x8] sm:$0xff]
    %v2414 = vld [vmem:[%s10 + $0x10] sm:$0xff]
    %v2415 = vld [vmem:[%s10 + $0x18] sm:$0xff]
    %v2416 = vld [vmem:[%s10 + $0x20] sm:$0xff]
    %v2417 = vld [vmem:[%s10 + $0x28] sm:$0xff]
    %v2418 = vld [vmem:[%s10 + $0x30] sm:$0xff]
    %v2419 = vld [vmem:[%s10 + $0x38] sm:$0xff]
    %v2420 = vld [vmem:[%s10 + $0x40] sm:$0xff]
    %v2421 = vld [vmem:[%s10 + $0x48] sm:$0xff]
    %v2422 = vld [vmem:[%s10 + $0x50] sm:$0xff]
    %v2423 = vld [vmem:[%s10 + $0x58] sm:$0xff]
    %v2424 = vld [vmem:[%s10 + $0x60] sm:$0xff]
    %v2425 = vld [vmem:[%s10 + $0x68] sm:$0xff]
    %v2426 = vld [vmem:[%s10 + $0x70] sm:$0xff]
    %v2427 = vld [vmem:[%s10 + $0x78] sm:$0xff]
    %v2428 = vld [vmem:[%s10 + $0x80] sm:$0xff]
    %v2429 = vld [vmem:[%s10 + $0x88] sm:$0xff]
    %v2430 = vld [vmem:[%s10 + $0x90] sm:$0xff]
    %v2431 = vld [vmem:[%s10 + $0x98] sm:$0xff]
    %v2432 = vld [vmem:[%s10 + $0xa0] sm:$0xff]
    %v2433 = vld [vmem:[%s10 + $0xa8] sm:$0xff]
    %v2434 = vld [vmem:[%s10 + $0xb0] sm:$0xff]
    %v2435 = vld [vmem:[%s10 + $0xb8] sm:$0xff]
    %v2436 = vld [vmem:[%s10 + $0xc0] sm:$0xff]
    %v2437 = vld [vmem:[%s10 + $0xc8] sm:$0xff]
    %v2438 = vld [vmem:[%s10 + $0xd0] sm:$0xff]
    %v2439 = vld [vmem:[%s10 + $0xd8] sm:$0xff]
    %v2440 = vld [vmem:[%s10 + $0xe0] sm:$0xff]
    %v2441 = vld [vmem:[%s10 + $0xe8] sm:$0xff]
    %v2442 = vld [vmem:[%s10 + $0xf0] sm:$0xff]
    %v2443 = vld [vmem:[%s10 + $0xf8] sm:$0xff]
    %v2444 = vld [vmem:[%s10 + $0x100] sm:$0xff]
    %v2445 = vld [vmem:[%s10 + $0x108] sm:$0xff]
    %v2446 = vld [vmem:[%s10 + $0x110] sm:$0xff]
    %v2447 = vld [vmem:[%s10 + $0x118] sm:$0xff]
    %v2448 = vld [vmem:[%s10 + $0x120] sm:$0xff]
    %v2449 = vld [vmem:[%s10 + $0x128] sm:$0xff]
    %v2450 = vld [vmem:[%s10 + $0x130] sm:$0xff]
    %v2451 = vld [vmem:[%s10 + $0x138] sm:$0xff]
    %v2452 = vld [vmem:[%s10 + $0x140] sm:$0xff]
    %v2453 = vld [vmem:[%s10 + $0x148] sm:$0xff]
    %v2454 = vld [vmem:[%s10 + $0x150] sm:$0xff]
    %v2455 = vld [vmem:[%s10 + $0x158] sm:$0xff]
    %v2456 = vld [vmem:[%s10 + $0x160] sm:$0xff]
    %v2457 = vld [vmem:[%s10 + $0x168] sm:$0xff]
    %v2458 = vld [vmem:[%s10 + $0x170] sm:$0xff]
    %v2459 = vld [vmem:[%s10 + $0x178] sm:$0xff]
    %v2460 = vld [vmem:[%s10 + $0x180] sm:$0xff]
    %v2461 = vld [vmem:[%s10 + $0x188] sm:$0xff]
    %v2462 = vld [vmem:[%s10 + $0x190] sm:$0xff]
    %v2463 = vld [vmem:[%s10 + $0x198] sm:$0xff]
    %v2464 = vld [vmem:[%s10 + $0x1a0] sm:$0xff]
    %v2465 = vld [vmem:[%s10 + $0x1a8] sm:$0xff]
    %v2466 = vld [vmem:[%s10 + $0x1b0] sm:$0xff]
    %v2467 = vld [vmem:[%s10 + $0x1b8] sm:$0xff]
    %v2468 = vld [vmem:[%s10 + $0x1c0] sm:$0xff]
    %v2469 = vld [vmem:[%s10 + $0x1c8] sm:$0xff]
    %v2470 = vld [vmem:[%s10 + $0x1d0] sm:$0xff]
    %v2471 = vld [vmem:[%s10 + $0x1d8] sm:$0xff]
    %v2472 = vld [vmem:[%s10 + $0x1e0] sm:$0xff]
    %v2473 = vld [vmem:[%s10 + $0x1e8] sm:$0xff]
    %v2474 = vld [vmem:[%s10 + $0x1f0] sm:$0xff]
    %v2475 = vld [vmem:[%s10 + $0x1f8] sm:$0xff]
    %v2476 = vld [vmem:[%s11] sm:$0x1]
    %v2477 = vld [vmem:[%s12] sm:$0x1]
    %v2478 = vunpack.c.l.s8.bf16 %v2412
    %v2479 = vunpack.c.h.s8.bf16 %v2412
    %v2480 = vunpack.c.l.s8.bf16 %v2413
    %v2481 = vunpack.c.h.s8.bf16 %v2413
    %v2482 = vunpack.c.l.s8.bf16 %v2414
    %v2483 = vunpack.c.h.s8.bf16 %v2414
    %v2484 = vunpack.c.l.s8.bf16 %v2415
    %v2485 = vunpack.c.h.s8.bf16 %v2415
    %v2486 = vunpack.c.l.s8.bf16 %v2416
    %v2487 = vunpack.c.h.s8.bf16 %v2416
    %v2488 = vunpack.c.l.s8.bf16 %v2417
    %v2489 = vunpack.c.h.s8.bf16 %v2417
    %v2490 = vunpack.c.l.s8.bf16 %v2418
    %v2491 = vunpack.c.h.s8.bf16 %v2418
    %v2492 = vunpack.c.l.s8.bf16 %v2419
    %v2493 = vunpack.c.h.s8.bf16 %v2419
    %v2494 = vunpack.c.l.s8.bf16 %v2420
    %v2495 = vunpack.c.h.s8.bf16 %v2420
    %v2496 = vunpack.c.l.s8.bf16 %v2421
    %v2497 = vunpack.c.h.s8.bf16 %v2421
    %v2498 = vunpack.c.l.s8.bf16 %v2422
    %v2499 = vunpack.c.h.s8.bf16 %v2422
    %v2500 = vunpack.c.l.s8.bf16 %v2423
    %v2501 = vunpack.c.h.s8.bf16 %v2423
    %v2502 = vunpack.c.l.s8.bf16 %v2424
    %v2503 = vunpack.c.h.s8.bf16 %v2424
    %v2504 = vunpack.c.l.s8.bf16 %v2425
    %v2505 = vunpack.c.h.s8.bf16 %v2425
    %v2506 = vunpack.c.l.s8.bf16 %v2426
    %v2507 = vunpack.c.h.s8.bf16 %v2426
    %v2508 = vunpack.c.l.s8.bf16 %v2427
    %v2509 = vunpack.c.h.s8.bf16 %v2427
    %v2510 = vunpack.c.l.s8.bf16 %v2428
    %v2511 = vunpack.c.h.s8.bf16 %v2428
    %v2512 = vunpack.c.l.s8.bf16 %v2429
    %v2513 = vunpack.c.h.s8.bf16 %v2429
    %v2514 = vunpack.c.l.s8.bf16 %v2430
    %v2515 = vunpack.c.h.s8.bf16 %v2430
    %v2516 = vunpack.c.l.s8.bf16 %v2431
    %v2517 = vunpack.c.h.s8.bf16 %v2431
    %v2518 = vunpack.c.l.s8.bf16 %v2432
    %v2519 = vunpack.c.h.s8.bf16 %v2432
    %v2520 = vunpack.c.l.s8.bf16 %v2433
    %v2521 = vunpack.c.h.s8.bf16 %v2433
    %v2522 = vunpack.c.l.s8.bf16 %v2434
    %v2523 = vunpack.c.h.s8.bf16 %v2434
    %v2524 = vunpack.c.l.s8.bf16 %v2435
    %v2525 = vunpack.c.h.s8.bf16 %v2435
    %v2526 = vunpack.c.l.s8.bf16 %v2436
    %v2527 = vunpack.c.h.s8.bf16 %v2436
    %v2528 = vunpack.c.l.s8.bf16 %v2437
    %v2529 = vunpack.c.h.s8.bf16 %v2437
    %v2530 = vunpack.c.l.s8.bf16 %v2438
    %v2531 = vunpack.c.h.s8.bf16 %v2438
    %v2532 = vunpack.c.l.s8.bf16 %v2439
    %v2533 = vunpack.c.h.s8.bf16 %v2439
    %v2534 = vunpack.c.l.s8.bf16 %v2440
    %v2535 = vunpack.c.h.s8.bf16 %v2440
    %v2536 = vunpack.c.l.s8.bf16 %v2441
    %v2537 = vunpack.c.h.s8.bf16 %v2441
    %v2538 = vunpack.c.l.s8.bf16 %v2442
    %v2539 = vunpack.c.h.s8.bf16 %v2442
    %v2540 = vunpack.c.l.s8.bf16 %v2443
    %v2541 = vunpack.c.h.s8.bf16 %v2443
    %v2542 = vunpack.c.l.s8.bf16 %v2444
    %v2543 = vunpack.c.h.s8.bf16 %v2444
    %v2544 = vunpack.c.l.s8.bf16 %v2445
    %v2545 = vunpack.c.h.s8.bf16 %v2445
    %v2546 = vunpack.c.l.s8.bf16 %v2446
    %v2547 = vunpack.c.h.s8.bf16 %v2446
    %v2548 = vunpack.c.l.s8.bf16 %v2447
    %v2549 = vunpack.c.h.s8.bf16 %v2447
    %v2550 = vunpack.c.l.s8.bf16 %v2448
    %v2551 = vunpack.c.h.s8.bf16 %v2448
    %v2552 = vunpack.c.l.s8.bf16 %v2449
    %v2553 = vunpack.c.h.s8.bf16 %v2449
    %v2554 = vunpack.c.l.s8.bf16 %v2450
    %v2555 = vunpack.c.h.s8.bf16 %v2450
    %v2556 = vunpack.c.l.s8.bf16 %v2451
    %v2557 = vunpack.c.h.s8.bf16 %v2451
    %v2558 = vunpack.c.l.s8.bf16 %v2452
    %v2559 = vunpack.c.h.s8.bf16 %v2452
    %v2560 = vunpack.c.l.s8.bf16 %v2453
    %v2561 = vunpack.c.h.s8.bf16 %v2453
    %v2562 = vunpack.c.l.s8.bf16 %v2454
    %v2563 = vunpack.c.h.s8.bf16 %v2454
    %v2564 = vunpack.c.l.s8.bf16 %v2455
    %v2565 = vunpack.c.h.s8.bf16 %v2455
    %v2566 = vunpack.c.l.s8.bf16 %v2456
    %v2567 = vunpack.c.h.s8.bf16 %v2456
    %v2568 = vunpack.c.l.s8.bf16 %v2457
    %v2569 = vunpack.c.h.s8.bf16 %v2457
    %v2570 = vunpack.c.l.s8.bf16 %v2458
    %v2571 = vunpack.c.h.s8.bf16 %v2458
    %v2572 = vunpack.c.l.s8.bf16 %v2459
    %v2573 = vunpack.c.h.s8.bf16 %v2459
    %v2574 = vunpack.c.l.s8.bf16 %v2460
    %v2575 = vunpack.c.h.s8.bf16 %v2460
    %v2576 = vunpack.c.l.s8.bf16 %v2461
    %v2577 = vunpack.c.h.s8.bf16 %v2461
    %v2578 = vunpack.c.l.s8.bf16 %v2462
    %v2579 = vunpack.c.h.s8.bf16 %v2462
    %v2580 = vunpack.c.l.s8.bf16 %v2463
    %v2581 = vunpack.c.h.s8.bf16 %v2463
    %v2582 = vunpack.c.l.s8.bf16 %v2464
    %v2583 = vunpack.c.h.s8.bf16 %v2464
    %v2584 = vunpack.c.l.s8.bf16 %v2465
    %v2585 = vunpack.c.h.s8.bf16 %v2465
    %v2586 = vunpack.c.l.s8.bf16 %v2466
    %v2587 = vunpack.c.h.s8.bf16 %v2466
    %v2588 = vunpack.c.l.s8.bf16 %v2467
    %v2589 = vunpack.c.h.s8.bf16 %v2467
    %v2590 = vunpack.c.l.s8.bf16 %v2468
    %v2591 = vunpack.c.h.s8.bf16 %v2468
    %v2592 = vunpack.c.l.s8.bf16 %v2469
    %v2593 = vunpack.c.h.s8.bf16 %v2469
    %v2594 = vunpack.c.l.s8.bf16 %v2470
    %v2595 = vunpack.c.h.s8.bf16 %v2470
    %v2596 = vunpack.c.l.s8.bf16 %v2471
    %v2597 = vunpack.c.h.s8.bf16 %v2471
    %v2598 = vunpack.c.l.s8.bf16 %v2472
    %v2599 = vunpack.c.h.s8.bf16 %v2472
    %v2600 = vunpack.c.l.s8.bf16 %v2473
    %v2601 = vunpack.c.h.s8.bf16 %v2473
    %v2602 = vunpack.c.l.s8.bf16 %v2474
    %v2603 = vunpack.c.h.s8.bf16 %v2474
    %v2604 = vunpack.c.l.s8.bf16 %v2475
    %v2605 = vunpack.c.h.s8.bf16 %v2475
    %2606 = vmatprep.subr.bf16.mxu0 0
    %2607 = vmatpush1.bf16.msra.mxu0 %v2485
    %2608 = vmatprep.subr.bf16.mxu0 0
    %2609 = vmatpush1.bf16.msra.mxu0 %v2484
    %2610 = vmatprep.subr.bf16.mxu0 0
    %2611 = vmatpush1.bf16.msra.mxu0 %v2483
    %2612 = vmatprep.subr.bf16.mxu0 0
    %2613 = vmatpush1.bf16.msra.mxu0 %v2482
    %2614 = vmatprep.subr.bf16.mxu0 0
    %2615 = vmatpush1.bf16.msra.mxu0 %v2481
    %2616 = vmatprep.subr.bf16.mxu0 0
    %2617 = vmatpush1.bf16.msra.mxu0 %v2480
    %2618 = vmatprep.subr.bf16.mxu0 0
    %2619 = vmatpush1.bf16.msra.mxu0 %v2479
    %2620 = vmatprep.subr.bf16.mxu0 0
    %2621 = vmatpush1.bf16.msra.mxu0 %v2478
    %2622 = vmatprep.subr.bf16.mxu0 0
    %2623 = vmatpush2.bf16.msra.mxu0 %v2493
    %2624 = vmatprep.subr.bf16.mxu0 0
    %2625 = vmatpush2.bf16.msra.mxu0 %v2492
    %2626 = vmatprep.subr.bf16.mxu0 0
    %2627 = vmatpush2.bf16.msra.mxu0 %v2491
    %2628 = vmatprep.subr.bf16.mxu0 0
    %2629 = vmatpush2.bf16.msra.mxu0 %v2490
    %2630 = vmatprep.subr.bf16.mxu0 0
    %2631 = vmatpush2.bf16.msra.mxu0 %v2489
    %2632 = vmatprep.subr.bf16.mxu0 0
    %2633 = vmatpush2.bf16.msra.mxu0 %v2488
    %2634 = vmatprep.subr.bf16.mxu0 0
    %2635 = vmatpush2.bf16.msra.mxu0 %v2487
    %2636 = vmatprep.subr.bf16.mxu0 0
    %2637 = vmatpush2.bf16.msra.mxu0 %v2486
    %2638 = vmatprep.mubr.bf16.mxu0 %v2397
    %2639 = vmatmul.mubr.bf16.gmra.mxu0 %v2396
    %v2640 = vpop.f32.mrf.mxu0
    %v2641 = vadd.f32 0.0, %v2640
    %v2642 = vpop.f32.mrf.mxu0
    %v2643 = vpop.f32.mrf.mxu0
    %v2644 = vadd.f32 0.0, %v2643
    %v2645 = vpop.f32.mrf.mxu0
    %2646 = vdwg.mxu0
    %2647 = vmatprep.subr.bf16.mxu0 0
    %2648 = vmatpush1.bf16.msra.mxu0 %v2501
    %2649 = vmatprep.subr.bf16.mxu0 0
    %2650 = vmatpush1.bf16.msra.mxu0 %v2500
    %2651 = vmatprep.subr.bf16.mxu0 0
    %2652 = vmatpush1.bf16.msra.mxu0 %v2499
    %2653 = vmatprep.subr.bf16.mxu0 0
    %2654 = vmatpush1.bf16.msra.mxu0 %v2498
    %2655 = vmatprep.subr.bf16.mxu0 0
    %2656 = vmatpush1.bf16.msra.mxu0 %v2497
    %2657 = vmatprep.subr.bf16.mxu0 0
    %2658 = vmatpush1.bf16.msra.mxu0 %v2496
    %2659 = vmatprep.subr.bf16.mxu0 0
    %2660 = vmatpush1.bf16.msra.mxu0 %v2495
    %2661 = vmatprep.subr.bf16.mxu0 0
    %2662 = vmatpush1.bf16.msra.mxu0 %v2494
    %2663 = vmatprep.subr.bf16.mxu0 0
    %2664 = vmatpush2.bf16.msra.mxu0 %v2509
    %2665 = vmatprep.subr.bf16.mxu0 0
    %2666 = vmatpush2.bf16.msra.mxu0 %v2508
    %2667 = vmatprep.subr.bf16.mxu0 0
    %2668 = vmatpush2.bf16.msra.mxu0 %v2507
    %2669 = vmatprep.subr.bf16.mxu0 0
    %2670 = vmatpush2.bf16.msra.mxu0 %v2506
    %2671 = vmatprep.subr.bf16.mxu0 0
    %2672 = vmatpush2.bf16.msra.mxu0 %v2505
    %2673 = vmatprep.subr.bf16.mxu0 0
    %2674 = vmatpush2.bf16.msra.mxu0 %v2504
    %2675 = vmatprep.subr.bf16.mxu0 0
    %2676 = vmatpush2.bf16.msra.mxu0 %v2503
    %2677 = vmatprep.subr.bf16.mxu0 0
    %2678 = vmatpush2.bf16.msra.mxu0 %v2502
    %2679 = vmatprep.mubr.bf16.mxu0 %v2399
    %2680 = vmatmul.mubr.bf16.gmra.mxu0 %v2398
    %v2681 = vpop.f32.mrf.mxu0
    %v2682 = vadd.f32 %v2641, %v2681
    %v2683 = vpop.f32.mrf.mxu0
    %v2684 = vpop.f32.mrf.mxu0
    %v2685 = vadd.f32 %v2644, %v2684
    %v2686 = vpop.f32.mrf.mxu0
    %2687 = vdwg.mxu0
    %2688 = vmatprep.subr.bf16.mxu0 0
    %2689 = vmatpush1.bf16.msra.mxu0 %v2517
    %2690 = vmatprep.subr.bf16.mxu0 0
    %2691 = vmatpush1.bf16.msra.mxu0 %v2516
    %2692 = vmatprep.subr.bf16.mxu0 0
    %2693 = vmatpush1.bf16.msra.mxu0 %v2515
    %2694 = vmatprep.subr.bf16.mxu0 0
    %2695 = vmatpush1.bf16.msra.mxu0 %v2514
    %2696 = vmatprep.subr.bf16.mxu0 0
    %2697 = vmatpush1.bf16.msra.mxu0 %v2513
    %2698 = vmatprep.subr.bf16.mxu0 0
    %2699 = vmatpush1.bf16.msra.mxu0 %v2512
    %2700 = vmatprep.subr.bf16.mxu0 0
    %2701 = vmatpush1.bf16.msra.mxu0 %v2511
    %2702 = vmatprep.subr.bf16.mxu0 0
    %2703 = vmatpush1.bf16.msra.mxu0 %v2510
    %2704 = vmatprep.subr.bf16.mxu0 0
    %2705 = vmatpush2.bf16.msra.mxu0 %v2525
    %2706 = vmatprep.subr.bf16.mxu0 0
    %2707 = vmatpush2.bf16.msra.mxu0 %v2524
    %2708 = vmatprep.subr.bf16.mxu0 0
    %2709 = vmatpush2.bf16.msra.mxu0 %v2523
    %2710 = vmatprep.subr.bf16.mxu0 0
    %2711 = vmatpush2.bf16.msra.mxu0 %v2522
    %2712 = vmatprep.subr.bf16.mxu0 0
    %2713 = vmatpush2.bf16.msra.mxu0 %v2521
    %2714 = vmatprep.subr.bf16.mxu0 0
    %2715 = vmatpush2.bf16.msra.mxu0 %v2520
    %2716 = vmatprep.subr.bf16.mxu0 0
    %2717 = vmatpush2.bf16.msra.mxu0 %v2519
    %2718 = vmatprep.subr.bf16.mxu0 0
    %2719 = vmatpush2.bf16.msra.mxu0 %v2518
    %2720 = vmatprep.mubr.bf16.mxu0 %v2401
    %2721 = vmatmul.mubr.bf16.gmra.mxu0 %v2400
    %v2722 = vpop.f32.mrf.mxu0
    %v2723 = vadd.f32 %v2682, %v2722
    %v2724 = vpop.f32.mrf.mxu0
    %v2725 = vpop.f32.mrf.mxu0
    %v2726 = vadd.f32 %v2685, %v2725
    %v2727 = vpop.f32.mrf.mxu0
    %2728 = vdwg.mxu0
    %2729 = vmatprep.subr.bf16.mxu0 0
    %2730 = vmatpush1.bf16.msra.mxu0 %v2533
    %2731 = vmatprep.subr.bf16.mxu0 0
    %2732 = vmatpush1.bf16.msra.mxu0 %v2532
    %2733 = vmatprep.subr.bf16.mxu0 0
    %2734 = vmatpush1.bf16.msra.mxu0 %v2531
    %2735 = vmatprep.subr.bf16.mxu0 0
    %2736 = vmatpush1.bf16.msra.mxu0 %v2530
    %2737 = vmatprep.subr.bf16.mxu0 0
    %2738 = vmatpush1.bf16.msra.mxu0 %v2529
    %2739 = vmatprep.subr.bf16.mxu0 0
    %2740 = vmatpush1.bf16.msra.mxu0 %v2528
    %2741 = vmatprep.subr.bf16.mxu0 0
    %2742 = vmatpush1.bf16.msra.mxu0 %v2527
    %2743 = vmatprep.subr.bf16.mxu0 0
    %2744 = vmatpush1.bf16.msra.mxu0 %v2526
    %2745 = vmatprep.subr.bf16.mxu0 0
    %2746 = vmatpush2.bf16.msra.mxu0 %v2541
    %2747 = vmatprep.subr.bf16.mxu0 0
    %2748 = vmatpush2.bf16.msra.mxu0 %v2540
    %2749 = vmatprep.subr.bf16.mxu0 0
    %2750 = vmatpush2.bf16.msra.mxu0 %v2539
    %2751 = vmatprep.subr.bf16.mxu0 0
    %2752 = vmatpush2.bf16.msra.mxu0 %v2538
    %2753 = vmatprep.subr.bf16.mxu0 0
    %2754 = vmatpush2.bf16.msra.mxu0 %v2537
    %2755 = vmatprep.subr.bf16.mxu0 0
    %2756 = vmatpush2.bf16.msra.mxu0 %v2536
    %2757 = vmatprep.subr.bf16.mxu0 0
    %2758 = vmatpush2.bf16.msra.mxu0 %v2535
    %2759 = vmatprep.subr.bf16.mxu0 0
    %2760 = vmatpush2.bf16.msra.mxu0 %v2534
    %2761 = vmatprep.mubr.bf16.mxu0 %v2403
    %2762 = vmatmul.mubr.bf16.gmra.mxu0 %v2402
    %v2763 = vpop.f32.mrf.mxu0
    %v2764 = vadd.f32 %v2723, %v2763
    %v2765 = vpop.f32.mrf.mxu0
    %v2766 = vpop.f32.mrf.mxu0
    %v2767 = vadd.f32 %v2726, %v2766
    %v2768 = vpop.f32.mrf.mxu0
    %2769 = vdwg.mxu0
    %2770 = vmatprep.subr.bf16.mxu0 0
    %2771 = vmatpush1.bf16.msra.mxu0 %v2549
    %2772 = vmatprep.subr.bf16.mxu0 0
    %2773 = vmatpush1.bf16.msra.mxu0 %v2548
    %2774 = vmatprep.subr.bf16.mxu0 0
    %2775 = vmatpush1.bf16.msra.mxu0 %v2547
    %2776 = vmatprep.subr.bf16.mxu0 0
    %2777 = vmatpush1.bf16.msra.mxu0 %v2546
    %2778 = vmatprep.subr.bf16.mxu0 0
    %2779 = vmatpush1.bf16.msra.mxu0 %v2545
    %2780 = vmatprep.subr.bf16.mxu0 0
    %2781 = vmatpush1.bf16.msra.mxu0 %v2544
    %2782 = vmatprep.subr.bf16.mxu0 0
    %2783 = vmatpush1.bf16.msra.mxu0 %v2543
    %2784 = vmatprep.subr.bf16.mxu0 0
    %2785 = vmatpush1.bf16.msra.mxu0 %v2542
    %2786 = vmatprep.subr.bf16.mxu0 0
    %2787 = vmatpush2.bf16.msra.mxu0 %v2557
    %2788 = vmatprep.subr.bf16.mxu0 0
    %2789 = vmatpush2.bf16.msra.mxu0 %v2556
    %2790 = vmatprep.subr.bf16.mxu0 0
    %2791 = vmatpush2.bf16.msra.mxu0 %v2555
    %2792 = vmatprep.subr.bf16.mxu0 0
    %2793 = vmatpush2.bf16.msra.mxu0 %v2554
    %2794 = vmatprep.subr.bf16.mxu0 0
    %2795 = vmatpush2.bf16.msra.mxu0 %v2553
    %2796 = vmatprep.subr.bf16.mxu0 0
    %2797 = vmatpush2.bf16.msra.mxu0 %v2552
    %2798 = vmatprep.subr.bf16.mxu0 0
    %2799 = vmatpush2.bf16.msra.mxu0 %v2551
    %2800 = vmatprep.subr.bf16.mxu0 0
    %2801 = vmatpush2.bf16.msra.mxu0 %v2550
    %2802 = vmatprep.mubr.bf16.mxu0 %v2405
    %2803 = vmatmul.mubr.bf16.gmra.mxu0 %v2404
    %v2804 = vpop.f32.mrf.mxu0
    %v2805 = vadd.f32 %v2764, %v2804
    %v2806 = vpop.f32.mrf.mxu0
    %v2807 = vpop.f32.mrf.mxu0
    %v2808 = vadd.f32 %v2767, %v2807
    %v2809 = vpop.f32.mrf.mxu0
    %2810 = vdwg.mxu0
    %2811 = vmatprep.subr.bf16.mxu0 0
    %2812 = vmatpush1.bf16.msra.mxu0 %v2565
    %2813 = vmatprep.subr.bf16.mxu0 0
    %2814 = vmatpush1.bf16.msra.mxu0 %v2564
    %2815 = vmatprep.subr.bf16.mxu0 0
    %2816 = vmatpush1.bf16.msra.mxu0 %v2563
    %2817 = vmatprep.subr.bf16.mxu0 0
    %2818 = vmatpush1.bf16.msra.mxu0 %v2562
    %2819 = vmatprep.subr.bf16.mxu0 0
    %2820 = vmatpush1.bf16.msra.mxu0 %v2561
    %2821 = vmatprep.subr.bf16.mxu0 0
    %2822 = vmatpush1.bf16.msra.mxu0 %v2560
    %2823 = vmatprep.subr.bf16.mxu0 0
    %2824 = vmatpush1.bf16.msra.mxu0 %v2559
    %2825 = vmatprep.subr.bf16.mxu0 0
    %2826 = vmatpush1.bf16.msra.mxu0 %v2558
    %2827 = vmatprep.subr.bf16.mxu0 0
    %2828 = vmatpush2.bf16.msra.mxu0 %v2573
    %2829 = vmatprep.subr.bf16.mxu0 0
    %2830 = vmatpush2.bf16.msra.mxu0 %v2572
    %2831 = vmatprep.subr.bf16.mxu0 0
    %2832 = vmatpush2.bf16.msra.mxu0 %v2571
    %2833 = vmatprep.subr.bf16.mxu0 0
    %2834 = vmatpush2.bf16.msra.mxu0 %v2570
    %2835 = vmatprep.subr.bf16.mxu0 0
    %2836 = vmatpush2.bf16.msra.mxu0 %v2569
    %2837 = vmatprep.subr.bf16.mxu0 0
    %2838 = vmatpush2.bf16.msra.mxu0 %v2568
    %2839 = vmatprep.subr.bf16.mxu0 0
    %2840 = vmatpush2.bf16.msra.mxu0 %v2567
    %2841 = vmatprep.subr.bf16.mxu0 0
    %2842 = vmatpush2.bf16.msra.mxu0 %v2566
    %2843 = vmatprep.mubr.bf16.mxu0 %v2407
    %2844 = vmatmul.mubr.bf16.gmra.mxu0 %v2406
    %v2845 = vpop.f32.mrf.mxu0
    %v2846 = vadd.f32 %v2805, %v2845
    %v2847 = vpop.f32.mrf.mxu0
    %v2848 = vpop.f32.mrf.mxu0
    %v2849 = vadd.f32 %v2808, %v2848
    %v2850 = vpop.f32.mrf.mxu0
    %2851 = vdwg.mxu0
    %2852 = vmatprep.subr.bf16.mxu0 0
    %2853 = vmatpush1.bf16.msra.mxu0 %v2581
    %2854 = vmatprep.subr.bf16.mxu0 0
    %2855 = vmatpush1.bf16.msra.mxu0 %v2580
    %2856 = vmatprep.subr.bf16.mxu0 0
    %2857 = vmatpush1.bf16.msra.mxu0 %v2579
    %2858 = vmatprep.subr.bf16.mxu0 0
    %2859 = vmatpush1.bf16.msra.mxu0 %v2578
    %2860 = vmatprep.subr.bf16.mxu0 0
    %2861 = vmatpush1.bf16.msra.mxu0 %v2577
    %2862 = vmatprep.subr.bf16.mxu0 0
    %2863 = vmatpush1.bf16.msra.mxu0 %v2576
    %2864 = vmatprep.subr.bf16.mxu0 0
    %2865 = vmatpush1.bf16.msra.mxu0 %v2575
    %2866 = vmatprep.subr.bf16.mxu0 0
    %2867 = vmatpush1.bf16.msra.mxu0 %v2574
    %2868 = vmatprep.subr.bf16.mxu0 0
    %2869 = vmatpush2.bf16.msra.mxu0 %v2589
    %2870 = vmatprep.subr.bf16.mxu0 0
    %2871 = vmatpush2.bf16.msra.mxu0 %v2588
    %2872 = vmatprep.subr.bf16.mxu0 0
    %2873 = vmatpush2.bf16.msra.mxu0 %v2587
    %2874 = vmatprep.subr.bf16.mxu0 0
    %2875 = vmatpush2.bf16.msra.mxu0 %v2586
    %2876 = vmatprep.subr.bf16.mxu0 0
    %2877 = vmatpush2.bf16.msra.mxu0 %v2585
    %2878 = vmatprep.subr.bf16.mxu0 0
    %2879 = vmatpush2.bf16.msra.mxu0 %v2584
    %2880 = vmatprep.subr.bf16.mxu0 0
    %2881 = vmatpush2.bf16.msra.mxu0 %v2583
    %2882 = vmatprep.subr.bf16.mxu0 0
    %2883 = vmatpush2.bf16.msra.mxu0 %v2582
    %2884 = vmatprep.mubr.bf16.mxu0 %v2409
    %2885 = vmatmul.mubr.bf16.gmra.mxu0 %v2408
    %v2886 = vpop.f32.mrf.mxu0
    %v2887 = vadd.f32 %v2846, %v2886
    %v2888 = vpop.f32.mrf.mxu0
    %v2889 = vpop.f32.mrf.mxu0
    %v2890 = vadd.f32 %v2849, %v2889
    %v2891 = vpop.f32.mrf.mxu0
    %2892 = vdwg.mxu0
    %2893 = vmatprep.subr.bf16.mxu0 0
    %2894 = vmatpush1.bf16.msra.mxu0 %v2597
    %2895 = vmatprep.subr.bf16.mxu0 0
    %2896 = vmatpush1.bf16.msra.mxu0 %v2596
    %2897 = vmatprep.subr.bf16.mxu0 0
    %2898 = vmatpush1.bf16.msra.mxu0 %v2595
    %2899 = vmatprep.subr.bf16.mxu0 0
    %2900 = vmatpush1.bf16.msra.mxu0 %v2594
    %2901 = vmatprep.subr.bf16.mxu0 0
    %2902 = vmatpush1.bf16.msra.mxu0 %v2593
    %2903 = vmatprep.subr.bf16.mxu0 0
    %2904 = vmatpush1.bf16.msra.mxu0 %v2592
    %2905 = vmatprep.subr.bf16.mxu0 0
    %2906 = vmatpush1.bf16.msra.mxu0 %v2591
    %2907 = vmatprep.subr.bf16.mxu0 0
    %2908 = vmatpush1.bf16.msra.mxu0 %v2590
    %2909 = vmatprep.subr.bf16.mxu0 0
    %2910 = vmatpush2.bf16.msra.mxu0 %v2605
    %2911 = vmatprep.subr.bf16.mxu0 0
    %2912 = vmatpush2.bf16.msra.mxu0 %v2604
    %2913 = vmatprep.subr.bf16.mxu0 0
    %2914 = vmatpush2.bf16.msra.mxu0 %v2603
    %2915 = vmatprep.subr.bf16.mxu0 0
    %2916 = vmatpush2.bf16.msra.mxu0 %v2602
    %2917 = vmatprep.subr.bf16.mxu0 0
    %2918 = vmatpush2.bf16.msra.mxu0 %v2601
    %2919 = vmatprep.subr.bf16.mxu0 0
    %2920 = vmatpush2.bf16.msra.mxu0 %v2600
    %2921 = vmatprep.subr.bf16.mxu0 0
    %2922 = vmatpush2.bf16.msra.mxu0 %v2599
    %2923 = vmatprep.subr.bf16.mxu0 0
    %2924 = vmatpush2.bf16.msra.mxu0 %v2598
    %2925 = vmatprep.mubr.bf16.mxu0 %v2411
    %2926 = vmatmul.mubr.bf16.gmra.mxu0 %v2410
    %v2927 = vpop.f32.mrf.mxu0
    %v2928 = vadd.f32 %v2887, %v2927
    %v2929 = vpop.f32.mrf.mxu0
    %v2930 = vpop.f32.mrf.mxu0
    %v2931 = vadd.f32 %v2890, %v2930
    %v2932 = vpop.f32.mrf.mxu0
    %2933 = vdwg.mxu0
    %v2935 = vlaneseq
    %v2936 = vshrl.u32 %v2935, 7
    %v2937 = vsub.s32 0, %v2936
    %v2938 = vrot.slane %v2476, %v2937
    %v2940 = vmul.f32 %v2928, %v2938
    %v2941 = vmul.f32 %v2931, %v2938
    %v2943 = vlaneseq
    %v2944 = vshrl.u32 %v2943, 7
    %v2945 = vsub.s32 0, %v2944
    %v2946 = vrot.slane %v2477, %v2945
    %v2948 = vadd.f32 %v2940, %v2946
    %v2949 = vadd.f32 %v2941, %v2946
    %2950 = vst.msk [vmem:[#allocation4] sm:$0xff] %vm76, %v2948
    %2951 = vst.msk [vmem:[#allocation4 + $0x8] sm:$0xff] %vm76, %v2949
    // Predicated region
    $region54: #{tpu_custom_call.1} parent=1 // pred_check
      _
    $region55: #{tpu_custom_call.1} parent=1 // pred_check_branch
      %2953 = sbr.rel (0) target = $region57
    $region56: #{tpu_custom_call.1} parent=1 // pred_region
      %s2955 = ssub.s32 256, 256
      %2956 = vsyncadd [#allocation5], %s2955
      %s2957 = sshll.u32 [#allocation4], 4
      %s2958 = int_to_ptr.vmem [resolvable:$true] %s2957
      %2963 = dma.vmem_to_hbm [thread:$0]  %s2958, 256, %s13, [#allocation5], 128, 128, 8
    $region57: #{tpu_custom_call.1} parent=1 // pred_fallthru
      _
    // Predicated region
    $region58: #{tpu_custom_call.1} parent=1 // pred_check
      _
    $region59: #{tpu_custom_call.1} parent=1 // pred_check_branch
      %2965 = sbr.rel (0) target = $region61
    $region60: #{tpu_custom_call.1} parent=1 // pred_region
      %2966 = dma.done [#allocation5], 256
    $region61: #{tpu_custom_call.1} parent=1 // pred_fallthru
      _
    %2967 = vsyncpa [#allocation5], 1
  %2968 = vsyncmov [#allocation3]
  %s2969 = vpop.sfrf %2968
  %p2970 = scmp.eq.s32.totalorder %s2969, 0
  %p2971 = pneg %p2970
  %2973 = shalt.err (%p2971)

</llo_original>
